<compile_context>
chip_gen: v7x
topology: tpu7x:2x2x1
jax: 0.10.0
libtpu: 0.0.40
codegen_flags: <defaults>
</compile_context>

<pallas_src>
import functools

import jax
import jax.numpy as jnp
from jax.experimental import pallas as pl
from jax.experimental.pallas import tpu as pltpu

_SQRT_2_OVER_PI = 0.7978845608028654   # sqrt(2/pi)
_GELU_C1 = 0.044715


def gelu_linear_kernel(a_ref, w_ref, b_ref, o_ref, *, compute_dtype):
    # a_ref: (tm, K) f32 activations; w_ref: (K, N) bf16 weight; b_ref: (1, N) f32 bias
    a = a_ref[...].astype(compute_dtype)
    # tanh-approx GELU: 0.5*x*(1 + tanh(sqrt(2/pi)*(x + 0.044715*x^3)))
    # tanh -> EUP slot; remaining mul/adds stay on the VPU in compute_dtype.
    inner = (_SQRT_2_OVER_PI * a) * (1.0 + _GELU_C1 * (a * a))
    g = 0.5 * a * (1.0 + jnp.tanh(inner))
    # bf16 operands -> single-pass MXU; accumulate in f32.
    y = jnp.dot(g.astype(jnp.bfloat16), w_ref[...],
                preferred_element_type=jnp.float32)
    o_ref[...] = (y + b_ref[...]).astype(o_ref.dtype)


def _device_kind():
    try:
        return jax.devices()[0].device_kind.lower()
    except Exception:
        return ""


def _default_tm():
    # v7x: grid=(4,) at M=384 -> even split across its 2 TensorCores with one
    # extra step per core for DMA overlap.  Single-TC chips: grid=(3,) keeps
    # per-step overhead low while still pipelining activation DMA vs compute.
    return 96 if "v7" in _device_kind() else 128


def _gelu_compute_dtype():
    kind = _device_kind()
    if "v6" in kind or "v7" in kind:
        return jnp.bfloat16       # bf16 VALU/EUP available
    return jnp.float32            # v5e & older: no bf16 VPU


def gelu_linear(x2d, w_kn_bf16, bias, *, tm=None, compute_dtype=None):
    M, K = x2d.shape
    Kw, N = w_kn_bf16.shape
    assert K == Kw and bias.shape == (1, N)
    if tm is None:
        tm = _default_tm()
    if compute_dtype is None:
        compute_dtype = _gelu_compute_dtype()

    grid = (pl.cdiv(M, tm),)   # ragged last block handled by Pallas masked stores

    kernel = functools.partial(gelu_linear_kernel, compute_dtype=compute_dtype)

    cost = pl.CostEstimate(
        flops=2 * M * K * N,
        transcendentals=M * K,
        bytes_accessed=(M * K * x2d.dtype.itemsize   # activations
                        + K * N * 2                  # bf16 weight
                        + N * 4                      # bias
                        + M * N * 4),                # f32 output
    )

    def _build_and_run(single_buffer_weights):
        # W / bias are grid-invariant; Buffered(1) drops their redundant second
        # VMEM buffer.  Zero behavioral change (their block index never moves).
        wb_kwargs = {"pipeline_mode": pl.Buffered(1)} if single_buffer_weights else {}
        in_specs = [
            pl.BlockSpec((tm, K), lambda i: (i, 0)),               # activations, tiled over M
            pl.BlockSpec((K, N), lambda i: (0, 0), **wb_kwargs),   # full weight, grid-invariant
            pl.BlockSpec((1, N), lambda i: (0, 0), **wb_kwargs),   # bias, grid-invariant
        ]
        return pl.pallas_call(
            kernel,
            out_shape=jax.ShapeDtypeStruct((M, N), x2d.dtype),
            grid_spec=pltpu.PrefetchScalarGridSpec(
                num_scalar_prefetch=0,
                grid=grid,
                in_specs=in_specs,
                out_specs=pl.BlockSpec((tm, N), lambda i: (i, 0)),
            ),
            compiler_params=pltpu.CompilerParams(
                dimension_semantics=("parallel",),
            ),
            cost_estimate=cost,
        )(x2d, w_kn_bf16, bias)

    try:
        return _build_and_run(True)
    except Exception:
        # pipeline_mode=pl.Buffered(1) not supported on this jax version:
        # fall back to the default double-buffered (still correct) path.
        return _build_and_run(False)


class M:
    """JAX/Pallas port of the PyTorch module: y = Linear(gelu(x)), 1024 -> 256."""

    def __init__(self, key):
        k_w, k_b = jax.random.split(key)
        in_features, out_features = 1024, 256
        bound = 1.0 / jnp.sqrt(in_features)
        # torch stores weight as (out, in); keep (in, out) for the kernel.
        self.weight_kn = jax.random.uniform(
            k_w, (in_features, out_features), jnp.float32, -bound, bound
        )
        self.bias = jax.random.uniform(
            k_b, (1, out_features), jnp.float32, -bound, bound
        )
        # bf16 copy fed to the kernel: half the HBM traffic, native MXU dtype.
        self.weight_kn_bf16 = self.weight_kn.astype(jnp.bfloat16)

    def __call__(self, x):
        # x: (B, S, 1024) -> (B, S, 256)
        B, S, K = x.shape
        x2d = x.reshape(B * S, K)
        y2d = gelu_linear(x2d, self.weight_kn_bf16, self.bias)
        return y2d.reshape(B, S, self.bias.shape[1])


if __name__ == "__main__":
    key = jax.random.PRNGKey(0)
    k_x, k_p = jax.random.split(key)

    # matches x276 = torch.randn([1, 384, 1024])
    x = jax.random.normal(k_x, (1, 384, 1024), jnp.float32)

    model = M(k_p)
    y = model(x)
    y = jax.block_until_ready(y)

    # sanity check against plain-JAX f32 exact-erf reference
    # (tolerance covers the intentional bf16 matmul operands + tanh-approx GELU)
    ref = jax.nn.gelu(x, approximate=False) @ model.weight_kn + model.bias[0]
    assert y.shape == (1, 384, 256)
    assert jnp.allclose(y, ref, atol=3e-2, rtol=3e-2)

    print("KERNEL_OK")
</pallas_src>

<mosaic_0001>
module attributes {stable_mosaic.version = 11 : i64} {
  func.func @gelu_linear_kernel(%arg0: i32, %arg1: memref<128x1024xf32, #tpu.memory_space<vmem>>, %arg2: memref<1024x256xbf16, #tpu.memory_space<vmem>>, %arg3: memref<1x256xf32, #tpu.memory_space<vmem>>, %arg4: memref<128x256xf32, #tpu.memory_space<vmem>>) attributes {dimension_semantics = [#tpu.dimension_semantics<parallel>], iteration_bounds = array<i64: 3>, scalar_prefetch = 0 : i64, scratch_operands = 0 : i64, tpu.core_type = #tpu.core_type<tc>, window_params = [{transform_indices = @transform_0, window_bounds = array<i64: 128, 1024>}, {pipeline_mode = #tpu.pipeline_mode<synchronous>, transform_indices = @transform_1, window_bounds = array<i64: 1024, 256>}, {pipeline_mode = #tpu.pipeline_mode<synchronous>, transform_indices = @transform_2, window_bounds = array<i64: 1, 256>}, {transform_indices = @transform_3, window_bounds = array<i64: 128, 256>}]} {
    %c0 = arith.constant 0 : index
    %c0_0 = arith.constant 0 : index
    %0 = vector.load %arg1[%c0, %c0_0] : memref<128x1024xf32, #tpu.memory_space<vmem>>, vector<128x1024xf32>
    %cst = arith.constant 0.797884583 : f32
    %1 = vector.broadcast %cst : f32 to vector<128x1024xf32>
    %2 = arith.mulf %1, %0 : vector<128x1024xf32>
    %3 = arith.mulf %0, %0 : vector<128x1024xf32>
    %cst_1 = arith.constant 4.471500e-02 : f32
    %4 = vector.broadcast %cst_1 : f32 to vector<128x1024xf32>
    %5 = arith.mulf %4, %3 : vector<128x1024xf32>
    %cst_2 = arith.constant 1.000000e+00 : f32
    %6 = vector.broadcast %cst_2 : f32 to vector<128x1024xf32>
    %7 = arith.addf %6, %5 : vector<128x1024xf32>
    %8 = arith.mulf %2, %7 : vector<128x1024xf32>
    %cst_3 = arith.constant 5.000000e-01 : f32
    %9 = vector.broadcast %cst_3 : f32 to vector<128x1024xf32>
    %10 = arith.mulf %9, %0 : vector<128x1024xf32>
    %11 = math.tanh %8 : vector<128x1024xf32>
    %cst_4 = arith.constant 1.000000e+00 : f32
    %12 = vector.broadcast %cst_4 : f32 to vector<128x1024xf32>
    %13 = arith.addf %12, %11 : vector<128x1024xf32>
    %14 = arith.mulf %10, %13 : vector<128x1024xf32>
    %15 = arith.truncf %14 : vector<128x1024xf32> to vector<128x1024xbf16>
    %c0_5 = arith.constant 0 : index
    %c0_6 = arith.constant 0 : index
    %16 = vector.load %arg2[%c0_5, %c0_6] : memref<1024x256xbf16, #tpu.memory_space<vmem>>, vector<1024x256xbf16>
    %cst_7 = arith.constant dense<0.000000e+00> : vector<128x256xf32>
    %17 = tpu.matmul %15, %16, %cst_7 {dimension_numbers = #tpu.dot_dimension_numbers<[1], [0], [0], [1], [0, 0, 1, 1], [], []>} : vector<128x1024xbf16>, vector<1024x256xbf16>, vector<128x256xf32> -> vector<128x256xf32>
    %c0_8 = arith.constant 0 : index
    %c0_9 = arith.constant 0 : index
    %18 = vector.load %arg3[%c0_8, %c0_9] : memref<1x256xf32, #tpu.memory_space<vmem>>, vector<1x256xf32>
    %19 = vector.broadcast %18 : vector<1x256xf32> to vector<128x256xf32>
    %20 = arith.addf %17, %19 : vector<128x256xf32>
    %c0_10 = arith.constant 0 : index
    %c0_11 = arith.constant 0 : index
    %21 = vector.load %arg4[%c0_10, %c0_11] : memref<128x256xf32, #tpu.memory_space<vmem>>, vector<128x256xf32>
    tpu.vector_store %arg4[%c0_10, %c0_11], %20 {strides = array<i32>} : memref<128x256xf32, #tpu.memory_space<vmem>>, vector<128x256xf32>,
    return
  }
  func.func @transform_0(%arg0: i32) -> (i32, i32) {
    %c0_i32 = arith.constant 0 : i32
    %c0_i32_0 = arith.constant 0 : i32
    return %arg0, %c0_i32 : i32, i32
  }
  func.func @transform_1(%arg0: i32) -> (i32, i32) {
    %c0_i32 = arith.constant 0 : i32
    %c0_i32_0 = arith.constant 0 : i32
    %c0_i32_1 = arith.constant 0 : i32
    return %c0_i32, %c0_i32_0 : i32, i32
  }
  func.func @transform_2(%arg0: i32) -> (i32, i32) {
    %c0_i32 = arith.constant 0 : i32
    %c0_i32_0 = arith.constant 0 : i32
    %c0_i32_1 = arith.constant 0 : i32
    return %c0_i32, %c0_i32_0 : i32, i32
  }
  func.func @transform_3(%arg0: i32) -> (i32, i32) {
    %c0_i32 = arith.constant 0 : i32
    %c0_i32_0 = arith.constant 0 : i32
    return %arg0, %c0_i32 : i32, i32
  }
}

module attributes {stable_mosaic.version = 11 : i64} {
  func.func @gelu_linear_kernel(%arg0: i32, %arg1: memref<128x1024xf32, #tpu.memory_space<vmem>>, %arg2: memref<1024x256xbf16, #tpu.memory_space<vmem>>, %arg3: memref<1x256xf32, #tpu.memory_space<vmem>>, %arg4: memref<128x256xf32, #tpu.memory_space<vmem>>) attributes {dimension_semantics = [#tpu.dimension_semantics<parallel>], iteration_bounds = array<i64: 3>, scalar_prefetch = 0 : i64, scratch_operands = 0 : i64, tpu.core_type = #tpu.core_type<tc>, window_params = [{transform_indices = @transform_0, window_bounds = array<i64: 128, 1024>}, {pipeline_mode = #tpu.pipeline_mode<synchronous>, transform_indices = @transform_1, window_bounds = array<i64: 1024, 256>}, {pipeline_mode = #tpu.pipeline_mode<synchronous>, transform_indices = @transform_2, window_bounds = array<i64: 1, 256>}, {transform_indices = @transform_3, window_bounds = array<i64: 128, 256>}]} {
    %c0 = arith.constant 0 : index
    %c0_0 = arith.constant 0 : index
    %0 = vector.load %arg1[%c0, %c0_0] : memref<128x1024xf32, #tpu.memory_space<vmem>>, vector<128x1024xf32>
    %cst = arith.constant 0.797884583 : f32
    %1 = vector.broadcast %cst : f32 to vector<128x1024xf32>
    %2 = arith.mulf %1, %0 : vector<128x1024xf32>
    %3 = arith.mulf %0, %0 : vector<128x1024xf32>
    %cst_1 = arith.constant 4.471500e-02 : f32
    %4 = vector.broadcast %cst_1 : f32 to vector<128x1024xf32>
    %5 = arith.mulf %4, %3 : vector<128x1024xf32>
    %cst_2 = arith.constant 1.000000e+00 : f32
    %6 = vector.broadcast %cst_2 : f32 to vector<128x1024xf32>
    %7 = arith.addf %6, %5 : vector<128x1024xf32>
    %8 = arith.mulf %2, %7 : vector<128x1024xf32>
    %cst_3 = arith.constant 5.000000e-01 : f32
    %9 = vector.broadcast %cst_3 : f32 to vector<128x1024xf32>
    %10 = arith.mulf %9, %0 : vector<128x1024xf32>
    %11 = math.tanh %8 : vector<128x1024xf32>
    %cst_4 = arith.constant 1.000000e+00 : f32
    %12 = vector.broadcast %cst_4 : f32 to vector<128x1024xf32>
    %13 = arith.addf %12, %11 : vector<128x1024xf32>
    %14 = arith.mulf %10, %13 : vector<128x1024xf32>
    %15 = arith.truncf %14 : vector<128x1024xf32> to vector<128x1024xbf16>
    %c0_5 = arith.constant 0 : index
    %c0_6 = arith.constant 0 : index
    %16 = vector.load %arg2[%c0_5, %c0_6] : memref<1024x256xbf16, #tpu.memory_space<vmem>>, vector<1024x256xbf16>
    %cst_7 = arith.constant dense<0.000000e+00> : vector<128x256xf32>
    %17 = tpu.matmul %15, %16, %cst_7 {dimension_numbers = #tpu.dot_dimension_numbers<[1], [0], [0], [1], [0, 0, 1, 1], [], []>} : vector<128x1024xbf16>, vector<1024x256xbf16>, vector<128x256xf32> -> vector<128x256xf32>
    %c0_8 = arith.constant 0 : index
    %c0_9 = arith.constant 0 : index
    %18 = vector.load %arg3[%c0_8, %c0_9] : memref<1x256xf32, #tpu.memory_space<vmem>>, vector<1x256xf32>
    %19 = vector.broadcast %18 : vector<1x256xf32> to vector<128x256xf32>
    %20 = arith.addf %17, %19 : vector<128x256xf32>
    %c0_10 = arith.constant 0 : index
    %c0_11 = arith.constant 0 : index
    %21 = vector.load %arg4[%c0_10, %c0_11] : memref<128x256xf32, #tpu.memory_space<vmem>>, vector<128x256xf32>
    tpu.vector_store %arg4[%c0_10, %c0_11], %20 {strides = array<i32>} : memref<128x256xf32, #tpu.memory_space<vmem>>, vector<128x256xf32>,
    return
  }
  func.func @transform_0(%arg0: i32) -> (i32, i32) {
    %c0_i32 = arith.constant 0 : i32
    %c0_i32_0 = arith.constant 0 : i32
    return %arg0, %c0_i32 : i32, i32
  }
  func.func @transform_1(%arg0: i32) -> (i32, i32) {
    %c0_i32 = arith.constant 0 : i32
    %c0_i32_0 = arith.constant 0 : i32
    %c0_i32_1 = arith.constant 0 : i32
    return %c0_i32, %c0_i32_0 : i32, i32
  }
  func.func @transform_2(%arg0: i32) -> (i32, i32) {
    %c0_i32 = arith.constant 0 : i32
    %c0_i32_0 = arith.constant 0 : i32
    %c0_i32_1 = arith.constant 0 : i32
    return %c0_i32, %c0_i32_0 : i32, i32
  }
  func.func @transform_3(%arg0: i32) -> (i32, i32) {
    %c0_i32 = arith.constant 0 : i32
    %c0_i32_0 = arith.constant 0 : i32
    return %arg0, %c0_i32 : i32, i32
  }
}

</mosaic_0001>

<llo_original>
// kernel: tpu_custom_call.1
$region0: #{tpu_custom_call.1}
  #allocation0 [shape = 'u32[]', space=smem, size = 0x4, offset = 0x4, fixed_abs, tag = 'smem constant byte address 0x4 - core index']
  #allocation1 [shape = 'u32[144,128]{1,0:T(1,128)}', space=vmem, size = 0x12000, scoped, tag = 'internal scratch']
  %s0 = inlined_call_operand.hbm [shape: f32[384,1024], index: 0, kind: input, shape index: {}]
  %s1 = inlined_call_operand.hbm [shape: bf16[1024,256], index: 1, kind: input, shape index: {}]
  %s2 = inlined_call_operand.hbm [shape: f32[1,256], index: 2, kind: input, shape index: {}]
  %s3 = inlined_call_operand.hbm [shape: f32[384,256], index: 3, kind: output, shape index: {}]
  %s4 = sld [smem:[#allocation0]]
  $region57: #{tpu_custom_call.1} parent=0
    _
  %s6 = ssub.s32 1, %s4
  %s7 = scalar_select 0, %s6, %s4
  $region1: #{tpu_custom_call.1} parent=0
    #allocation2 [shape = 'u8[1048576]{0}', space=vmem, size = 0x100000, scoped, tag = 'input window, operand 0']
    #allocation3 [shape = 's32[2]{0}', space=sflag, size = 0x8, scoped, tag = 'scoped memory for tpu_custom_call.1']
    #allocation4 [shape = 's32[2]{0}', space=sflag, size = 0x8, scoped, tag = 'scoped memory for tpu_custom_call.1']
    #allocation5 [shape = 'u8[524288]{0}', space=vmem, size = 0x80000, scoped, tag = 'input window, operand 1, single buffered']
    #allocation6 [shape = 's32[1]{0}', space=sflag, size = 0x4, scoped, tag = 'scoped memory for tpu_custom_call.1']
    #allocation7 [shape = 'u8[1024]{0}', space=vmem, size = 0x400, scoped, tag = 'input window, operand 2, single buffered']
    #allocation8 [shape = 'u8[262144]{0}', space=vmem, size = 0x40000, scoped, tag = 'output window, operand 0']
    %8 = vsyncpa [#allocation3], 0
    %s9 = scalar_lea.sflag [#allocation3], 1
    %10 = vsyncpa %s9, 0
    %11 = vsyncpa [#allocation6], 0
    %12 = vsyncpa [#allocation4], 0
    %s13 = scalar_lea.sflag [#allocation4], 1
    %14 = vsyncpa %s13, 0
    loop: start=0, step=1, limit=5
    $region2: #{tpu_custom_call.1} parent=1 // loop_pre_header
      _
    $region3: #{tpu_custom_call.1} parent=1 // loop_header
      %s16 = sphi 0, %s20
      %p17 = scmp.ge.s32.totalorder %s16, 5
      %s26 = sphi 0, %s28
      %s29 = sphi 0, %s26
      %s30 = sphi 0, %s29
      %s46 = sphi 0, %s30
      %s50 = sphi 0, %s50
      %s52 = sphi 0, %s50
      %s53 = sphi 0, %s52
      %s67 = sphi 0, %s53
      %s71 = sphi 0, %s71
      %s73 = sphi 0, %s71
      %s74 = sphi 0, %s73
      %s88 = sphi 0, %s74
      %s94 = sphi 0, %s96
      %s97 = sphi 0, %s94
      %s98 = sphi 0, %s97
      %s114 = sphi 0, %s98
    $region4: #{tpu_custom_call.1} parent=1 // loop_header_branch
      %19 = sbr.rel (%p17) target = $region8
    $region5: #{tpu_custom_call.1} parent=1 // loop_body
      %s21 = ssub.s32 %s16, 1
      %s22 = ssub.s32 %s16, 2
      %s23 = sadd.s32 %s16, 1
      %s24 = ssub.s32 %s16, %s23
      %p25 = scmp.eq.s32.totalorder %s24, 0
      %s27 = sadd.s32 %s26, 1
      %s28 = scalar_select %p25, %s26, %s27
      %p31 = pneg %p25
      %p32 = scmp.eq.s32.totalorder %s16, 2
      %p33 = por %p31, %p32
      %p34 = scmp.ne.s32.totalorder %s26, %s29
      %p35 = scmp.eq.s32.totalorder %s16, 0
      %p36 = por %p34, %p35
      %p37 = scmp.ne.s32.totalorder %s26, %s29
      %p38 = scmp.eq.s32.totalorder %s21, 2
      %p39 = por %p37, %p38
      %p40 = scmp.ne.s32.totalorder %s29, %s30
      %p41 = scmp.eq.s32.totalorder %s21, 0
      %p42 = por %p40, %p41
      %p43 = scmp.ne.s32.totalorder %s29, %s30
      %p44 = scmp.eq.s32.totalorder %s22, 2
      %p45 = por %p43, %p44
      %p47 = scmp.ne.s32.totalorder %s30, %s46
      %p48 = scmp.eq.s32.totalorder %s22, 0
      %p49 = por %p47, %p48
      %s51 = sadd.s32 %s50, 1
      %p54 = scmp.eq.s32.totalorder %s16, 2
      %p55 = scmp.ne.s32.totalorder %s50, %s52
      %p56 = scmp.eq.s32.totalorder %s16, 0
      %p57 = por %p55, %p56
      %p58 = scmp.ne.s32.totalorder %s50, %s52
      %p59 = scmp.eq.s32.totalorder %s21, 2
      %p60 = por %p58, %p59
      %p61 = scmp.ne.s32.totalorder %s52, %s53
      %p62 = scmp.eq.s32.totalorder %s21, 0
      %p63 = por %p61, %p62
      %p64 = scmp.ne.s32.totalorder %s52, %s53
      %p65 = scmp.eq.s32.totalorder %s22, 2
      %p66 = por %p64, %p65
      %p68 = scmp.ne.s32.totalorder %s53, %s67
      %p69 = scmp.eq.s32.totalorder %s22, 0
      %p70 = por %p68, %p69
      %s72 = sadd.s32 %s71, 1
      %p75 = scmp.eq.s32.totalorder %s16, 2
      %p76 = scmp.ne.s32.totalorder %s71, %s73
      %p77 = scmp.eq.s32.totalorder %s16, 0
      %p78 = por %p76, %p77
      %p79 = scmp.ne.s32.totalorder %s71, %s73
      %p80 = scmp.eq.s32.totalorder %s21, 2
      %p81 = por %p79, %p80
      %p82 = scmp.ne.s32.totalorder %s73, %s74
      %p83 = scmp.eq.s32.totalorder %s21, 0
      %p84 = por %p82, %p83
      %p85 = scmp.ne.s32.totalorder %s73, %s74
      %p86 = scmp.eq.s32.totalorder %s22, 2
      %p87 = por %p85, %p86
      %p89 = scmp.ne.s32.totalorder %s74, %s88
      %p90 = scmp.eq.s32.totalorder %s22, 0
      %p91 = por %p89, %p90
      %s92 = ssub.s32 %s16, %s23
      %p93 = scmp.eq.s32.totalorder %s92, 0
      %s95 = sadd.s32 %s94, 1
      %s96 = scalar_select %p93, %s94, %s95
      %p99 = pneg %p93
      %p100 = scmp.eq.s32.totalorder %s16, 2
      %p101 = por %p99, %p100
      %p102 = scmp.ne.s32.totalorder %s94, %s97
      %p103 = scmp.eq.s32.totalorder %s16, 0
      %p104 = por %p102, %p103
      %p105 = scmp.ne.s32.totalorder %s94, %s97
      %p106 = scmp.eq.s32.totalorder %s21, 2
      %p107 = por %p105, %p106
      %p108 = scmp.ne.s32.totalorder %s97, %s98
      %p109 = scmp.eq.s32.totalorder %s21, 0
      %p110 = por %p108, %p109
      %p111 = scmp.ne.s32.totalorder %s97, %s98
      %p112 = scmp.eq.s32.totalorder %s22, 2
      %p113 = por %p111, %p112
      %p115 = scmp.ne.s32.totalorder %s98, %s114
      %p116 = scmp.eq.s32.totalorder %s22, 0
      %p117 = por %p115, %p116
      %p118 = scmp.le.s32.totalorder 1, %s16
      %p119 = scmp.lt.s32.totalorder %s16, 4
      %p120 = pnand %p118, %p119
      %p121 = pneg %p120
      // Predicated region
      $region9: #{tpu_custom_call.1} parent=5 // pred_check
        _
      $region10: #{tpu_custom_call.1} parent=5 // pred_check_branch
        %123 = sbr.rel (%p120) target = $region12
      $region11: #{tpu_custom_call.1} parent=5 // pred_region
        %s124 = ssub.s32 %s16, 1
        // Predicated region
        $region13: #{tpu_custom_call.1} parent=11 // pred_check
          %p125 = pneg %p63
        $region14: #{tpu_custom_call.1} parent=11 // pred_check_branch
          %127 = sbr.rel (%p125) target = $region16
        $region15: #{tpu_custom_call.1} parent=11 // pred_region
          %s129 = ssub.s32 16384, 16384
          %130 = vsyncadd [#allocation6], %s129
          %s131 = sshll.u32 [#allocation5], 4
          %s132 = int_to_ptr.vmem [resolvable:$true] %s131
          %137 = dma.hbm_to_vmem [thread:$0]  %s1, 16384, %s132, [#allocation6], 128, 128, 8
        $region16: #{tpu_custom_call.1} parent=11 // pred_fallthru
          _
        // Predicated region
        $region17: #{tpu_custom_call.1} parent=11 // pred_check
          %p138 = pneg %p84
        $region18: #{tpu_custom_call.1} parent=11 // pred_check_branch
          %140 = sbr.rel (%p138) target = $region20
        $region19: #{tpu_custom_call.1} parent=11 // pred_region
          %s142 = ssub.s32 32, 32
          %143 = vsyncadd [#allocation6], %s142
          %s145 = sshll.u32 [#allocation7], 4
          %s146 = int_to_ptr.vmem [resolvable:$true] %s145
          %148 = dma.hbm_to_vmem [thread:$0]  %s2, 32, %s146, [#allocation6]
        $region20: #{tpu_custom_call.1} parent=11 // pred_fallthru
          _
      $region12: #{tpu_custom_call.1} parent=5 // pred_fallthru
        _
      %p149 = scmp.lt.s32.totalorder %s16, 3
      // Predicated region
      $region21: #{tpu_custom_call.1} parent=5 // pred_check
        %p150 = pneg %p149
      $region22: #{tpu_custom_call.1} parent=5 // pred_check_branch
        %152 = sbr.rel (%p150) target = $region24
      $region23: #{tpu_custom_call.1} parent=5 // pred_region
        // Predicated region
        $region25: #{tpu_custom_call.1} parent=23 // pred_check
          %p153 = pneg %p36
        $region26: #{tpu_custom_call.1} parent=23 // pred_check_branch
          %155 = sbr.rel (%p153) target = $region28
        $region27: #{tpu_custom_call.1} parent=23 // pred_region
          %s156 = sand.u32 %s26, 1
          %s157 = scalar_lea.sflag [#allocation3], %s156
          %s158 = sand.u32 %s26, 1
          %s159 = smul.addr %s158, 1024
          %s160 = scalar_lea.vmem [#allocation2], %s159
          %s161 = smul.u32 16, %s16
          %s163 = ssub.s32 16384, 16384
          %164 = vsyncadd %s157, %s163
          %s165 = smul.addr %s161, 8
          %s166 = smul.addr %s165, 128
          %s167 = scalar_lea.hbm %s0, %s166
          %s168 = sshll.u32 %s160, 4
          %s169 = int_to_ptr.vmem [resolvable:$true] %s168
          %174 = dma.hbm_to_vmem [thread:$0]  %s167, 16384, %s169, %s157, 1024, 1024, 64
        $region28: #{tpu_custom_call.1} parent=23 // pred_fallthru
          _
      $region24: #{tpu_custom_call.1} parent=5 // pred_fallthru
        _
      %p175 = scmp.le.s32.totalorder 1, %s16
      %p176 = scmp.lt.s32.totalorder %s16, 4
      %p177 = pnand %p175, %p176
      %p178 = pneg %p177
      // Predicated region
      $region29: #{tpu_custom_call.1} parent=5 // pred_check
        _
      $region30: #{tpu_custom_call.1} parent=5 // pred_check_branch
        %180 = sbr.rel (%p177) target = $region32
      $region31: #{tpu_custom_call.1} parent=5 // pred_region
        %s181 = ssub.s32 %s16, 1
        %s182 = sand.u32 %s29, 1
        %s183 = scalar_lea.sflag [#allocation3], %s182
        %s184 = sand.u32 %s29, 1
        %s185 = smul.addr %s184, 1024
        %s186 = scalar_lea.vmem [#allocation2], %s185
        // Predicated region
        $region33: #{tpu_custom_call.1} parent=31 // pred_check
          %p187 = pneg %p42
        $region34: #{tpu_custom_call.1} parent=31 // pred_check_branch
          %189 = sbr.rel (%p187) target = $region36
        $region35: #{tpu_custom_call.1} parent=31 // pred_region
          %190 = dma.done %s183, 16384
        $region36: #{tpu_custom_call.1} parent=31 // pred_fallthru
          _
        // Predicated region
        $region37: #{tpu_custom_call.1} parent=31 // pred_check
          %p191 = pneg %p63
        $region38: #{tpu_custom_call.1} parent=31 // pred_check_branch
          %193 = sbr.rel (%p191) target = $region40
        $region39: #{tpu_custom_call.1} parent=31 // pred_region
          %194 = dma.done [#allocation6], 16384
        $region40: #{tpu_custom_call.1} parent=31 // pred_fallthru
          _
        // Predicated region
        $region41: #{tpu_custom_call.1} parent=31 // pred_check
          %p195 = pneg %p84
        $region42: #{tpu_custom_call.1} parent=31 // pred_check_branch
          %197 = sbr.rel (%p195) target = $region44
        $region43: #{tpu_custom_call.1} parent=31 // pred_region
          %198 = dma.done [#allocation6], 32
        $region44: #{tpu_custom_call.1} parent=31 // pred_fallthru
          _
        %s199 = sand.u32 %s29, 1
        %s200 = scalar_lea.sflag [#allocation3], %s199
        %s201 = sand.u32 %s29, 1
        %s202 = smul.addr %s201, 1024
        %s203 = scalar_lea.vmem [#allocation2], %s202
        %p204 = pneg %p42
        %p205 = pneg %p39
        %p206 = pneg %p63
        %p207 = pneg %p60
        %p208 = pneg %p84
        %p209 = pneg %p81
        %p210 = pneg %p110
        %p211 = pneg %p107
        %s212 = sand.u32 %s97, 1
        %s213 = scalar_lea.sflag [#allocation4], %s212
        %s214 = sand.u32 %s97, 1
        %s215 = smul.addr %s214, 256
        %s216 = scalar_lea.vmem [#allocation8], %s215
        %s217 = smul.u32 16, %s21
        %s218 = smul.u32 16, %s21
        %v219 = vld [vmem:[%s186] sm:$0xff]
        %v220 = vld [vmem:[%s186 + $0x8] sm:$0xff]
        %v221 = vld [vmem:[%s186 + $0x10] sm:$0xff]
        %v222 = vld [vmem:[%s186 + $0x18] sm:$0xff]
        %v223 = vld [vmem:[%s186 + $0x20] sm:$0xff]
        %v224 = vld [vmem:[%s186 + $0x28] sm:$0xff]
        %v225 = vld [vmem:[%s186 + $0x30] sm:$0xff]
        %v226 = vld [vmem:[%s186 + $0x38] sm:$0xff]
        %v227 = vld [vmem:[%s186 + $0x40] sm:$0xff]
        %v228 = vld [vmem:[%s186 + $0x48] sm:$0xff]
        %v229 = vld [vmem:[%s186 + $0x50] sm:$0xff]
        %v230 = vld [vmem:[%s186 + $0x58] sm:$0xff]
        %v231 = vld [vmem:[%s186 + $0x60] sm:$0xff]
        %v232 = vld [vmem:[%s186 + $0x68] sm:$0xff]
        %v233 = vld [vmem:[%s186 + $0x70] sm:$0xff]
        %v234 = vld [vmem:[%s186 + $0x78] sm:$0xff]
        %v235 = vld [vmem:[%s186 + $0x80] sm:$0xff]
        %v236 = vld [vmem:[%s186 + $0x88] sm:$0xff]
        %v237 = vld [vmem:[%s186 + $0x90] sm:$0xff]
        %v238 = vld [vmem:[%s186 + $0x98] sm:$0xff]
        %v239 = vld [vmem:[%s186 + $0xa0] sm:$0xff]
        %v240 = vld [vmem:[%s186 + $0xa8] sm:$0xff]
        %v241 = vld [vmem:[%s186 + $0xb0] sm:$0xff]
        %v242 = vld [vmem:[%s186 + $0xb8] sm:$0xff]
        %v243 = vld [vmem:[%s186 + $0xc0] sm:$0xff]
        %v244 = vld [vmem:[%s186 + $0xc8] sm:$0xff]
        %v245 = vld [vmem:[%s186 + $0xd0] sm:$0xff]
        %v246 = vld [vmem:[%s186 + $0xd8] sm:$0xff]
        %v247 = vld [vmem:[%s186 + $0xe0] sm:$0xff]
        %v248 = vld [vmem:[%s186 + $0xe8] sm:$0xff]
        %v249 = vld [vmem:[%s186 + $0xf0] sm:$0xff]
        %v250 = vld [vmem:[%s186 + $0xf8] sm:$0xff]
        %v251 = vld [vmem:[%s186 + $0x100] sm:$0xff]
        %v252 = vld [vmem:[%s186 + $0x108] sm:$0xff]
        %v253 = vld [vmem:[%s186 + $0x110] sm:$0xff]
        %v254 = vld [vmem:[%s186 + $0x118] sm:$0xff]
        %v255 = vld [vmem:[%s186 + $0x120] sm:$0xff]
        %v256 = vld [vmem:[%s186 + $0x128] sm:$0xff]
        %v257 = vld [vmem:[%s186 + $0x130] sm:$0xff]
        %v258 = vld [vmem:[%s186 + $0x138] sm:$0xff]
        %v259 = vld [vmem:[%s186 + $0x140] sm:$0xff]
        %v260 = vld [vmem:[%s186 + $0x148] sm:$0xff]
        %v261 = vld [vmem:[%s186 + $0x150] sm:$0xff]
        %v262 = vld [vmem:[%s186 + $0x158] sm:$0xff]
        %v263 = vld [vmem:[%s186 + $0x160] sm:$0xff]
        %v264 = vld [vmem:[%s186 + $0x168] sm:$0xff]
        %v265 = vld [vmem:[%s186 + $0x170] sm:$0xff]
        %v266 = vld [vmem:[%s186 + $0x178] sm:$0xff]
        %v267 = vld [vmem:[%s186 + $0x180] sm:$0xff]
        %v268 = vld [vmem:[%s186 + $0x188] sm:$0xff]
        %v269 = vld [vmem:[%s186 + $0x190] sm:$0xff]
        %v270 = vld [vmem:[%s186 + $0x198] sm:$0xff]
        %v271 = vld [vmem:[%s186 + $0x1a0] sm:$0xff]
        %v272 = vld [vmem:[%s186 + $0x1a8] sm:$0xff]
        %v273 = vld [vmem:[%s186 + $0x1b0] sm:$0xff]
        %v274 = vld [vmem:[%s186 + $0x1b8] sm:$0xff]
        %v275 = vld [vmem:[%s186 + $0x1c0] sm:$0xff]
        %v276 = vld [vmem:[%s186 + $0x1c8] sm:$0xff]
        %v277 = vld [vmem:[%s186 + $0x1d0] sm:$0xff]
        %v278 = vld [vmem:[%s186 + $0x1d8] sm:$0xff]
        %v279 = vld [vmem:[%s186 + $0x1e0] sm:$0xff]
        %v280 = vld [vmem:[%s186 + $0x1e8] sm:$0xff]
        %v281 = vld [vmem:[%s186 + $0x1f0] sm:$0xff]
        %v282 = vld [vmem:[%s186 + $0x1f8] sm:$0xff]
        %v283 = vld [vmem:[%s186 + $0x200] sm:$0xff]
        %v284 = vld [vmem:[%s186 + $0x208] sm:$0xff]
        %v285 = vld [vmem:[%s186 + $0x210] sm:$0xff]
        %v286 = vld [vmem:[%s186 + $0x218] sm:$0xff]
        %v287 = vld [vmem:[%s186 + $0x220] sm:$0xff]
        %v288 = vld [vmem:[%s186 + $0x228] sm:$0xff]
        %v289 = vld [vmem:[%s186 + $0x230] sm:$0xff]
        %v290 = vld [vmem:[%s186 + $0x238] sm:$0xff]
        %v291 = vld [vmem:[%s186 + $0x240] sm:$0xff]
        %v292 = vld [vmem:[%s186 + $0x248] sm:$0xff]
        %v293 = vld [vmem:[%s186 + $0x250] sm:$0xff]
        %v294 = vld [vmem:[%s186 + $0x258] sm:$0xff]
        %v295 = vld [vmem:[%s186 + $0x260] sm:$0xff]
        %v296 = vld [vmem:[%s186 + $0x268] sm:$0xff]
        %v297 = vld [vmem:[%s186 + $0x270] sm:$0xff]
        %v298 = vld [vmem:[%s186 + $0x278] sm:$0xff]
        %v299 = vld [vmem:[%s186 + $0x280] sm:$0xff]
        %v300 = vld [vmem:[%s186 + $0x288] sm:$0xff]
        %v301 = vld [vmem:[%s186 + $0x290] sm:$0xff]
        %v302 = vld [vmem:[%s186 + $0x298] sm:$0xff]
        %v303 = vld [vmem:[%s186 + $0x2a0] sm:$0xff]
        %v304 = vld [vmem:[%s186 + $0x2a8] sm:$0xff]
        %v305 = vld [vmem:[%s186 + $0x2b0] sm:$0xff]
        %v306 = vld [vmem:[%s186 + $0x2b8] sm:$0xff]
        %v307 = vld [vmem:[%s186 + $0x2c0] sm:$0xff]
        %v308 = vld [vmem:[%s186 + $0x2c8] sm:$0xff]
        %v309 = vld [vmem:[%s186 + $0x2d0] sm:$0xff]
        %v310 = vld [vmem:[%s186 + $0x2d8] sm:$0xff]
        %v311 = vld [vmem:[%s186 + $0x2e0] sm:$0xff]
        %v312 = vld [vmem:[%s186 + $0x2e8] sm:$0xff]
        %v313 = vld [vmem:[%s186 + $0x2f0] sm:$0xff]
        %v314 = vld [vmem:[%s186 + $0x2f8] sm:$0xff]
        %v315 = vld [vmem:[%s186 + $0x300] sm:$0xff]
        %v316 = vld [vmem:[%s186 + $0x308] sm:$0xff]
        %v317 = vld [vmem:[%s186 + $0x310] sm:$0xff]
        %v318 = vld [vmem:[%s186 + $0x318] sm:$0xff]
        %v319 = vld [vmem:[%s186 + $0x320] sm:$0xff]
        %v320 = vld [vmem:[%s186 + $0x328] sm:$0xff]
        %v321 = vld [vmem:[%s186 + $0x330] sm:$0xff]
        %v322 = vld [vmem:[%s186 + $0x338] sm:$0xff]
        %v323 = vld [vmem:[%s186 + $0x340] sm:$0xff]
        %v324 = vld [vmem:[%s186 + $0x348] sm:$0xff]
        %v325 = vld [vmem:[%s186 + $0x350] sm:$0xff]
        %v326 = vld [vmem:[%s186 + $0x358] sm:$0xff]
        %v327 = vld [vmem:[%s186 + $0x360] sm:$0xff]
        %v328 = vld [vmem:[%s186 + $0x368] sm:$0xff]
        %v329 = vld [vmem:[%s186 + $0x370] sm:$0xff]
        %v330 = vld [vmem:[%s186 + $0x378] sm:$0xff]
        %v331 = vld [vmem:[%s186 + $0x380] sm:$0xff]
        %v332 = vld [vmem:[%s186 + $0x388] sm:$0xff]
        %v333 = vld [vmem:[%s186 + $0x390] sm:$0xff]
        %v334 = vld [vmem:[%s186 + $0x398] sm:$0xff]
        %v335 = vld [vmem:[%s186 + $0x3a0] sm:$0xff]
        %v336 = vld [vmem:[%s186 + $0x3a8] sm:$0xff]
        %v337 = vld [vmem:[%s186 + $0x3b0] sm:$0xff]
        %v338 = vld [vmem:[%s186 + $0x3b8] sm:$0xff]
        %v339 = vld [vmem:[%s186 + $0x3c0] sm:$0xff]
        %v340 = vld [vmem:[%s186 + $0x3c8] sm:$0xff]
        %v341 = vld [vmem:[%s186 + $0x3d0] sm:$0xff]
        %v342 = vld [vmem:[%s186 + $0x3d8] sm:$0xff]
        %v343 = vld [vmem:[%s186 + $0x3e0] sm:$0xff]
        %v344 = vld [vmem:[%s186 + $0x3e8] sm:$0xff]
        %v345 = vld [vmem:[%s186 + $0x3f0] sm:$0xff]
        %v346 = vld [vmem:[%s186 + $0x3f8] sm:$0xff]
        %v347 = vmul.f32 %v219, 0.7978846
        %v348 = vmul.f32 %v220, 0.7978846
        %v349 = vmul.f32 %v221, 0.7978846
        %v350 = vmul.f32 %v222, 0.7978846
        %v351 = vmul.f32 %v223, 0.7978846
        %v352 = vmul.f32 %v224, 0.7978846
        %v353 = vmul.f32 %v225, 0.7978846
        %v354 = vmul.f32 %v226, 0.7978846
        %v355 = vmul.f32 %v227, 0.7978846
        %v356 = vmul.f32 %v228, 0.7978846
        %v357 = vmul.f32 %v229, 0.7978846
        %v358 = vmul.f32 %v230, 0.7978846
        %v359 = vmul.f32 %v231, 0.7978846
        %v360 = vmul.f32 %v232, 0.7978846
        %v361 = vmul.f32 %v233, 0.7978846
        %v362 = vmul.f32 %v234, 0.7978846
        %v363 = vmul.f32 %v235, 0.7978846
        %v364 = vmul.f32 %v236, 0.7978846
        %v365 = vmul.f32 %v237, 0.7978846
        %v366 = vmul.f32 %v238, 0.7978846
        %v367 = vmul.f32 %v239, 0.7978846
        %v368 = vmul.f32 %v240, 0.7978846
        %v369 = vmul.f32 %v241, 0.7978846
        %v370 = vmul.f32 %v242, 0.7978846
        %v371 = vmul.f32 %v243, 0.7978846
        %v372 = vmul.f32 %v244, 0.7978846
        %v373 = vmul.f32 %v245, 0.7978846
        %v374 = vmul.f32 %v246, 0.7978846
        %v375 = vmul.f32 %v247, 0.7978846
        %v376 = vmul.f32 %v248, 0.7978846
        %v377 = vmul.f32 %v249, 0.7978846
        %v378 = vmul.f32 %v250, 0.7978846
        %v379 = vmul.f32 %v251, 0.7978846
        %v380 = vmul.f32 %v252, 0.7978846
        %v381 = vmul.f32 %v253, 0.7978846
        %v382 = vmul.f32 %v254, 0.7978846
        %v383 = vmul.f32 %v255, 0.7978846
        %v384 = vmul.f32 %v256, 0.7978846
        %v385 = vmul.f32 %v257, 0.7978846
        %v386 = vmul.f32 %v258, 0.7978846
        %v387 = vmul.f32 %v259, 0.7978846
        %v388 = vmul.f32 %v260, 0.7978846
        %v389 = vmul.f32 %v261, 0.7978846
        %v390 = vmul.f32 %v262, 0.7978846
        %v391 = vmul.f32 %v263, 0.7978846
        %v392 = vmul.f32 %v264, 0.7978846
        %v393 = vmul.f32 %v265, 0.7978846
        %v394 = vmul.f32 %v266, 0.7978846
        %v395 = vmul.f32 %v267, 0.7978846
        %v396 = vmul.f32 %v268, 0.7978846
        %v397 = vmul.f32 %v269, 0.7978846
        %v398 = vmul.f32 %v270, 0.7978846
        %v399 = vmul.f32 %v271, 0.7978846
        %v400 = vmul.f32 %v272, 0.7978846
        %v401 = vmul.f32 %v273, 0.7978846
        %v402 = vmul.f32 %v274, 0.7978846
        %v403 = vmul.f32 %v275, 0.7978846
        %v404 = vmul.f32 %v276, 0.7978846
        %v405 = vmul.f32 %v277, 0.7978846
        %v406 = vmul.f32 %v278, 0.7978846
        %v407 = vmul.f32 %v279, 0.7978846
        %v408 = vmul.f32 %v280, 0.7978846
        %v409 = vmul.f32 %v281, 0.7978846
        %v410 = vmul.f32 %v282, 0.7978846
        %v411 = vmul.f32 %v283, 0.7978846
        %v412 = vmul.f32 %v284, 0.7978846
        %v413 = vmul.f32 %v285, 0.7978846
        %v414 = vmul.f32 %v286, 0.7978846
        %v415 = vmul.f32 %v287, 0.7978846
        %v416 = vmul.f32 %v288, 0.7978846
        %v417 = vmul.f32 %v289, 0.7978846
        %v418 = vmul.f32 %v290, 0.7978846
        %v419 = vmul.f32 %v291, 0.7978846
        %v420 = vmul.f32 %v292, 0.7978846
        %v421 = vmul.f32 %v293, 0.7978846
        %v422 = vmul.f32 %v294, 0.7978846
        %v423 = vmul.f32 %v295, 0.7978846
        %v424 = vmul.f32 %v296, 0.7978846
        %v425 = vmul.f32 %v297, 0.7978846
        %v426 = vmul.f32 %v298, 0.7978846
        %v427 = vmul.f32 %v299, 0.7978846
        %v428 = vmul.f32 %v300, 0.7978846
        %v429 = vmul.f32 %v301, 0.7978846
        %v430 = vmul.f32 %v302, 0.7978846
        %v431 = vmul.f32 %v303, 0.7978846
        %v432 = vmul.f32 %v304, 0.7978846
        %v433 = vmul.f32 %v305, 0.7978846
        %v434 = vmul.f32 %v306, 0.7978846
        %v435 = vmul.f32 %v307, 0.7978846
        %v436 = vmul.f32 %v308, 0.7978846
        %v437 = vmul.f32 %v309, 0.7978846
        %v438 = vmul.f32 %v310, 0.7978846
        %v439 = vmul.f32 %v311, 0.7978846
        %v440 = vmul.f32 %v312, 0.7978846
        %v441 = vmul.f32 %v313, 0.7978846
        %v442 = vmul.f32 %v314, 0.7978846
        %v443 = vmul.f32 %v315, 0.7978846
        %v444 = vmul.f32 %v316, 0.7978846
        %v445 = vmul.f32 %v317, 0.7978846
        %v446 = vmul.f32 %v318, 0.7978846
        %v447 = vmul.f32 %v319, 0.7978846
        %v448 = vmul.f32 %v320, 0.7978846
        %v449 = vmul.f32 %v321, 0.7978846
        %v450 = vmul.f32 %v322, 0.7978846
        %v451 = vmul.f32 %v323, 0.7978846
        %v452 = vmul.f32 %v324, 0.7978846
        %v453 = vmul.f32 %v325, 0.7978846
        %v454 = vmul.f32 %v326, 0.7978846
        %v455 = vmul.f32 %v327, 0.7978846
        %v456 = vmul.f32 %v328, 0.7978846
        %v457 = vmul.f32 %v329, 0.7978846
        %v458 = vmul.f32 %v330, 0.7978846
        %v459 = vmul.f32 %v331, 0.7978846
        %v460 = vmul.f32 %v332, 0.7978846
        %v461 = vmul.f32 %v333, 0.7978846
        %v462 = vmul.f32 %v334, 0.7978846
        %v463 = vmul.f32 %v335, 0.7978846
        %v464 = vmul.f32 %v336, 0.7978846
        %v465 = vmul.f32 %v337, 0.7978846
        %v466 = vmul.f32 %v338, 0.7978846
        %v467 = vmul.f32 %v339, 0.7978846
        %v468 = vmul.f32 %v340, 0.7978846
        %v469 = vmul.f32 %v341, 0.7978846
        %v470 = vmul.f32 %v342, 0.7978846
        %v471 = vmul.f32 %v343, 0.7978846
        %v472 = vmul.f32 %v344, 0.7978846
        %v473 = vmul.f32 %v345, 0.7978846
        %v474 = vmul.f32 %v346, 0.7978846
        %v475 = vmul.f32 %v219, %v219
        %v476 = vmul.f32 %v220, %v220
        %v477 = vmul.f32 %v221, %v221
        %v478 = vmul.f32 %v222, %v222
        %v479 = vmul.f32 %v223, %v223
        %v480 = vmul.f32 %v224, %v224
        %v481 = vmul.f32 %v225, %v225
        %v482 = vmul.f32 %v226, %v226
        %v483 = vmul.f32 %v227, %v227
        %v484 = vmul.f32 %v228, %v228
        %v485 = vmul.f32 %v229, %v229
        %v486 = vmul.f32 %v230, %v230
        %v487 = vmul.f32 %v231, %v231
        %v488 = vmul.f32 %v232, %v232
        %v489 = vmul.f32 %v233, %v233
        %v490 = vmul.f32 %v234, %v234
        %v491 = vmul.f32 %v235, %v235
        %v492 = vmul.f32 %v236, %v236
        %v493 = vmul.f32 %v237, %v237
        %v494 = vmul.f32 %v238, %v238
        %v495 = vmul.f32 %v239, %v239
        %v496 = vmul.f32 %v240, %v240
        %v497 = vmul.f32 %v241, %v241
        %v498 = vmul.f32 %v242, %v242
        %v499 = vmul.f32 %v243, %v243
        %v500 = vmul.f32 %v244, %v244
        %v501 = vmul.f32 %v245, %v245
        %v502 = vmul.f32 %v246, %v246
        %v503 = vmul.f32 %v247, %v247
        %v504 = vmul.f32 %v248, %v248
        %v505 = vmul.f32 %v249, %v249
        %v506 = vmul.f32 %v250, %v250
        %v507 = vmul.f32 %v251, %v251
        %v508 = vmul.f32 %v252, %v252
        %v509 = vmul.f32 %v253, %v253
        %v510 = vmul.f32 %v254, %v254
        %v511 = vmul.f32 %v255, %v255
        %v512 = vmul.f32 %v256, %v256
        %v513 = vmul.f32 %v257, %v257
        %v514 = vmul.f32 %v258, %v258
        %v515 = vmul.f32 %v259, %v259
        %v516 = vmul.f32 %v260, %v260
        %v517 = vmul.f32 %v261, %v261
        %v518 = vmul.f32 %v262, %v262
        %v519 = vmul.f32 %v263, %v263
        %v520 = vmul.f32 %v264, %v264
        %v521 = vmul.f32 %v265, %v265
        %v522 = vmul.f32 %v266, %v266
        %v523 = vmul.f32 %v267, %v267
        %v524 = vmul.f32 %v268, %v268
        %v525 = vmul.f32 %v269, %v269
        %v526 = vmul.f32 %v270, %v270
        %v527 = vmul.f32 %v271, %v271
        %v528 = vmul.f32 %v272, %v272
        %v529 = vmul.f32 %v273, %v273
        %v530 = vmul.f32 %v274, %v274
        %v531 = vmul.f32 %v275, %v275
        %v532 = vmul.f32 %v276, %v276
        %v533 = vmul.f32 %v277, %v277
        %v534 = vmul.f32 %v278, %v278
        %v535 = vmul.f32 %v279, %v279
        %v536 = vmul.f32 %v280, %v280
        %v537 = vmul.f32 %v281, %v281
        %v538 = vmul.f32 %v282, %v282
        %v539 = vmul.f32 %v283, %v283
        %v540 = vmul.f32 %v284, %v284
        %v541 = vmul.f32 %v285, %v285
        %v542 = vmul.f32 %v286, %v286
        %v543 = vmul.f32 %v287, %v287
        %v544 = vmul.f32 %v288, %v288
        %v545 = vmul.f32 %v289, %v289
        %v546 = vmul.f32 %v290, %v290
        %v547 = vmul.f32 %v291, %v291
        %v548 = vmul.f32 %v292, %v292
        %v549 = vmul.f32 %v293, %v293
        %v550 = vmul.f32 %v294, %v294
        %v551 = vmul.f32 %v295, %v295
        %v552 = vmul.f32 %v296, %v296
        %v553 = vmul.f32 %v297, %v297
        %v554 = vmul.f32 %v298, %v298
        %v555 = vmul.f32 %v299, %v299
        %v556 = vmul.f32 %v300, %v300
        %v557 = vmul.f32 %v301, %v301
        %v558 = vmul.f32 %v302, %v302
        %v559 = vmul.f32 %v303, %v303
        %v560 = vmul.f32 %v304, %v304
        %v561 = vmul.f32 %v305, %v305
        %v562 = vmul.f32 %v306, %v306
        %v563 = vmul.f32 %v307, %v307
        %v564 = vmul.f32 %v308, %v308
        %v565 = vmul.f32 %v309, %v309
        %v566 = vmul.f32 %v310, %v310
        %v567 = vmul.f32 %v311, %v311
        %v568 = vmul.f32 %v312, %v312
        %v569 = vmul.f32 %v313, %v313
        %v570 = vmul.f32 %v314, %v314
        %v571 = vmul.f32 %v315, %v315
        %v572 = vmul.f32 %v316, %v316
        %v573 = vmul.f32 %v317, %v317
        %v574 = vmul.f32 %v318, %v318
        %v575 = vmul.f32 %v319, %v319
        %v576 = vmul.f32 %v320, %v320
        %v577 = vmul.f32 %v321, %v321
        %v578 = vmul.f32 %v322, %v322
        %v579 = vmul.f32 %v323, %v323
        %v580 = vmul.f32 %v324, %v324
        %v581 = vmul.f32 %v325, %v325
        %v582 = vmul.f32 %v326, %v326
        %v583 = vmul.f32 %v327, %v327
        %v584 = vmul.f32 %v328, %v328
        %v585 = vmul.f32 %v329, %v329
        %v586 = vmul.f32 %v330, %v330
        %v587 = vmul.f32 %v331, %v331
        %v588 = vmul.f32 %v332, %v332
        %v589 = vmul.f32 %v333, %v333
        %v590 = vmul.f32 %v334, %v334
        %v591 = vmul.f32 %v335, %v335
        %v592 = vmul.f32 %v336, %v336
        %v593 = vmul.f32 %v337, %v337
        %v594 = vmul.f32 %v338, %v338
        %v595 = vmul.f32 %v339, %v339
        %v596 = vmul.f32 %v340, %v340
        %v597 = vmul.f32 %v341, %v341
        %v598 = vmul.f32 %v342, %v342
        %v599 = vmul.f32 %v343, %v343
        %v600 = vmul.f32 %v344, %v344
        %v601 = vmul.f32 %v345, %v345
        %v602 = vmul.f32 %v346, %v346
        %v603 = vmul.f32 %v475, 0.044715
        %v604 = vmul.f32 %v476, 0.044715
        %v605 = vmul.f32 %v477, 0.044715
        %v606 = vmul.f32 %v478, 0.044715
        %v607 = vmul.f32 %v479, 0.044715
        %v608 = vmul.f32 %v480, 0.044715
        %v609 = vmul.f32 %v481, 0.044715
        %v610 = vmul.f32 %v482, 0.044715
        %v611 = vmul.f32 %v483, 0.044715
        %v612 = vmul.f32 %v484, 0.044715
        %v613 = vmul.f32 %v485, 0.044715
        %v614 = vmul.f32 %v486, 0.044715
        %v615 = vmul.f32 %v487, 0.044715
        %v616 = vmul.f32 %v488, 0.044715
        %v617 = vmul.f32 %v489, 0.044715
        %v618 = vmul.f32 %v490, 0.044715
        %v619 = vmul.f32 %v491, 0.044715
        %v620 = vmul.f32 %v492, 0.044715
        %v621 = vmul.f32 %v493, 0.044715
        %v622 = vmul.f32 %v494, 0.044715
        %v623 = vmul.f32 %v495, 0.044715
        %v624 = vmul.f32 %v496, 0.044715
        %v625 = vmul.f32 %v497, 0.044715
        %v626 = vmul.f32 %v498, 0.044715
        %v627 = vmul.f32 %v499, 0.044715
        %v628 = vmul.f32 %v500, 0.044715
        %v629 = vmul.f32 %v501, 0.044715
        %v630 = vmul.f32 %v502, 0.044715
        %v631 = vmul.f32 %v503, 0.044715
        %v632 = vmul.f32 %v504, 0.044715
        %v633 = vmul.f32 %v505, 0.044715
        %v634 = vmul.f32 %v506, 0.044715
        %v635 = vmul.f32 %v507, 0.044715
        %v636 = vmul.f32 %v508, 0.044715
        %v637 = vmul.f32 %v509, 0.044715
        %v638 = vmul.f32 %v510, 0.044715
        %v639 = vmul.f32 %v511, 0.044715
        %v640 = vmul.f32 %v512, 0.044715
        %v641 = vmul.f32 %v513, 0.044715
        %v642 = vmul.f32 %v514, 0.044715
        %v643 = vmul.f32 %v515, 0.044715
        %v644 = vmul.f32 %v516, 0.044715
        %v645 = vmul.f32 %v517, 0.044715
        %v646 = vmul.f32 %v518, 0.044715
        %v647 = vmul.f32 %v519, 0.044715
        %v648 = vmul.f32 %v520, 0.044715
        %v649 = vmul.f32 %v521, 0.044715
        %v650 = vmul.f32 %v522, 0.044715
        %v651 = vmul.f32 %v523, 0.044715
        %v652 = vmul.f32 %v524, 0.044715
        %v653 = vmul.f32 %v525, 0.044715
        %v654 = vmul.f32 %v526, 0.044715
        %v655 = vmul.f32 %v527, 0.044715
        %v656 = vmul.f32 %v528, 0.044715
        %v657 = vmul.f32 %v529, 0.044715
        %v658 = vmul.f32 %v530, 0.044715
        %v659 = vmul.f32 %v531, 0.044715
        %v660 = vmul.f32 %v532, 0.044715
        %v661 = vmul.f32 %v533, 0.044715
        %v662 = vmul.f32 %v534, 0.044715
        %v663 = vmul.f32 %v535, 0.044715
        %v664 = vmul.f32 %v536, 0.044715
        %v665 = vmul.f32 %v537, 0.044715
        %v666 = vmul.f32 %v538, 0.044715
        %v667 = vmul.f32 %v539, 0.044715
        %v668 = vmul.f32 %v540, 0.044715
        %v669 = vmul.f32 %v541, 0.044715
        %v670 = vmul.f32 %v542, 0.044715
        %v671 = vmul.f32 %v543, 0.044715
        %v672 = vmul.f32 %v544, 0.044715
        %v673 = vmul.f32 %v545, 0.044715
        %v674 = vmul.f32 %v546, 0.044715
        %v675 = vmul.f32 %v547, 0.044715
        %v676 = vmul.f32 %v548, 0.044715
        %v677 = vmul.f32 %v549, 0.044715
        %v678 = vmul.f32 %v550, 0.044715
        %v679 = vmul.f32 %v551, 0.044715
        %v680 = vmul.f32 %v552, 0.044715
        %v681 = vmul.f32 %v553, 0.044715
        %v682 = vmul.f32 %v554, 0.044715
        %v683 = vmul.f32 %v555, 0.044715
        %v684 = vmul.f32 %v556, 0.044715
        %v685 = vmul.f32 %v557, 0.044715
        %v686 = vmul.f32 %v558, 0.044715
        %v687 = vmul.f32 %v559, 0.044715
        %v688 = vmul.f32 %v560, 0.044715
        %v689 = vmul.f32 %v561, 0.044715
        %v690 = vmul.f32 %v562, 0.044715
        %v691 = vmul.f32 %v563, 0.044715
        %v692 = vmul.f32 %v564, 0.044715
        %v693 = vmul.f32 %v565, 0.044715
        %v694 = vmul.f32 %v566, 0.044715
        %v695 = vmul.f32 %v567, 0.044715
        %v696 = vmul.f32 %v568, 0.044715
        %v697 = vmul.f32 %v569, 0.044715
        %v698 = vmul.f32 %v570, 0.044715
        %v699 = vmul.f32 %v571, 0.044715
        %v700 = vmul.f32 %v572, 0.044715
        %v701 = vmul.f32 %v573, 0.044715
        %v702 = vmul.f32 %v574, 0.044715
        %v703 = vmul.f32 %v575, 0.044715
        %v704 = vmul.f32 %v576, 0.044715
        %v705 = vmul.f32 %v577, 0.044715
        %v706 = vmul.f32 %v578, 0.044715
        %v707 = vmul.f32 %v579, 0.044715
        %v708 = vmul.f32 %v580, 0.044715
        %v709 = vmul.f32 %v581, 0.044715
        %v710 = vmul.f32 %v582, 0.044715
        %v711 = vmul.f32 %v583, 0.044715
        %v712 = vmul.f32 %v584, 0.044715
        %v713 = vmul.f32 %v585, 0.044715
        %v714 = vmul.f32 %v586, 0.044715
        %v715 = vmul.f32 %v587, 0.044715
        %v716 = vmul.f32 %v588, 0.044715
        %v717 = vmul.f32 %v589, 0.044715
        %v718 = vmul.f32 %v590, 0.044715
        %v719 = vmul.f32 %v591, 0.044715
        %v720 = vmul.f32 %v592, 0.044715
        %v721 = vmul.f32 %v593, 0.044715
        %v722 = vmul.f32 %v594, 0.044715
        %v723 = vmul.f32 %v595, 0.044715
        %v724 = vmul.f32 %v596, 0.044715
        %v725 = vmul.f32 %v597, 0.044715
        %v726 = vmul.f32 %v598, 0.044715
        %v727 = vmul.f32 %v599, 0.044715
        %v728 = vmul.f32 %v600, 0.044715
        %v729 = vmul.f32 %v601, 0.044715
        %v730 = vmul.f32 %v602, 0.044715
        %v731 = vadd.f32 %v603, 1.0
        %v732 = vadd.f32 %v604, 1.0
        %v733 = vadd.f32 %v605, 1.0
        %v734 = vadd.f32 %v606, 1.0
        %v735 = vadd.f32 %v607, 1.0
        %v736 = vadd.f32 %v608, 1.0
        %v737 = vadd.f32 %v609, 1.0
        %v738 = vadd.f32 %v610, 1.0
        %v739 = vadd.f32 %v611, 1.0
        %v740 = vadd.f32 %v612, 1.0
        %v741 = vadd.f32 %v613, 1.0
        %v742 = vadd.f32 %v614, 1.0
        %v743 = vadd.f32 %v615, 1.0
        %v744 = vadd.f32 %v616, 1.0
        %v745 = vadd.f32 %v617, 1.0
        %v746 = vadd.f32 %v618, 1.0
        %v747 = vadd.f32 %v619, 1.0
        %v748 = vadd.f32 %v620, 1.0
        %v749 = vadd.f32 %v621, 1.0
        %v750 = vadd.f32 %v622, 1.0
        %v751 = vadd.f32 %v623, 1.0
        %v752 = vadd.f32 %v624, 1.0
        %v753 = vadd.f32 %v625, 1.0
        %v754 = vadd.f32 %v626, 1.0
        %v755 = vadd.f32 %v627, 1.0
        %v756 = vadd.f32 %v628, 1.0
        %v757 = vadd.f32 %v629, 1.0
        %v758 = vadd.f32 %v630, 1.0
        %v759 = vadd.f32 %v631, 1.0
        %v760 = vadd.f32 %v632, 1.0
        %v761 = vadd.f32 %v633, 1.0
        %v762 = vadd.f32 %v634, 1.0
        %v763 = vadd.f32 %v635, 1.0
        %v764 = vadd.f32 %v636, 1.0
        %v765 = vadd.f32 %v637, 1.0
        %v766 = vadd.f32 %v638, 1.0
        %v767 = vadd.f32 %v639, 1.0
        %v768 = vadd.f32 %v640, 1.0
        %v769 = vadd.f32 %v641, 1.0
        %v770 = vadd.f32 %v642, 1.0
        %v771 = vadd.f32 %v643, 1.0
        %v772 = vadd.f32 %v644, 1.0
        %v773 = vadd.f32 %v645, 1.0
        %v774 = vadd.f32 %v646, 1.0
        %v775 = vadd.f32 %v647, 1.0
        %v776 = vadd.f32 %v648, 1.0
        %v777 = vadd.f32 %v649, 1.0
        %v778 = vadd.f32 %v650, 1.0
        %v779 = vadd.f32 %v651, 1.0
        %v780 = vadd.f32 %v652, 1.0
        %v781 = vadd.f32 %v653, 1.0
        %v782 = vadd.f32 %v654, 1.0
        %v783 = vadd.f32 %v655, 1.0
        %v784 = vadd.f32 %v656, 1.0
        %v785 = vadd.f32 %v657, 1.0
        %v786 = vadd.f32 %v658, 1.0
        %v787 = vadd.f32 %v659, 1.0
        %v788 = vadd.f32 %v660, 1.0
        %v789 = vadd.f32 %v661, 1.0
        %v790 = vadd.f32 %v662, 1.0
        %v791 = vadd.f32 %v663, 1.0
        %v792 = vadd.f32 %v664, 1.0
        %v793 = vadd.f32 %v665, 1.0
        %v794 = vadd.f32 %v666, 1.0
        %v795 = vadd.f32 %v667, 1.0
        %v796 = vadd.f32 %v668, 1.0
        %v797 = vadd.f32 %v669, 1.0
        %v798 = vadd.f32 %v670, 1.0
        %v799 = vadd.f32 %v671, 1.0
        %v800 = vadd.f32 %v672, 1.0
        %v801 = vadd.f32 %v673, 1.0
        %v802 = vadd.f32 %v674, 1.0
        %v803 = vadd.f32 %v675, 1.0
        %v804 = vadd.f32 %v676, 1.0
        %v805 = vadd.f32 %v677, 1.0
        %v806 = vadd.f32 %v678, 1.0
        %v807 = vadd.f32 %v679, 1.0
        %v808 = vadd.f32 %v680, 1.0
        %v809 = vadd.f32 %v681, 1.0
        %v810 = vadd.f32 %v682, 1.0
        %v811 = vadd.f32 %v683, 1.0
        %v812 = vadd.f32 %v684, 1.0
        %v813 = vadd.f32 %v685, 1.0
        %v814 = vadd.f32 %v686, 1.0
        %v815 = vadd.f32 %v687, 1.0
        %v816 = vadd.f32 %v688, 1.0
        %v817 = vadd.f32 %v689, 1.0
        %v818 = vadd.f32 %v690, 1.0
        %v819 = vadd.f32 %v691, 1.0
        %v820 = vadd.f32 %v692, 1.0
        %v821 = vadd.f32 %v693, 1.0
        %v822 = vadd.f32 %v694, 1.0
        %v823 = vadd.f32 %v695, 1.0
        %v824 = vadd.f32 %v696, 1.0
        %v825 = vadd.f32 %v697, 1.0
        %v826 = vadd.f32 %v698, 1.0
        %v827 = vadd.f32 %v699, 1.0
        %v828 = vadd.f32 %v700, 1.0
        %v829 = vadd.f32 %v701, 1.0
        %v830 = vadd.f32 %v702, 1.0
        %v831 = vadd.f32 %v703, 1.0
        %v832 = vadd.f32 %v704, 1.0
        %v833 = vadd.f32 %v705, 1.0
        %v834 = vadd.f32 %v706, 1.0
        %v835 = vadd.f32 %v707, 1.0
        %v836 = vadd.f32 %v708, 1.0
        %v837 = vadd.f32 %v709, 1.0
        %v838 = vadd.f32 %v710, 1.0
        %v839 = vadd.f32 %v711, 1.0
        %v840 = vadd.f32 %v712, 1.0
        %v841 = vadd.f32 %v713, 1.0
        %v842 = vadd.f32 %v714, 1.0
        %v843 = vadd.f32 %v715, 1.0
        %v844 = vadd.f32 %v716, 1.0
        %v845 = vadd.f32 %v717, 1.0
        %v846 = vadd.f32 %v718, 1.0
        %v847 = vadd.f32 %v719, 1.0
        %v848 = vadd.f32 %v720, 1.0
        %v849 = vadd.f32 %v721, 1.0
        %v850 = vadd.f32 %v722, 1.0
        %v851 = vadd.f32 %v723, 1.0
        %v852 = vadd.f32 %v724, 1.0
        %v853 = vadd.f32 %v725, 1.0
        %v854 = vadd.f32 %v726, 1.0
        %v855 = vadd.f32 %v727, 1.0
        %v856 = vadd.f32 %v728, 1.0
        %v857 = vadd.f32 %v729, 1.0
        %v858 = vadd.f32 %v730, 1.0
        %v859 = vmul.f32 %v347, %v731
        %v860 = vmul.f32 %v348, %v732
        %v861 = vmul.f32 %v349, %v733
        %v862 = vmul.f32 %v350, %v734
        %v863 = vmul.f32 %v351, %v735
        %v864 = vmul.f32 %v352, %v736
        %v865 = vmul.f32 %v353, %v737
        %v866 = vmul.f32 %v354, %v738
        %v867 = vmul.f32 %v355, %v739
        %v868 = vmul.f32 %v356, %v740
        %v869 = vmul.f32 %v357, %v741
        %v870 = vmul.f32 %v358, %v742
        %v871 = vmul.f32 %v359, %v743
        %v872 = vmul.f32 %v360, %v744
        %v873 = vmul.f32 %v361, %v745
        %v874 = vmul.f32 %v362, %v746
        %v875 = vmul.f32 %v363, %v747
        %v876 = vmul.f32 %v364, %v748
        %v877 = vmul.f32 %v365, %v749
        %v878 = vmul.f32 %v366, %v750
        %v879 = vmul.f32 %v367, %v751
        %v880 = vmul.f32 %v368, %v752
        %v881 = vmul.f32 %v369, %v753
        %v882 = vmul.f32 %v370, %v754
        %v883 = vmul.f32 %v371, %v755
        %v884 = vmul.f32 %v372, %v756
        %v885 = vmul.f32 %v373, %v757
        %v886 = vmul.f32 %v374, %v758
        %v887 = vmul.f32 %v375, %v759
        %v888 = vmul.f32 %v376, %v760
        %v889 = vmul.f32 %v377, %v761
        %v890 = vmul.f32 %v378, %v762
        %v891 = vmul.f32 %v379, %v763
        %v892 = vmul.f32 %v380, %v764
        %v893 = vmul.f32 %v381, %v765
        %v894 = vmul.f32 %v382, %v766
        %v895 = vmul.f32 %v383, %v767
        %v896 = vmul.f32 %v384, %v768
        %v897 = vmul.f32 %v385, %v769
        %v898 = vmul.f32 %v386, %v770
        %v899 = vmul.f32 %v387, %v771
        %v900 = vmul.f32 %v388, %v772
        %v901 = vmul.f32 %v389, %v773
        %v902 = vmul.f32 %v390, %v774
        %v903 = vmul.f32 %v391, %v775
        %v904 = vmul.f32 %v392, %v776
        %v905 = vmul.f32 %v393, %v777
        %v906 = vmul.f32 %v394, %v778
        %v907 = vmul.f32 %v395, %v779
        %v908 = vmul.f32 %v396, %v780
        %v909 = vmul.f32 %v397, %v781
        %v910 = vmul.f32 %v398, %v782
        %v911 = vmul.f32 %v399, %v783
        %v912 = vmul.f32 %v400, %v784
        %v913 = vmul.f32 %v401, %v785
        %v914 = vmul.f32 %v402, %v786
        %v915 = vmul.f32 %v403, %v787
        %v916 = vmul.f32 %v404, %v788
        %v917 = vmul.f32 %v405, %v789
        %v918 = vmul.f32 %v406, %v790
        %v919 = vmul.f32 %v407, %v791
        %v920 = vmul.f32 %v408, %v792
        %v921 = vmul.f32 %v409, %v793
        %v922 = vmul.f32 %v410, %v794
        %v923 = vmul.f32 %v411, %v795
        %v924 = vmul.f32 %v412, %v796
        %v925 = vmul.f32 %v413, %v797
        %v926 = vmul.f32 %v414, %v798
        %v927 = vmul.f32 %v415, %v799
        %v928 = vmul.f32 %v416, %v800
        %v929 = vmul.f32 %v417, %v801
        %v930 = vmul.f32 %v418, %v802
        %v931 = vmul.f32 %v419, %v803
        %v932 = vmul.f32 %v420, %v804
        %v933 = vmul.f32 %v421, %v805
        %v934 = vmul.f32 %v422, %v806
        %v935 = vmul.f32 %v423, %v807
        %v936 = vmul.f32 %v424, %v808
        %v937 = vmul.f32 %v425, %v809
        %v938 = vmul.f32 %v426, %v810
        %v939 = vmul.f32 %v427, %v811
        %v940 = vmul.f32 %v428, %v812
        %v941 = vmul.f32 %v429, %v813
        %v942 = vmul.f32 %v430, %v814
        %v943 = vmul.f32 %v431, %v815
        %v944 = vmul.f32 %v432, %v816
        %v945 = vmul.f32 %v433, %v817
        %v946 = vmul.f32 %v434, %v818
        %v947 = vmul.f32 %v435, %v819
        %v948 = vmul.f32 %v436, %v820
        %v949 = vmul.f32 %v437, %v821
        %v950 = vmul.f32 %v438, %v822
        %v951 = vmul.f32 %v439, %v823
        %v952 = vmul.f32 %v440, %v824
        %v953 = vmul.f32 %v441, %v825
        %v954 = vmul.f32 %v442, %v826
        %v955 = vmul.f32 %v443, %v827
        %v956 = vmul.f32 %v444, %v828
        %v957 = vmul.f32 %v445, %v829
        %v958 = vmul.f32 %v446, %v830
        %v959 = vmul.f32 %v447, %v831
        %v960 = vmul.f32 %v448, %v832
        %v961 = vmul.f32 %v449, %v833
        %v962 = vmul.f32 %v450, %v834
        %v963 = vmul.f32 %v451, %v835
        %v964 = vmul.f32 %v452, %v836
        %v965 = vmul.f32 %v453, %v837
        %v966 = vmul.f32 %v454, %v838
        %v967 = vmul.f32 %v455, %v839
        %v968 = vmul.f32 %v456, %v840
        %v969 = vmul.f32 %v457, %v841
        %v970 = vmul.f32 %v458, %v842
        %v971 = vmul.f32 %v459, %v843
        %v972 = vmul.f32 %v460, %v844
        %v973 = vmul.f32 %v461, %v845
        %v974 = vmul.f32 %v462, %v846
        %v975 = vmul.f32 %v463, %v847
        %v976 = vmul.f32 %v464, %v848
        %v977 = vmul.f32 %v465, %v849
        %v978 = vmul.f32 %v466, %v850
        %v979 = vmul.f32 %v467, %v851
        %v980 = vmul.f32 %v468, %v852
        %v981 = vmul.f32 %v469, %v853
        %v982 = vmul.f32 %v470, %v854
        %v983 = vmul.f32 %v471, %v855
        %v984 = vmul.f32 %v472, %v856
        %v985 = vmul.f32 %v473, %v857
        %v986 = vmul.f32 %v474, %v858
        %v987 = vmul.f32 %v219, 0.5
        %v988 = vmul.f32 %v220, 0.5
        %v989 = vmul.f32 %v221, 0.5
        %v990 = vmul.f32 %v222, 0.5
        %v991 = vmul.f32 %v223, 0.5
        %v992 = vmul.f32 %v224, 0.5
        %v993 = vmul.f32 %v225, 0.5
        %v994 = vmul.f32 %v226, 0.5
        %v995 = vmul.f32 %v227, 0.5
        %v996 = vmul.f32 %v228, 0.5
        %v997 = vmul.f32 %v229, 0.5
        %v998 = vmul.f32 %v230, 0.5
        %v999 = vmul.f32 %v231, 0.5
        %v1000 = vmul.f32 %v232, 0.5
        %v1001 = vmul.f32 %v233, 0.5
        %v1002 = vmul.f32 %v234, 0.5
        %v1003 = vmul.f32 %v235, 0.5
        %v1004 = vmul.f32 %v236, 0.5
        %v1005 = vmul.f32 %v237, 0.5
        %v1006 = vmul.f32 %v238, 0.5
        %v1007 = vmul.f32 %v239, 0.5
        %v1008 = vmul.f32 %v240, 0.5
        %v1009 = vmul.f32 %v241, 0.5
        %v1010 = vmul.f32 %v242, 0.5
        %v1011 = vmul.f32 %v243, 0.5
        %v1012 = vmul.f32 %v244, 0.5
        %v1013 = vmul.f32 %v245, 0.5
        %v1014 = vmul.f32 %v246, 0.5
        %v1015 = vmul.f32 %v247, 0.5
        %v1016 = vmul.f32 %v248, 0.5
        %v1017 = vmul.f32 %v249, 0.5
        %v1018 = vmul.f32 %v250, 0.5
        %v1019 = vmul.f32 %v251, 0.5
        %v1020 = vmul.f32 %v252, 0.5
        %v1021 = vmul.f32 %v253, 0.5
        %v1022 = vmul.f32 %v254, 0.5
        %v1023 = vmul.f32 %v255, 0.5
        %v1024 = vmul.f32 %v256, 0.5
        %v1025 = vmul.f32 %v257, 0.5
        %v1026 = vmul.f32 %v258, 0.5
        %v1027 = vmul.f32 %v259, 0.5
        %v1028 = vmul.f32 %v260, 0.5
        %v1029 = vmul.f32 %v261, 0.5
        %v1030 = vmul.f32 %v262, 0.5
        %v1031 = vmul.f32 %v263, 0.5
        %v1032 = vmul.f32 %v264, 0.5
        %v1033 = vmul.f32 %v265, 0.5
        %v1034 = vmul.f32 %v266, 0.5
        %v1035 = vmul.f32 %v267, 0.5
        %v1036 = vmul.f32 %v268, 0.5
        %v1037 = vmul.f32 %v269, 0.5
        %v1038 = vmul.f32 %v270, 0.5
        %v1039 = vmul.f32 %v271, 0.5
        %v1040 = vmul.f32 %v272, 0.5
        %v1041 = vmul.f32 %v273, 0.5
        %v1042 = vmul.f32 %v274, 0.5
        %v1043 = vmul.f32 %v275, 0.5
        %v1044 = vmul.f32 %v276, 0.5
        %v1045 = vmul.f32 %v277, 0.5
        %v1046 = vmul.f32 %v278, 0.5
        %v1047 = vmul.f32 %v279, 0.5
        %v1048 = vmul.f32 %v280, 0.5
        %v1049 = vmul.f32 %v281, 0.5
        %v1050 = vmul.f32 %v282, 0.5
        %v1051 = vmul.f32 %v283, 0.5
        %v1052 = vmul.f32 %v284, 0.5
        %v1053 = vmul.f32 %v285, 0.5
        %v1054 = vmul.f32 %v286, 0.5
        %v1055 = vmul.f32 %v287, 0.5
        %v1056 = vmul.f32 %v288, 0.5
        %v1057 = vmul.f32 %v289, 0.5
        %v1058 = vmul.f32 %v290, 0.5
        %v1059 = vmul.f32 %v291, 0.5
        %v1060 = vmul.f32 %v292, 0.5
        %v1061 = vmul.f32 %v293, 0.5
        %v1062 = vmul.f32 %v294, 0.5
        %v1063 = vmul.f32 %v295, 0.5
        %v1064 = vmul.f32 %v296, 0.5
        %v1065 = vmul.f32 %v297, 0.5
        %v1066 = vmul.f32 %v298, 0.5
        %v1067 = vmul.f32 %v299, 0.5
        %v1068 = vmul.f32 %v300, 0.5
        %v1069 = vmul.f32 %v301, 0.5
        %v1070 = vmul.f32 %v302, 0.5
        %v1071 = vmul.f32 %v303, 0.5
        %v1072 = vmul.f32 %v304, 0.5
        %v1073 = vmul.f32 %v305, 0.5
        %v1074 = vmul.f32 %v306, 0.5
        %v1075 = vmul.f32 %v307, 0.5
        %v1076 = vmul.f32 %v308, 0.5
        %v1077 = vmul.f32 %v309, 0.5
        %v1078 = vmul.f32 %v310, 0.5
        %v1079 = vmul.f32 %v311, 0.5
        %v1080 = vmul.f32 %v312, 0.5
        %v1081 = vmul.f32 %v313, 0.5
        %v1082 = vmul.f32 %v314, 0.5
        %v1083 = vmul.f32 %v315, 0.5
        %v1084 = vmul.f32 %v316, 0.5
        %v1085 = vmul.f32 %v317, 0.5
        %v1086 = vmul.f32 %v318, 0.5
        %v1087 = vmul.f32 %v319, 0.5
        %v1088 = vmul.f32 %v320, 0.5
        %v1089 = vmul.f32 %v321, 0.5
        %v1090 = vmul.f32 %v322, 0.5
        %v1091 = vmul.f32 %v323, 0.5
        %v1092 = vmul.f32 %v324, 0.5
        %v1093 = vmul.f32 %v325, 0.5
        %v1094 = vmul.f32 %v326, 0.5
        %v1095 = vmul.f32 %v327, 0.5
        %v1096 = vmul.f32 %v328, 0.5
        %v1097 = vmul.f32 %v329, 0.5
        %v1098 = vmul.f32 %v330, 0.5
        %v1099 = vmul.f32 %v331, 0.5
        %v1100 = vmul.f32 %v332, 0.5
        %v1101 = vmul.f32 %v333, 0.5
        %v1102 = vmul.f32 %v334, 0.5
        %v1103 = vmul.f32 %v335, 0.5
        %v1104 = vmul.f32 %v336, 0.5
        %v1105 = vmul.f32 %v337, 0.5
        %v1106 = vmul.f32 %v338, 0.5
        %v1107 = vmul.f32 %v339, 0.5
        %v1108 = vmul.f32 %v340, 0.5
        %v1109 = vmul.f32 %v341, 0.5
        %v1110 = vmul.f32 %v342, 0.5
        %v1111 = vmul.f32 %v343, 0.5
        %v1112 = vmul.f32 %v344, 0.5
        %v1113 = vmul.f32 %v345, 0.5
        %v1114 = vmul.f32 %v346, 0.5
        %v1115 = vtanh.pop %v859
        %v1116 = vtanh.pop %v860
        %v1117 = vtanh.pop %v861
        %v1118 = vtanh.pop %v862
        %v1119 = vtanh.pop %v863
        %v1120 = vtanh.pop %v864
        %v1121 = vtanh.pop %v865
        %v1122 = vtanh.pop %v866
        %v1123 = vtanh.pop %v867
        %v1124 = vtanh.pop %v868
        %v1125 = vtanh.pop %v869
        %v1126 = vtanh.pop %v870
        %v1127 = vtanh.pop %v871
        %v1128 = vtanh.pop %v872
        %v1129 = vtanh.pop %v873
        %v1130 = vtanh.pop %v874
        %v1131 = vtanh.pop %v875
        %v1132 = vtanh.pop %v876
        %v1133 = vtanh.pop %v877
        %v1134 = vtanh.pop %v878
        %v1135 = vtanh.pop %v879
        %v1136 = vtanh.pop %v880
        %v1137 = vtanh.pop %v881
        %v1138 = vtanh.pop %v882
        %v1139 = vtanh.pop %v883
        %v1140 = vtanh.pop %v884
        %v1141 = vtanh.pop %v885
        %v1142 = vtanh.pop %v886
        %v1143 = vtanh.pop %v887
        %v1144 = vtanh.pop %v888
        %v1145 = vtanh.pop %v889
        %v1146 = vtanh.pop %v890
        %v1147 = vtanh.pop %v891
        %v1148 = vtanh.pop %v892
        %v1149 = vtanh.pop %v893
        %v1150 = vtanh.pop %v894
        %v1151 = vtanh.pop %v895
        %v1152 = vtanh.pop %v896
        %v1153 = vtanh.pop %v897
        %v1154 = vtanh.pop %v898
        %v1155 = vtanh.pop %v899
        %v1156 = vtanh.pop %v900
        %v1157 = vtanh.pop %v901
        %v1158 = vtanh.pop %v902
        %v1159 = vtanh.pop %v903
        %v1160 = vtanh.pop %v904
        %v1161 = vtanh.pop %v905
        %v1162 = vtanh.pop %v906
        %v1163 = vtanh.pop %v907
        %v1164 = vtanh.pop %v908
        %v1165 = vtanh.pop %v909
        %v1166 = vtanh.pop %v910
        %v1167 = vtanh.pop %v911
        %v1168 = vtanh.pop %v912
        %v1169 = vtanh.pop %v913
        %v1170 = vtanh.pop %v914
        %v1171 = vtanh.pop %v915
        %v1172 = vtanh.pop %v916
        %v1173 = vtanh.pop %v917
        %v1174 = vtanh.pop %v918
        %v1175 = vtanh.pop %v919
        %v1176 = vtanh.pop %v920
        %v1177 = vtanh.pop %v921
        %v1178 = vtanh.pop %v922
        %v1179 = vtanh.pop %v923
        %v1180 = vtanh.pop %v924
        %v1181 = vtanh.pop %v925
        %v1182 = vtanh.pop %v926
        %v1183 = vtanh.pop %v927
        %v1184 = vtanh.pop %v928
        %v1185 = vtanh.pop %v929
        %v1186 = vtanh.pop %v930
        %v1187 = vtanh.pop %v931
        %v1188 = vtanh.pop %v932
        %v1189 = vtanh.pop %v933
        %v1190 = vtanh.pop %v934
        %v1191 = vtanh.pop %v935
        %v1192 = vtanh.pop %v936
        %v1193 = vtanh.pop %v937
        %v1194 = vtanh.pop %v938
        %v1195 = vtanh.pop %v939
        %v1196 = vtanh.pop %v940
        %v1197 = vtanh.pop %v941
        %v1198 = vtanh.pop %v942
        %v1199 = vtanh.pop %v943
        %v1200 = vtanh.pop %v944
        %v1201 = vtanh.pop %v945
        %v1202 = vtanh.pop %v946
        %v1203 = vtanh.pop %v947
        %v1204 = vtanh.pop %v948
        %v1205 = vtanh.pop %v949
        %v1206 = vtanh.pop %v950
        %v1207 = vtanh.pop %v951
        %v1208 = vtanh.pop %v952
        %v1209 = vtanh.pop %v953
        %v1210 = vtanh.pop %v954
        %v1211 = vtanh.pop %v955
        %v1212 = vtanh.pop %v956
        %v1213 = vtanh.pop %v957
        %v1214 = vtanh.pop %v958
        %v1215 = vtanh.pop %v959
        %v1216 = vtanh.pop %v960
        %v1217 = vtanh.pop %v961
        %v1218 = vtanh.pop %v962
        %v1219 = vtanh.pop %v963
        %v1220 = vtanh.pop %v964
        %v1221 = vtanh.pop %v965
        %v1222 = vtanh.pop %v966
        %v1223 = vtanh.pop %v967
        %v1224 = vtanh.pop %v968
        %v1225 = vtanh.pop %v969
        %v1226 = vtanh.pop %v970
        %v1227 = vtanh.pop %v971
        %v1228 = vtanh.pop %v972
        %v1229 = vtanh.pop %v973
        %v1230 = vtanh.pop %v974
        %v1231 = vtanh.pop %v975
        %v1232 = vtanh.pop %v976
        %v1233 = vtanh.pop %v977
        %v1234 = vtanh.pop %v978
        %v1235 = vtanh.pop %v979
        %v1236 = vtanh.pop %v980
        %v1237 = vtanh.pop %v981
        %v1238 = vtanh.pop %v982
        %v1239 = vtanh.pop %v983
        %v1240 = vtanh.pop %v984
        %v1241 = vtanh.pop %v985
        %v1242 = vtanh.pop %v986
        %v1243 = vadd.f32 %v1115, 1.0
        %v1244 = vadd.f32 %v1116, 1.0
        %v1245 = vadd.f32 %v1117, 1.0
        %v1246 = vadd.f32 %v1118, 1.0
        %v1247 = vadd.f32 %v1119, 1.0
        %v1248 = vadd.f32 %v1120, 1.0
        %v1249 = vadd.f32 %v1121, 1.0
        %v1250 = vadd.f32 %v1122, 1.0
        %v1251 = vadd.f32 %v1123, 1.0
        %v1252 = vadd.f32 %v1124, 1.0
        %v1253 = vadd.f32 %v1125, 1.0
        %v1254 = vadd.f32 %v1126, 1.0
        %v1255 = vadd.f32 %v1127, 1.0
        %v1256 = vadd.f32 %v1128, 1.0
        %v1257 = vadd.f32 %v1129, 1.0
        %v1258 = vadd.f32 %v1130, 1.0
        %v1259 = vadd.f32 %v1131, 1.0
        %v1260 = vadd.f32 %v1132, 1.0
        %v1261 = vadd.f32 %v1133, 1.0
        %v1262 = vadd.f32 %v1134, 1.0
        %v1263 = vadd.f32 %v1135, 1.0
        %v1264 = vadd.f32 %v1136, 1.0
        %v1265 = vadd.f32 %v1137, 1.0
        %v1266 = vadd.f32 %v1138, 1.0
        %v1267 = vadd.f32 %v1139, 1.0
        %v1268 = vadd.f32 %v1140, 1.0
        %v1269 = vadd.f32 %v1141, 1.0
        %v1270 = vadd.f32 %v1142, 1.0
        %v1271 = vadd.f32 %v1143, 1.0
        %v1272 = vadd.f32 %v1144, 1.0
        %v1273 = vadd.f32 %v1145, 1.0
        %v1274 = vadd.f32 %v1146, 1.0
        %v1275 = vadd.f32 %v1147, 1.0
        %v1276 = vadd.f32 %v1148, 1.0
        %v1277 = vadd.f32 %v1149, 1.0
        %v1278 = vadd.f32 %v1150, 1.0
        %v1279 = vadd.f32 %v1151, 1.0
        %v1280 = vadd.f32 %v1152, 1.0
        %v1281 = vadd.f32 %v1153, 1.0
        %v1282 = vadd.f32 %v1154, 1.0
        %v1283 = vadd.f32 %v1155, 1.0
        %v1284 = vadd.f32 %v1156, 1.0
        %v1285 = vadd.f32 %v1157, 1.0
        %v1286 = vadd.f32 %v1158, 1.0
        %v1287 = vadd.f32 %v1159, 1.0
        %v1288 = vadd.f32 %v1160, 1.0
        %v1289 = vadd.f32 %v1161, 1.0
        %v1290 = vadd.f32 %v1162, 1.0
        %v1291 = vadd.f32 %v1163, 1.0
        %v1292 = vadd.f32 %v1164, 1.0
        %v1293 = vadd.f32 %v1165, 1.0
        %v1294 = vadd.f32 %v1166, 1.0
        %v1295 = vadd.f32 %v1167, 1.0
        %v1296 = vadd.f32 %v1168, 1.0
        %v1297 = vadd.f32 %v1169, 1.0
        %v1298 = vadd.f32 %v1170, 1.0
        %v1299 = vadd.f32 %v1171, 1.0
        %v1300 = vadd.f32 %v1172, 1.0
        %v1301 = vadd.f32 %v1173, 1.0
        %v1302 = vadd.f32 %v1174, 1.0
        %v1303 = vadd.f32 %v1175, 1.0
        %v1304 = vadd.f32 %v1176, 1.0
        %v1305 = vadd.f32 %v1177, 1.0
        %v1306 = vadd.f32 %v1178, 1.0
        %v1307 = vadd.f32 %v1179, 1.0
        %v1308 = vadd.f32 %v1180, 1.0
        %v1309 = vadd.f32 %v1181, 1.0
        %v1310 = vadd.f32 %v1182, 1.0
        %v1311 = vadd.f32 %v1183, 1.0
        %v1312 = vadd.f32 %v1184, 1.0
        %v1313 = vadd.f32 %v1185, 1.0
        %v1314 = vadd.f32 %v1186, 1.0
        %v1315 = vadd.f32 %v1187, 1.0
        %v1316 = vadd.f32 %v1188, 1.0
        %v1317 = vadd.f32 %v1189, 1.0
        %v1318 = vadd.f32 %v1190, 1.0
        %v1319 = vadd.f32 %v1191, 1.0
        %v1320 = vadd.f32 %v1192, 1.0
        %v1321 = vadd.f32 %v1193, 1.0
        %v1322 = vadd.f32 %v1194, 1.0
        %v1323 = vadd.f32 %v1195, 1.0
        %v1324 = vadd.f32 %v1196, 1.0
        %v1325 = vadd.f32 %v1197, 1.0
        %v1326 = vadd.f32 %v1198, 1.0
        %v1327 = vadd.f32 %v1199, 1.0
        %v1328 = vadd.f32 %v1200, 1.0
        %v1329 = vadd.f32 %v1201, 1.0
        %v1330 = vadd.f32 %v1202, 1.0
        %v1331 = vadd.f32 %v1203, 1.0
        %v1332 = vadd.f32 %v1204, 1.0
        %v1333 = vadd.f32 %v1205, 1.0
        %v1334 = vadd.f32 %v1206, 1.0
        %v1335 = vadd.f32 %v1207, 1.0
        %v1336 = vadd.f32 %v1208, 1.0
        %v1337 = vadd.f32 %v1209, 1.0
        %v1338 = vadd.f32 %v1210, 1.0
        %v1339 = vadd.f32 %v1211, 1.0
        %v1340 = vadd.f32 %v1212, 1.0
        %v1341 = vadd.f32 %v1213, 1.0
        %v1342 = vadd.f32 %v1214, 1.0
        %v1343 = vadd.f32 %v1215, 1.0
        %v1344 = vadd.f32 %v1216, 1.0
        %v1345 = vadd.f32 %v1217, 1.0
        %v1346 = vadd.f32 %v1218, 1.0
        %v1347 = vadd.f32 %v1219, 1.0
        %v1348 = vadd.f32 %v1220, 1.0
        %v1349 = vadd.f32 %v1221, 1.0
        %v1350 = vadd.f32 %v1222, 1.0
        %v1351 = vadd.f32 %v1223, 1.0
        %v1352 = vadd.f32 %v1224, 1.0
        %v1353 = vadd.f32 %v1225, 1.0
        %v1354 = vadd.f32 %v1226, 1.0
        %v1355 = vadd.f32 %v1227, 1.0
        %v1356 = vadd.f32 %v1228, 1.0
        %v1357 = vadd.f32 %v1229, 1.0
        %v1358 = vadd.f32 %v1230, 1.0
        %v1359 = vadd.f32 %v1231, 1.0
        %v1360 = vadd.f32 %v1232, 1.0
        %v1361 = vadd.f32 %v1233, 1.0
        %v1362 = vadd.f32 %v1234, 1.0
        %v1363 = vadd.f32 %v1235, 1.0
        %v1364 = vadd.f32 %v1236, 1.0
        %v1365 = vadd.f32 %v1237, 1.0
        %v1366 = vadd.f32 %v1238, 1.0
        %v1367 = vadd.f32 %v1239, 1.0
        %v1368 = vadd.f32 %v1240, 1.0
        %v1369 = vadd.f32 %v1241, 1.0
        %v1370 = vadd.f32 %v1242, 1.0
        %v1371 = vmul.f32 %v987, %v1243
        %v1372 = vmul.f32 %v988, %v1244
        %v1373 = vmul.f32 %v989, %v1245
        %v1374 = vmul.f32 %v990, %v1246
        %v1375 = vmul.f32 %v991, %v1247
        %v1376 = vmul.f32 %v992, %v1248
        %v1377 = vmul.f32 %v993, %v1249
        %v1378 = vmul.f32 %v994, %v1250
        %v1379 = vmul.f32 %v995, %v1251
        %v1380 = vmul.f32 %v996, %v1252
        %v1381 = vmul.f32 %v997, %v1253
        %v1382 = vmul.f32 %v998, %v1254
        %v1383 = vmul.f32 %v999, %v1255
        %v1384 = vmul.f32 %v1000, %v1256
        %v1385 = vmul.f32 %v1001, %v1257
        %v1386 = vmul.f32 %v1002, %v1258
        %v1387 = vmul.f32 %v1003, %v1259
        %v1388 = vmul.f32 %v1004, %v1260
        %v1389 = vmul.f32 %v1005, %v1261
        %v1390 = vmul.f32 %v1006, %v1262
        %v1391 = vmul.f32 %v1007, %v1263
        %v1392 = vmul.f32 %v1008, %v1264
        %v1393 = vmul.f32 %v1009, %v1265
        %v1394 = vmul.f32 %v1010, %v1266
        %v1395 = vmul.f32 %v1011, %v1267
        %v1396 = vmul.f32 %v1012, %v1268
        %v1397 = vmul.f32 %v1013, %v1269
        %v1398 = vmul.f32 %v1014, %v1270
        %v1399 = vmul.f32 %v1015, %v1271
        %v1400 = vmul.f32 %v1016, %v1272
        %v1401 = vmul.f32 %v1017, %v1273
        %v1402 = vmul.f32 %v1018, %v1274
        %v1403 = vmul.f32 %v1019, %v1275
        %v1404 = vmul.f32 %v1020, %v1276
        %v1405 = vmul.f32 %v1021, %v1277
        %v1406 = vmul.f32 %v1022, %v1278
        %v1407 = vmul.f32 %v1023, %v1279
        %v1408 = vmul.f32 %v1024, %v1280
        %v1409 = vmul.f32 %v1025, %v1281
        %v1410 = vmul.f32 %v1026, %v1282
        %v1411 = vmul.f32 %v1027, %v1283
        %v1412 = vmul.f32 %v1028, %v1284
        %v1413 = vmul.f32 %v1029, %v1285
        %v1414 = vmul.f32 %v1030, %v1286
        %v1415 = vmul.f32 %v1031, %v1287
        %v1416 = vmul.f32 %v1032, %v1288
        %v1417 = vmul.f32 %v1033, %v1289
        %v1418 = vmul.f32 %v1034, %v1290
        %v1419 = vmul.f32 %v1035, %v1291
        %v1420 = vmul.f32 %v1036, %v1292
        %v1421 = vmul.f32 %v1037, %v1293
        %v1422 = vmul.f32 %v1038, %v1294
        %v1423 = vmul.f32 %v1039, %v1295
        %v1424 = vmul.f32 %v1040, %v1296
        %v1425 = vmul.f32 %v1041, %v1297
        %v1426 = vmul.f32 %v1042, %v1298
        %v1427 = vmul.f32 %v1043, %v1299
        %v1428 = vmul.f32 %v1044, %v1300
        %v1429 = vmul.f32 %v1045, %v1301
        %v1430 = vmul.f32 %v1046, %v1302
        %v1431 = vmul.f32 %v1047, %v1303
        %v1432 = vmul.f32 %v1048, %v1304
        %v1433 = vmul.f32 %v1049, %v1305
        %v1434 = vmul.f32 %v1050, %v1306
        %v1435 = vmul.f32 %v1051, %v1307
        %v1436 = vmul.f32 %v1052, %v1308
        %v1437 = vmul.f32 %v1053, %v1309
        %v1438 = vmul.f32 %v1054, %v1310
        %v1439 = vmul.f32 %v1055, %v1311
        %v1440 = vmul.f32 %v1056, %v1312
        %v1441 = vmul.f32 %v1057, %v1313
        %v1442 = vmul.f32 %v1058, %v1314
        %v1443 = vmul.f32 %v1059, %v1315
        %v1444 = vmul.f32 %v1060, %v1316
        %v1445 = vmul.f32 %v1061, %v1317
        %v1446 = vmul.f32 %v1062, %v1318
        %v1447 = vmul.f32 %v1063, %v1319
        %v1448 = vmul.f32 %v1064, %v1320
        %v1449 = vmul.f32 %v1065, %v1321
        %v1450 = vmul.f32 %v1066, %v1322
        %v1451 = vmul.f32 %v1067, %v1323
        %v1452 = vmul.f32 %v1068, %v1324
        %v1453 = vmul.f32 %v1069, %v1325
        %v1454 = vmul.f32 %v1070, %v1326
        %v1455 = vmul.f32 %v1071, %v1327
        %v1456 = vmul.f32 %v1072, %v1328
        %v1457 = vmul.f32 %v1073, %v1329
        %v1458 = vmul.f32 %v1074, %v1330
        %v1459 = vmul.f32 %v1075, %v1331
        %v1460 = vmul.f32 %v1076, %v1332
        %v1461 = vmul.f32 %v1077, %v1333
        %v1462 = vmul.f32 %v1078, %v1334
        %v1463 = vmul.f32 %v1079, %v1335
        %v1464 = vmul.f32 %v1080, %v1336
        %v1465 = vmul.f32 %v1081, %v1337
        %v1466 = vmul.f32 %v1082, %v1338
        %v1467 = vmul.f32 %v1083, %v1339
        %v1468 = vmul.f32 %v1084, %v1340
        %v1469 = vmul.f32 %v1085, %v1341
        %v1470 = vmul.f32 %v1086, %v1342
        %v1471 = vmul.f32 %v1087, %v1343
        %v1472 = vmul.f32 %v1088, %v1344
        %v1473 = vmul.f32 %v1089, %v1345
        %v1474 = vmul.f32 %v1090, %v1346
        %v1475 = vmul.f32 %v1091, %v1347
        %v1476 = vmul.f32 %v1092, %v1348
        %v1477 = vmul.f32 %v1093, %v1349
        %v1478 = vmul.f32 %v1094, %v1350
        %v1479 = vmul.f32 %v1095, %v1351
        %v1480 = vmul.f32 %v1096, %v1352
        %v1481 = vmul.f32 %v1097, %v1353
        %v1482 = vmul.f32 %v1098, %v1354
        %v1483 = vmul.f32 %v1099, %v1355
        %v1484 = vmul.f32 %v1100, %v1356
        %v1485 = vmul.f32 %v1101, %v1357
        %v1486 = vmul.f32 %v1102, %v1358
        %v1487 = vmul.f32 %v1103, %v1359
        %v1488 = vmul.f32 %v1104, %v1360
        %v1489 = vmul.f32 %v1105, %v1361
        %v1490 = vmul.f32 %v1106, %v1362
        %v1491 = vmul.f32 %v1107, %v1363
        %v1492 = vmul.f32 %v1108, %v1364
        %v1493 = vmul.f32 %v1109, %v1365
        %v1494 = vmul.f32 %v1110, %v1366
        %v1495 = vmul.f32 %v1111, %v1367
        %v1496 = vmul.f32 %v1112, %v1368
        %v1497 = vmul.f32 %v1113, %v1369
        %v1498 = vmul.f32 %v1114, %v1370
        %v1499 = vpack.c.bf16 %v1379, %v1371
        %v1500 = vpack.c.bf16 %v1380, %v1372
        %v1501 = vpack.c.bf16 %v1381, %v1373
        %v1502 = vpack.c.bf16 %v1382, %v1374
        %v1503 = vpack.c.bf16 %v1383, %v1375
        %v1504 = vpack.c.bf16 %v1384, %v1376
        %v1505 = vpack.c.bf16 %v1385, %v1377
        %v1506 = vpack.c.bf16 %v1386, %v1378
        %v1507 = vpack.c.bf16 %v1395, %v1387
        %v1508 = vpack.c.bf16 %v1396, %v1388
        %v1509 = vpack.c.bf16 %v1397, %v1389
        %v1510 = vpack.c.bf16 %v1398, %v1390
        %v1511 = vpack.c.bf16 %v1399, %v1391
        %v1512 = vpack.c.bf16 %v1400, %v1392
        %v1513 = vpack.c.bf16 %v1401, %v1393
        %v1514 = vpack.c.bf16 %v1402, %v1394
        %v1515 = vpack.c.bf16 %v1411, %v1403
        %v1516 = vpack.c.bf16 %v1412, %v1404
        %v1517 = vpack.c.bf16 %v1413, %v1405
        %v1518 = vpack.c.bf16 %v1414, %v1406
        %v1519 = vpack.c.bf16 %v1415, %v1407
        %v1520 = vpack.c.bf16 %v1416, %v1408
        %v1521 = vpack.c.bf16 %v1417, %v1409
        %v1522 = vpack.c.bf16 %v1418, %v1410
        %v1523 = vpack.c.bf16 %v1427, %v1419
        %v1524 = vpack.c.bf16 %v1428, %v1420
        %v1525 = vpack.c.bf16 %v1429, %v1421
        %v1526 = vpack.c.bf16 %v1430, %v1422
        %v1527 = vpack.c.bf16 %v1431, %v1423
        %v1528 = vpack.c.bf16 %v1432, %v1424
        %v1529 = vpack.c.bf16 %v1433, %v1425
        %v1530 = vpack.c.bf16 %v1434, %v1426
        %v1531 = vpack.c.bf16 %v1443, %v1435
        %v1532 = vpack.c.bf16 %v1444, %v1436
        %v1533 = vpack.c.bf16 %v1445, %v1437
        %v1534 = vpack.c.bf16 %v1446, %v1438
        %v1535 = vpack.c.bf16 %v1447, %v1439
        %v1536 = vpack.c.bf16 %v1448, %v1440
        %v1537 = vpack.c.bf16 %v1449, %v1441
        %v1538 = vpack.c.bf16 %v1450, %v1442
        %v1539 = vpack.c.bf16 %v1459, %v1451
        %v1540 = vpack.c.bf16 %v1460, %v1452
        %v1541 = vpack.c.bf16 %v1461, %v1453
        %v1542 = vpack.c.bf16 %v1462, %v1454
        %v1543 = vpack.c.bf16 %v1463, %v1455
        %v1544 = vpack.c.bf16 %v1464, %v1456
        %v1545 = vpack.c.bf16 %v1465, %v1457
        %v1546 = vpack.c.bf16 %v1466, %v1458
        %v1547 = vpack.c.bf16 %v1475, %v1467
        %v1548 = vpack.c.bf16 %v1476, %v1468
        %v1549 = vpack.c.bf16 %v1477, %v1469
        %v1550 = vpack.c.bf16 %v1478, %v1470
        %v1551 = vpack.c.bf16 %v1479, %v1471
        %v1552 = vpack.c.bf16 %v1480, %v1472
        %v1553 = vpack.c.bf16 %v1481, %v1473
        %v1554 = vpack.c.bf16 %v1482, %v1474
        %v1555 = vpack.c.bf16 %v1491, %v1483
        %v1556 = vpack.c.bf16 %v1492, %v1484
        %v1557 = vpack.c.bf16 %v1493, %v1485
        %v1558 = vpack.c.bf16 %v1494, %v1486
        %v1559 = vpack.c.bf16 %v1495, %v1487
        %v1560 = vpack.c.bf16 %v1496, %v1488
        %v1561 = vpack.c.bf16 %v1497, %v1489
        %v1562 = vpack.c.bf16 %v1498, %v1490
        %v1563 = vld [vmem:[#allocation5] sm:$0xff]
        %v1564 = vld [vmem:[#allocation5 + $0x8] sm:$0xff]
        %v1565 = vld [vmem:[#allocation5 + $0x10] sm:$0xff]
        %v1566 = vld [vmem:[#allocation5 + $0x18] sm:$0xff]
        %v1567 = vld [vmem:[#allocation5 + $0x20] sm:$0xff]
        %v1568 = vld [vmem:[#allocation5 + $0x28] sm:$0xff]
        %v1569 = vld [vmem:[#allocation5 + $0x30] sm:$0xff]
        %v1570 = vld [vmem:[#allocation5 + $0x38] sm:$0xff]
        %v1571 = vld [vmem:[#allocation5 + $0x40] sm:$0xff]
        %v1572 = vld [vmem:[#allocation5 + $0x48] sm:$0xff]
        %v1573 = vld [vmem:[#allocation5 + $0x50] sm:$0xff]
        %v1574 = vld [vmem:[#allocation5 + $0x58] sm:$0xff]
        %v1575 = vld [vmem:[#allocation5 + $0x60] sm:$0xff]
        %v1576 = vld [vmem:[#allocation5 + $0x68] sm:$0xff]
        %v1577 = vld [vmem:[#allocation5 + $0x70] sm:$0xff]
        %v1578 = vld [vmem:[#allocation5 + $0x78] sm:$0xff]
        %v1579 = vld [vmem:[#allocation5 + $0x80] sm:$0xff]
        %v1580 = vld [vmem:[#allocation5 + $0x88] sm:$0xff]
        %v1581 = vld [vmem:[#allocation5 + $0x90] sm:$0xff]
        %v1582 = vld [vmem:[#allocation5 + $0x98] sm:$0xff]
        %v1583 = vld [vmem:[#allocation5 + $0xa0] sm:$0xff]
        %v1584 = vld [vmem:[#allocation5 + $0xa8] sm:$0xff]
        %v1585 = vld [vmem:[#allocation5 + $0xb0] sm:$0xff]
        %v1586 = vld [vmem:[#allocation5 + $0xb8] sm:$0xff]
        %v1587 = vld [vmem:[#allocation5 + $0xc0] sm:$0xff]
        %v1588 = vld [vmem:[#allocation5 + $0xc8] sm:$0xff]
        %v1589 = vld [vmem:[#allocation5 + $0xd0] sm:$0xff]
        %v1590 = vld [vmem:[#allocation5 + $0xd8] sm:$0xff]
        %v1591 = vld [vmem:[#allocation5 + $0xe0] sm:$0xff]
        %v1592 = vld [vmem:[#allocation5 + $0xe8] sm:$0xff]
        %v1593 = vld [vmem:[#allocation5 + $0xf0] sm:$0xff]
        %v1594 = vld [vmem:[#allocation5 + $0xf8] sm:$0xff]
        %v1595 = vld [vmem:[#allocation5 + $0x100] sm:$0xff]
        %v1596 = vld [vmem:[#allocation5 + $0x108] sm:$0xff]
        %v1597 = vld [vmem:[#allocation5 + $0x110] sm:$0xff]
        %v1598 = vld [vmem:[#allocation5 + $0x118] sm:$0xff]
        %v1599 = vld [vmem:[#allocation5 + $0x120] sm:$0xff]
        %v1600 = vld [vmem:[#allocation5 + $0x128] sm:$0xff]
        %v1601 = vld [vmem:[#allocation5 + $0x130] sm:$0xff]
        %v1602 = vld [vmem:[#allocation5 + $0x138] sm:$0xff]
        %v1603 = vld [vmem:[#allocation5 + $0x140] sm:$0xff]
        %v1604 = vld [vmem:[#allocation5 + $0x148] sm:$0xff]
        %v1605 = vld [vmem:[#allocation5 + $0x150] sm:$0xff]
        %v1606 = vld [vmem:[#allocation5 + $0x158] sm:$0xff]
        %v1607 = vld [vmem:[#allocation5 + $0x160] sm:$0xff]
        %v1608 = vld [vmem:[#allocation5 + $0x168] sm:$0xff]
        %v1609 = vld [vmem:[#allocation5 + $0x170] sm:$0xff]
        %v1610 = vld [vmem:[#allocation5 + $0x178] sm:$0xff]
        %v1611 = vld [vmem:[#allocation5 + $0x180] sm:$0xff]
        %v1612 = vld [vmem:[#allocation5 + $0x188] sm:$0xff]
        %v1613 = vld [vmem:[#allocation5 + $0x190] sm:$0xff]
        %v1614 = vld [vmem:[#allocation5 + $0x198] sm:$0xff]
        %v1615 = vld [vmem:[#allocation5 + $0x1a0] sm:$0xff]
        %v1616 = vld [vmem:[#allocation5 + $0x1a8] sm:$0xff]
        %v1617 = vld [vmem:[#allocation5 + $0x1b0] sm:$0xff]
        %v1618 = vld [vmem:[#allocation5 + $0x1b8] sm:$0xff]
        %v1619 = vld [vmem:[#allocation5 + $0x1c0] sm:$0xff]
        %v1620 = vld [vmem:[#allocation5 + $0x1c8] sm:$0xff]
        %v1621 = vld [vmem:[#allocation5 + $0x1d0] sm:$0xff]
        %v1622 = vld [vmem:[#allocation5 + $0x1d8] sm:$0xff]
        %v1623 = vld [vmem:[#allocation5 + $0x1e0] sm:$0xff]
        %v1624 = vld [vmem:[#allocation5 + $0x1e8] sm:$0xff]
        %v1625 = vld [vmem:[#allocation5 + $0x1f0] sm:$0xff]
        %v1626 = vld [vmem:[#allocation5 + $0x1f8] sm:$0xff]
        %v1627 = vld [vmem:[#allocation5 + $0x200] sm:$0xff]
        %v1628 = vld [vmem:[#allocation5 + $0x208] sm:$0xff]
        %v1629 = vld [vmem:[#allocation5 + $0x210] sm:$0xff]
        %v1630 = vld [vmem:[#allocation5 + $0x218] sm:$0xff]
        %v1631 = vld [vmem:[#allocation5 + $0x220] sm:$0xff]
        %v1632 = vld [vmem:[#allocation5 + $0x228] sm:$0xff]
        %v1633 = vld [vmem:[#allocation5 + $0x230] sm:$0xff]
        %v1634 = vld [vmem:[#allocation5 + $0x238] sm:$0xff]
        %v1635 = vld [vmem:[#allocation5 + $0x240] sm:$0xff]
        %v1636 = vld [vmem:[#allocation5 + $0x248] sm:$0xff]
        %v1637 = vld [vmem:[#allocation5 + $0x250] sm:$0xff]
        %v1638 = vld [vmem:[#allocation5 + $0x258] sm:$0xff]
        %v1639 = vld [vmem:[#allocation5 + $0x260] sm:$0xff]
        %v1640 = vld [vmem:[#allocation5 + $0x268] sm:$0xff]
        %v1641 = vld [vmem:[#allocation5 + $0x270] sm:$0xff]
        %v1642 = vld [vmem:[#allocation5 + $0x278] sm:$0xff]
        %v1643 = vld [vmem:[#allocation5 + $0x280] sm:$0xff]
        %v1644 = vld [vmem:[#allocation5 + $0x288] sm:$0xff]
        %v1645 = vld [vmem:[#allocation5 + $0x290] sm:$0xff]
        %v1646 = vld [vmem:[#allocation5 + $0x298] sm:$0xff]
        %v1647 = vld [vmem:[#allocation5 + $0x2a0] sm:$0xff]
        %v1648 = vld [vmem:[#allocation5 + $0x2a8] sm:$0xff]
        %v1649 = vld [vmem:[#allocation5 + $0x2b0] sm:$0xff]
        %v1650 = vld [vmem:[#allocation5 + $0x2b8] sm:$0xff]
        %v1651 = vld [vmem:[#allocation5 + $0x2c0] sm:$0xff]
        %v1652 = vld [vmem:[#allocation5 + $0x2c8] sm:$0xff]
        %v1653 = vld [vmem:[#allocation5 + $0x2d0] sm:$0xff]
        %v1654 = vld [vmem:[#allocation5 + $0x2d8] sm:$0xff]
        %v1655 = vld [vmem:[#allocation5 + $0x2e0] sm:$0xff]
        %v1656 = vld [vmem:[#allocation5 + $0x2e8] sm:$0xff]
        %v1657 = vld [vmem:[#allocation5 + $0x2f0] sm:$0xff]
        %v1658 = vld [vmem:[#allocation5 + $0x2f8] sm:$0xff]
        %v1659 = vld [vmem:[#allocation5 + $0x300] sm:$0xff]
        %v1660 = vld [vmem:[#allocation5 + $0x308] sm:$0xff]
        %v1661 = vld [vmem:[#allocation5 + $0x310] sm:$0xff]
        %v1662 = vld [vmem:[#allocation5 + $0x318] sm:$0xff]
        %v1663 = vld [vmem:[#allocation5 + $0x320] sm:$0xff]
        %v1664 = vld [vmem:[#allocation5 + $0x328] sm:$0xff]
        %v1665 = vld [vmem:[#allocation5 + $0x330] sm:$0xff]
        %v1666 = vld [vmem:[#allocation5 + $0x338] sm:$0xff]
        %v1667 = vld [vmem:[#allocation5 + $0x340] sm:$0xff]
        %v1668 = vld [vmem:[#allocation5 + $0x348] sm:$0xff]
        %v1669 = vld [vmem:[#allocation5 + $0x350] sm:$0xff]
        %v1670 = vld [vmem:[#allocation5 + $0x358] sm:$0xff]
        %v1671 = vld [vmem:[#allocation5 + $0x360] sm:$0xff]
        %v1672 = vld [vmem:[#allocation5 + $0x368] sm:$0xff]
        %v1673 = vld [vmem:[#allocation5 + $0x370] sm:$0xff]
        %v1674 = vld [vmem:[#allocation5 + $0x378] sm:$0xff]
        %v1675 = vld [vmem:[#allocation5 + $0x380] sm:$0xff]
        %v1676 = vld [vmem:[#allocation5 + $0x388] sm:$0xff]
        %v1677 = vld [vmem:[#allocation5 + $0x390] sm:$0xff]
        %v1678 = vld [vmem:[#allocation5 + $0x398] sm:$0xff]
        %v1679 = vld [vmem:[#allocation5 + $0x3a0] sm:$0xff]
        %v1680 = vld [vmem:[#allocation5 + $0x3a8] sm:$0xff]
        %v1681 = vld [vmem:[#allocation5 + $0x3b0] sm:$0xff]
        %v1682 = vld [vmem:[#allocation5 + $0x3b8] sm:$0xff]
        %v1683 = vld [vmem:[#allocation5 + $0x3c0] sm:$0xff]
        %v1684 = vld [vmem:[#allocation5 + $0x3c8] sm:$0xff]
        %v1685 = vld [vmem:[#allocation5 + $0x3d0] sm:$0xff]
        %v1686 = vld [vmem:[#allocation5 + $0x3d8] sm:$0xff]
        %v1687 = vld [vmem:[#allocation5 + $0x3e0] sm:$0xff]
        %v1688 = vld [vmem:[#allocation5 + $0x3e8] sm:$0xff]
        %v1689 = vld [vmem:[#allocation5 + $0x3f0] sm:$0xff]
        %v1690 = vld [vmem:[#allocation5 + $0x3f8] sm:$0xff]
        %v1691 = vld [vmem:[#allocation7] sm:$0x3]
        %v1693 = vlaneseq
        %v1694 = vshrl.u32 %v1693, 7
        %v1695 = vsub.s32 0, %v1694
        %v1696 = vrot.slane %v1691, %v1695
        %v1697 = vlaneseq
        %v1698 = vshrl.u32 %v1697, 7
        %v1699 = vsub.s32 1, %v1698
        %v1700 = vrot.slane %v1691, %v1699
        %v1831 = vunpack.c.l.b16 %v1563
        %v1832 = vunpack.c.h.b16 %v1563
        %v1833 = vunpack.c.l.b16 %v1564
        %v1834 = vunpack.c.h.b16 %v1564
        %v1835 = vunpack.c.l.b16 %v1565
        %v1836 = vunpack.c.h.b16 %v1565
        %v1837 = vunpack.c.l.b16 %v1566
        %v1838 = vunpack.c.h.b16 %v1566
        %v1839 = vunpack.c.l.b16 %v1567
        %v1840 = vunpack.c.h.b16 %v1567
        %v1841 = vunpack.c.l.b16 %v1568
        %v1842 = vunpack.c.h.b16 %v1568
        %v1843 = vunpack.c.l.b16 %v1569
        %v1844 = vunpack.c.h.b16 %v1569
        %v1845 = vunpack.c.l.b16 %v1570
        %v1846 = vunpack.c.h.b16 %v1570
        %v1847 = vunpack.c.l.b16 %v1571
        %v1848 = vunpack.c.h.b16 %v1571
        %v1849 = vunpack.c.l.b16 %v1572
        %v1850 = vunpack.c.h.b16 %v1572
        %v1851 = vunpack.c.l.b16 %v1573
        %v1852 = vunpack.c.h.b16 %v1573
        %v1853 = vunpack.c.l.b16 %v1574
        %v1854 = vunpack.c.h.b16 %v1574
        %v1855 = vunpack.c.l.b16 %v1575
        %v1856 = vunpack.c.h.b16 %v1575
        %v1857 = vunpack.c.l.b16 %v1576
        %v1858 = vunpack.c.h.b16 %v1576
        %v1859 = vunpack.c.l.b16 %v1577
        %v1860 = vunpack.c.h.b16 %v1577
        %v1861 = vunpack.c.l.b16 %v1578
        %v1862 = vunpack.c.h.b16 %v1578
        %v1863 = vunpack.c.l.b16 %v1579
        %v1864 = vunpack.c.h.b16 %v1579
        %v1865 = vunpack.c.l.b16 %v1580
        %v1866 = vunpack.c.h.b16 %v1580
        %v1867 = vunpack.c.l.b16 %v1581
        %v1868 = vunpack.c.h.b16 %v1581
        %v1869 = vunpack.c.l.b16 %v1582
        %v1870 = vunpack.c.h.b16 %v1582
        %v1871 = vunpack.c.l.b16 %v1583
        %v1872 = vunpack.c.h.b16 %v1583
        %v1873 = vunpack.c.l.b16 %v1584
        %v1874 = vunpack.c.h.b16 %v1584
        %v1875 = vunpack.c.l.b16 %v1585
        %v1876 = vunpack.c.h.b16 %v1585
        %v1877 = vunpack.c.l.b16 %v1586
        %v1878 = vunpack.c.h.b16 %v1586
        %v1879 = vunpack.c.l.b16 %v1587
        %v1880 = vunpack.c.h.b16 %v1587
        %v1881 = vunpack.c.l.b16 %v1588
        %v1882 = vunpack.c.h.b16 %v1588
        %v1883 = vunpack.c.l.b16 %v1589
        %v1884 = vunpack.c.h.b16 %v1589
        %v1885 = vunpack.c.l.b16 %v1590
        %v1886 = vunpack.c.h.b16 %v1590
        %v1887 = vunpack.c.l.b16 %v1591
        %v1888 = vunpack.c.h.b16 %v1591
        %v1889 = vunpack.c.l.b16 %v1592
        %v1890 = vunpack.c.h.b16 %v1592
        %v1891 = vunpack.c.l.b16 %v1593
        %v1892 = vunpack.c.h.b16 %v1593
        %v1893 = vunpack.c.l.b16 %v1594
        %v1894 = vunpack.c.h.b16 %v1594
        %v1895 = vunpack.c.l.b16 %v1595
        %v1896 = vunpack.c.h.b16 %v1595
        %v1897 = vunpack.c.l.b16 %v1596
        %v1898 = vunpack.c.h.b16 %v1596
        %v1899 = vunpack.c.l.b16 %v1597
        %v1900 = vunpack.c.h.b16 %v1597
        %v1901 = vunpack.c.l.b16 %v1598
        %v1902 = vunpack.c.h.b16 %v1598
        %v1903 = vunpack.c.l.b16 %v1599
        %v1904 = vunpack.c.h.b16 %v1599
        %v1905 = vunpack.c.l.b16 %v1600
        %v1906 = vunpack.c.h.b16 %v1600
        %v1907 = vunpack.c.l.b16 %v1601
        %v1908 = vunpack.c.h.b16 %v1601
        %v1909 = vunpack.c.l.b16 %v1602
        %v1910 = vunpack.c.h.b16 %v1602
        %v1911 = vunpack.c.l.b16 %v1603
        %v1912 = vunpack.c.h.b16 %v1603
        %v1913 = vunpack.c.l.b16 %v1604
        %v1914 = vunpack.c.h.b16 %v1604
        %v1915 = vunpack.c.l.b16 %v1605
        %v1916 = vunpack.c.h.b16 %v1605
        %v1917 = vunpack.c.l.b16 %v1606
        %v1918 = vunpack.c.h.b16 %v1606
        %v1919 = vunpack.c.l.b16 %v1607
        %v1920 = vunpack.c.h.b16 %v1607
        %v1921 = vunpack.c.l.b16 %v1608
        %v1922 = vunpack.c.h.b16 %v1608
        %v1923 = vunpack.c.l.b16 %v1609
        %v1924 = vunpack.c.h.b16 %v1609
        %v1925 = vunpack.c.l.b16 %v1610
        %v1926 = vunpack.c.h.b16 %v1610
        %v1927 = vunpack.c.l.b16 %v1611
        %v1928 = vunpack.c.h.b16 %v1611
        %v1929 = vunpack.c.l.b16 %v1612
        %v1930 = vunpack.c.h.b16 %v1612
        %v1931 = vunpack.c.l.b16 %v1613
        %v1932 = vunpack.c.h.b16 %v1613
        %v1933 = vunpack.c.l.b16 %v1614
        %v1934 = vunpack.c.h.b16 %v1614
        %v1935 = vunpack.c.l.b16 %v1615
        %v1936 = vunpack.c.h.b16 %v1615
        %v1937 = vunpack.c.l.b16 %v1616
        %v1938 = vunpack.c.h.b16 %v1616
        %v1939 = vunpack.c.l.b16 %v1617
        %v1940 = vunpack.c.h.b16 %v1617
        %v1941 = vunpack.c.l.b16 %v1618
        %v1942 = vunpack.c.h.b16 %v1618
        %v1943 = vunpack.c.l.b16 %v1619
        %v1944 = vunpack.c.h.b16 %v1619
        %v1945 = vunpack.c.l.b16 %v1620
        %v1946 = vunpack.c.h.b16 %v1620
        %v1947 = vunpack.c.l.b16 %v1621
        %v1948 = vunpack.c.h.b16 %v1621
        %v1949 = vunpack.c.l.b16 %v1622
        %v1950 = vunpack.c.h.b16 %v1622
        %v1951 = vunpack.c.l.b16 %v1623
        %v1952 = vunpack.c.h.b16 %v1623
        %v1953 = vunpack.c.l.b16 %v1624
        %v1954 = vunpack.c.h.b16 %v1624
        %v1955 = vunpack.c.l.b16 %v1625
        %v1956 = vunpack.c.h.b16 %v1625
        %v1957 = vunpack.c.l.b16 %v1626
        %v1958 = vunpack.c.h.b16 %v1626
        %v1959 = vunpack.c.l.b16 %v1627
        %v1960 = vunpack.c.h.b16 %v1627
        %v1961 = vunpack.c.l.b16 %v1628
        %v1962 = vunpack.c.h.b16 %v1628
        %v1963 = vunpack.c.l.b16 %v1629
        %v1964 = vunpack.c.h.b16 %v1629
        %v1965 = vunpack.c.l.b16 %v1630
        %v1966 = vunpack.c.h.b16 %v1630
        %v1967 = vunpack.c.l.b16 %v1631
        %v1968 = vunpack.c.h.b16 %v1631
        %v1969 = vunpack.c.l.b16 %v1632
        %v1970 = vunpack.c.h.b16 %v1632
        %v1971 = vunpack.c.l.b16 %v1633
        %v1972 = vunpack.c.h.b16 %v1633
        %v1973 = vunpack.c.l.b16 %v1634
        %v1974 = vunpack.c.h.b16 %v1634
        %v1975 = vunpack.c.l.b16 %v1635
        %v1976 = vunpack.c.h.b16 %v1635
        %v1977 = vunpack.c.l.b16 %v1636
        %v1978 = vunpack.c.h.b16 %v1636
        %v1979 = vunpack.c.l.b16 %v1637
        %v1980 = vunpack.c.h.b16 %v1637
        %v1981 = vunpack.c.l.b16 %v1638
        %v1982 = vunpack.c.h.b16 %v1638
        %v1983 = vunpack.c.l.b16 %v1639
        %v1984 = vunpack.c.h.b16 %v1639
        %v1985 = vunpack.c.l.b16 %v1640
        %v1986 = vunpack.c.h.b16 %v1640
        %v1987 = vunpack.c.l.b16 %v1641
        %v1988 = vunpack.c.h.b16 %v1641
        %v1989 = vunpack.c.l.b16 %v1642
        %v1990 = vunpack.c.h.b16 %v1642
        %v1991 = vunpack.c.l.b16 %v1643
        %v1992 = vunpack.c.h.b16 %v1643
        %v1993 = vunpack.c.l.b16 %v1644
        %v1994 = vunpack.c.h.b16 %v1644
        %v1995 = vunpack.c.l.b16 %v1645
        %v1996 = vunpack.c.h.b16 %v1645
        %v1997 = vunpack.c.l.b16 %v1646
        %v1998 = vunpack.c.h.b16 %v1646
        %v1999 = vunpack.c.l.b16 %v1647
        %v2000 = vunpack.c.h.b16 %v1647
        %v2001 = vunpack.c.l.b16 %v1648
        %v2002 = vunpack.c.h.b16 %v1648
        %v2003 = vunpack.c.l.b16 %v1649
        %v2004 = vunpack.c.h.b16 %v1649
        %v2005 = vunpack.c.l.b16 %v1650
        %v2006 = vunpack.c.h.b16 %v1650
        %v2007 = vunpack.c.l.b16 %v1651
        %v2008 = vunpack.c.h.b16 %v1651
        %v2009 = vunpack.c.l.b16 %v1652
        %v2010 = vunpack.c.h.b16 %v1652
        %v2011 = vunpack.c.l.b16 %v1653
        %v2012 = vunpack.c.h.b16 %v1653
        %v2013 = vunpack.c.l.b16 %v1654
        %v2014 = vunpack.c.h.b16 %v1654
        %v2015 = vunpack.c.l.b16 %v1655
        %v2016 = vunpack.c.h.b16 %v1655
        %v2017 = vunpack.c.l.b16 %v1656
        %v2018 = vunpack.c.h.b16 %v1656
        %v2019 = vunpack.c.l.b16 %v1657
        %v2020 = vunpack.c.h.b16 %v1657
        %v2021 = vunpack.c.l.b16 %v1658
        %v2022 = vunpack.c.h.b16 %v1658
        %v2023 = vunpack.c.l.b16 %v1659
        %v2024 = vunpack.c.h.b16 %v1659
        %v2025 = vunpack.c.l.b16 %v1660
        %v2026 = vunpack.c.h.b16 %v1660
        %v2027 = vunpack.c.l.b16 %v1661
        %v2028 = vunpack.c.h.b16 %v1661
        %v2029 = vunpack.c.l.b16 %v1662
        %v2030 = vunpack.c.h.b16 %v1662
        %v2031 = vunpack.c.l.b16 %v1663
        %v2032 = vunpack.c.h.b16 %v1663
        %v2033 = vunpack.c.l.b16 %v1664
        %v2034 = vunpack.c.h.b16 %v1664
        %v2035 = vunpack.c.l.b16 %v1665
        %v2036 = vunpack.c.h.b16 %v1665
        %v2037 = vunpack.c.l.b16 %v1666
        %v2038 = vunpack.c.h.b16 %v1666
        %v2039 = vunpack.c.l.b16 %v1667
        %v2040 = vunpack.c.h.b16 %v1667
        %v2041 = vunpack.c.l.b16 %v1668
        %v2042 = vunpack.c.h.b16 %v1668
        %v2043 = vunpack.c.l.b16 %v1669
        %v2044 = vunpack.c.h.b16 %v1669
        %v2045 = vunpack.c.l.b16 %v1670
        %v2046 = vunpack.c.h.b16 %v1670
        %v2047 = vunpack.c.l.b16 %v1671
        %v2048 = vunpack.c.h.b16 %v1671
        %v2049 = vunpack.c.l.b16 %v1672
        %v2050 = vunpack.c.h.b16 %v1672
        %v2051 = vunpack.c.l.b16 %v1673
        %v2052 = vunpack.c.h.b16 %v1673
        %v2053 = vunpack.c.l.b16 %v1674
        %v2054 = vunpack.c.h.b16 %v1674
        %v2055 = vunpack.c.l.b16 %v1675
        %v2056 = vunpack.c.h.b16 %v1675
        %v2057 = vunpack.c.l.b16 %v1676
        %v2058 = vunpack.c.h.b16 %v1676
        %v2059 = vunpack.c.l.b16 %v1677
        %v2060 = vunpack.c.h.b16 %v1677
        %v2061 = vunpack.c.l.b16 %v1678
        %v2062 = vunpack.c.h.b16 %v1678
        %v2063 = vunpack.c.l.b16 %v1679
        %v2064 = vunpack.c.h.b16 %v1679
        %v2065 = vunpack.c.l.b16 %v1680
        %v2066 = vunpack.c.h.b16 %v1680
        %v2067 = vunpack.c.l.b16 %v1681
        %v2068 = vunpack.c.h.b16 %v1681
        %v2069 = vunpack.c.l.b16 %v1682
        %v2070 = vunpack.c.h.b16 %v1682
        %v2071 = vunpack.c.l.b16 %v1683
        %v2072 = vunpack.c.h.b16 %v1683
        %v2073 = vunpack.c.l.b16 %v1684
        %v2074 = vunpack.c.h.b16 %v1684
        %v2075 = vunpack.c.l.b16 %v1685
        %v2076 = vunpack.c.h.b16 %v1685
        %v2077 = vunpack.c.l.b16 %v1686
        %v2078 = vunpack.c.h.b16 %v1686
        %v2079 = vunpack.c.l.b16 %v1687
        %v2080 = vunpack.c.h.b16 %v1687
        %v2081 = vunpack.c.l.b16 %v1688
        %v2082 = vunpack.c.h.b16 %v1688
        %v2083 = vunpack.c.l.b16 %v1689
        %v2084 = vunpack.c.h.b16 %v1689
        %v2085 = vunpack.c.l.b16 %v1690
        %v2086 = vunpack.c.h.b16 %v1690
        %v2087 = vpack.c.b16 %v1833, %v1831
        %v2088 = vpack.c.b16 %v1834, %v1832
        %v2089 = vpack.c.b16 %v1837, %v1835
        %v2090 = vpack.c.b16 %v1838, %v1836
        %v2091 = vpack.c.b16 %v1841, %v1839
        %v2092 = vpack.c.b16 %v1842, %v1840
        %v2093 = vpack.c.b16 %v1845, %v1843
        %v2094 = vpack.c.b16 %v1846, %v1844
        %v2095 = vpack.c.b16 %v1849, %v1847
        %v2096 = vpack.c.b16 %v1850, %v1848
        %v2097 = vpack.c.b16 %v1853, %v1851
        %v2098 = vpack.c.b16 %v1854, %v1852
        %v2099 = vpack.c.b16 %v1857, %v1855
        %v2100 = vpack.c.b16 %v1858, %v1856
        %v2101 = vpack.c.b16 %v1861, %v1859
        %v2102 = vpack.c.b16 %v1862, %v1860
        %v2103 = vpack.c.b16 %v1865, %v1863
        %v2104 = vpack.c.b16 %v1866, %v1864
        %v2105 = vpack.c.b16 %v1869, %v1867
        %v2106 = vpack.c.b16 %v1870, %v1868
        %v2107 = vpack.c.b16 %v1873, %v1871
        %v2108 = vpack.c.b16 %v1874, %v1872
        %v2109 = vpack.c.b16 %v1877, %v1875
        %v2110 = vpack.c.b16 %v1878, %v1876
        %v2111 = vpack.c.b16 %v1881, %v1879
        %v2112 = vpack.c.b16 %v1882, %v1880
        %v2113 = vpack.c.b16 %v1885, %v1883
        %v2114 = vpack.c.b16 %v1886, %v1884
        %v2115 = vpack.c.b16 %v1889, %v1887
        %v2116 = vpack.c.b16 %v1890, %v1888
        %v2117 = vpack.c.b16 %v1893, %v1891
        %v2118 = vpack.c.b16 %v1894, %v1892
        %v2119 = vpack.c.b16 %v1897, %v1895
        %v2120 = vpack.c.b16 %v1898, %v1896
        %v2121 = vpack.c.b16 %v1901, %v1899
        %v2122 = vpack.c.b16 %v1902, %v1900
        %v2123 = vpack.c.b16 %v1905, %v1903
        %v2124 = vpack.c.b16 %v1906, %v1904
        %v2125 = vpack.c.b16 %v1909, %v1907
        %v2126 = vpack.c.b16 %v1910, %v1908
        %v2127 = vpack.c.b16 %v1913, %v1911
        %v2128 = vpack.c.b16 %v1914, %v1912
        %v2129 = vpack.c.b16 %v1917, %v1915
        %v2130 = vpack.c.b16 %v1918, %v1916
        %v2131 = vpack.c.b16 %v1921, %v1919
        %v2132 = vpack.c.b16 %v1922, %v1920
        %v2133 = vpack.c.b16 %v1925, %v1923
        %v2134 = vpack.c.b16 %v1926, %v1924
        %v2135 = vpack.c.b16 %v1929, %v1927
        %v2136 = vpack.c.b16 %v1930, %v1928
        %v2137 = vpack.c.b16 %v1933, %v1931
        %v2138 = vpack.c.b16 %v1934, %v1932
        %v2139 = vpack.c.b16 %v1937, %v1935
        %v2140 = vpack.c.b16 %v1938, %v1936
        %v2141 = vpack.c.b16 %v1941, %v1939
        %v2142 = vpack.c.b16 %v1942, %v1940
        %v2143 = vpack.c.b16 %v1945, %v1943
        %v2144 = vpack.c.b16 %v1946, %v1944
        %v2145 = vpack.c.b16 %v1949, %v1947
        %v2146 = vpack.c.b16 %v1950, %v1948
        %v2147 = vpack.c.b16 %v1953, %v1951
        %v2148 = vpack.c.b16 %v1954, %v1952
        %v2149 = vpack.c.b16 %v1957, %v1955
        %v2150 = vpack.c.b16 %v1958, %v1956
        %v2151 = vpack.c.b16 %v1961, %v1959
        %v2152 = vpack.c.b16 %v1962, %v1960
        %v2153 = vpack.c.b16 %v1965, %v1963
        %v2154 = vpack.c.b16 %v1966, %v1964
        %v2155 = vpack.c.b16 %v1969, %v1967
        %v2156 = vpack.c.b16 %v1970, %v1968
        %v2157 = vpack.c.b16 %v1973, %v1971
        %v2158 = vpack.c.b16 %v1974, %v1972
        %v2159 = vpack.c.b16 %v1977, %v1975
        %v2160 = vpack.c.b16 %v1978, %v1976
        %v2161 = vpack.c.b16 %v1981, %v1979
        %v2162 = vpack.c.b16 %v1982, %v1980
        %v2163 = vpack.c.b16 %v1985, %v1983
        %v2164 = vpack.c.b16 %v1986, %v1984
        %v2165 = vpack.c.b16 %v1989, %v1987
        %v2166 = vpack.c.b16 %v1990, %v1988
        %v2167 = vpack.c.b16 %v1993, %v1991
        %v2168 = vpack.c.b16 %v1994, %v1992
        %v2169 = vpack.c.b16 %v1997, %v1995
        %v2170 = vpack.c.b16 %v1998, %v1996
        %v2171 = vpack.c.b16 %v2001, %v1999
        %v2172 = vpack.c.b16 %v2002, %v2000
        %v2173 = vpack.c.b16 %v2005, %v2003
        %v2174 = vpack.c.b16 %v2006, %v2004
        %v2175 = vpack.c.b16 %v2009, %v2007
        %v2176 = vpack.c.b16 %v2010, %v2008
        %v2177 = vpack.c.b16 %v2013, %v2011
        %v2178 = vpack.c.b16 %v2014, %v2012
        %v2179 = vpack.c.b16 %v2017, %v2015
        %v2180 = vpack.c.b16 %v2018, %v2016
        %v2181 = vpack.c.b16 %v2021, %v2019
        %v2182 = vpack.c.b16 %v2022, %v2020
        %v2183 = vpack.c.b16 %v2025, %v2023
        %v2184 = vpack.c.b16 %v2026, %v2024
        %v2185 = vpack.c.b16 %v2029, %v2027
        %v2186 = vpack.c.b16 %v2030, %v2028
        %v2187 = vpack.c.b16 %v2033, %v2031
        %v2188 = vpack.c.b16 %v2034, %v2032
        %v2189 = vpack.c.b16 %v2037, %v2035
        %v2190 = vpack.c.b16 %v2038, %v2036
        %v2191 = vpack.c.b16 %v2041, %v2039
        %v2192 = vpack.c.b16 %v2042, %v2040
        %v2193 = vpack.c.b16 %v2045, %v2043
        %v2194 = vpack.c.b16 %v2046, %v2044
        %v2195 = vpack.c.b16 %v2049, %v2047
        %v2196 = vpack.c.b16 %v2050, %v2048
        %v2197 = vpack.c.b16 %v2053, %v2051
        %v2198 = vpack.c.b16 %v2054, %v2052
        %v2199 = vpack.c.b16 %v2057, %v2055
        %v2200 = vpack.c.b16 %v2058, %v2056
        %v2201 = vpack.c.b16 %v2061, %v2059
        %v2202 = vpack.c.b16 %v2062, %v2060
        %v2203 = vpack.c.b16 %v2065, %v2063
        %v2204 = vpack.c.b16 %v2066, %v2064
        %v2205 = vpack.c.b16 %v2069, %v2067
        %v2206 = vpack.c.b16 %v2070, %v2068
        %v2207 = vpack.c.b16 %v2073, %v2071
        %v2208 = vpack.c.b16 %v2074, %v2072
        %v2209 = vpack.c.b16 %v2077, %v2075
        %v2210 = vpack.c.b16 %v2078, %v2076
        %v2211 = vpack.c.b16 %v2081, %v2079
        %v2212 = vpack.c.b16 %v2082, %v2080
        %v2213 = vpack.c.b16 %v2085, %v2083
        %v2214 = vpack.c.b16 %v2086, %v2084
        %2343 = vmatprep.subr.bf16.mxu0 %v2088
        %2344 = vmatpush1.bf16.msra.mxu0 %v2087
        %2345 = vmatprep.subr.bf16.mxu0 %v2090
        %2346 = vmatpush1.bf16.msra.mxu0 %v2089
        %2347 = vmatprep.subr.bf16.mxu0 %v2092
        %2348 = vmatpush1.bf16.msra.mxu0 %v2091
        %2349 = vmatprep.subr.bf16.mxu0 %v2094
        %2350 = vmatpush1.bf16.msra.mxu0 %v2093
        %2351 = vmatprep.subr.bf16.mxu0 %v2096
        %2352 = vmatpush1.bf16.msra.mxu0 %v2095
        %2353 = vmatprep.subr.bf16.mxu0 %v2098
        %2354 = vmatpush1.bf16.msra.mxu0 %v2097
        %2355 = vmatprep.subr.bf16.mxu0 %v2100
        %2356 = vmatpush1.bf16.msra.mxu0 %v2099
        %2357 = vmatprep.subr.bf16.mxu0 %v2102
        %2358 = vmatpush1.bf16.msra.mxu0 %v2101
        %2359 = vmatprep.subr.bf16.mxu0 %v2104
        %2360 = vmatpush1.bf16.msra.mxu0 %v2103
        %2361 = vmatprep.subr.bf16.mxu0 %v2106
        %2362 = vmatpush1.bf16.msra.mxu0 %v2105
        %2363 = vmatprep.subr.bf16.mxu0 %v2108
        %2364 = vmatpush1.bf16.msra.mxu0 %v2107
        %2365 = vmatprep.subr.bf16.mxu0 %v2110
        %2366 = vmatpush1.bf16.msra.mxu0 %v2109
        %2367 = vmatprep.subr.bf16.mxu0 %v2112
        %2368 = vmatpush1.bf16.msra.mxu0 %v2111
        %2369 = vmatprep.subr.bf16.mxu0 %v2114
        %2370 = vmatpush1.bf16.msra.mxu0 %v2113
        %2371 = vmatprep.subr.bf16.mxu0 %v2116
        %2372 = vmatpush1.bf16.msra.mxu0 %v2115
        %2373 = vmatprep.subr.bf16.mxu0 %v2118
        %2374 = vmatpush1.bf16.msra.mxu0 %v2117
        %2375 = vmatprep.mubr.bf16.mxu0 %v1500
        %2376 = vmatmul.mubr.bf16.gmra.mrb[0].mxu0 %v1499
        %v2377 = vpop.f32.mrb[0].mxu0
        %v2378 = vadd.f32 %v1696, %v2377
        %v2379 = vpop.f32.mrb[0].mxu0
        %v2380 = vadd.f32 %v1700, %v2379
        %v2381 = vpop.f32.mrb[0].mxu0
        %v2382 = vadd.f32 %v1696, %v2381
        %v2383 = vpop.f32.mrb[0].mxu0
        %v2384 = vadd.f32 %v1700, %v2383
        %2385 = vmatprep.mubr.bf16.mxu0 %v1508
        %2386 = vmatmul.mubr.bf16.gmra.mrb[0].mxu0 %v1507
        %v2387 = vpop.f32.mrb[0].mxu0
        %v2388 = vadd.f32 %v1696, %v2387
        %v2389 = vpop.f32.mrb[0].mxu0
        %v2390 = vadd.f32 %v1700, %v2389
        %v2391 = vpop.f32.mrb[0].mxu0
        %v2392 = vadd.f32 %v1696, %v2391
        %v2393 = vpop.f32.mrb[0].mxu0
        %v2394 = vadd.f32 %v1700, %v2393
        %2395 = vmatprep.mubr.bf16.mxu0 %v1516
        %2396 = vmatmul.mubr.bf16.gmra.mrb[0].mxu0 %v1515
        %v2397 = vpop.f32.mrb[0].mxu0
        %v2398 = vadd.f32 %v1696, %v2397
        %v2399 = vpop.f32.mrb[0].mxu0
        %v2400 = vadd.f32 %v1700, %v2399
        %v2401 = vpop.f32.mrb[0].mxu0
        %v2402 = vadd.f32 %v1696, %v2401
        %v2403 = vpop.f32.mrb[0].mxu0
        %v2404 = vadd.f32 %v1700, %v2403
        %2405 = vmatprep.mubr.bf16.mxu0 %v1524
        %2406 = vmatmul.mubr.bf16.gmra.mrb[0].mxu0 %v1523
        %v2407 = vpop.f32.mrb[0].mxu0
        %v2408 = vadd.f32 %v1696, %v2407
        %v2409 = vpop.f32.mrb[0].mxu0
        %v2410 = vadd.f32 %v1700, %v2409
        %v2411 = vpop.f32.mrb[0].mxu0
        %v2412 = vadd.f32 %v1696, %v2411
        %v2413 = vpop.f32.mrb[0].mxu0
        %v2414 = vadd.f32 %v1700, %v2413
        %2415 = vmatprep.mubr.bf16.mxu0 %v1532
        %2416 = vmatmul.mubr.bf16.gmra.mrb[0].mxu0 %v1531
        %v2417 = vpop.f32.mrb[0].mxu0
        %v2418 = vadd.f32 %v1696, %v2417
        %v2419 = vpop.f32.mrb[0].mxu0
        %v2420 = vadd.f32 %v1700, %v2419
        %v2421 = vpop.f32.mrb[0].mxu0
        %v2422 = vadd.f32 %v1696, %v2421
        %v2423 = vpop.f32.mrb[0].mxu0
        %v2424 = vadd.f32 %v1700, %v2423
        %2425 = vmatprep.mubr.bf16.mxu0 %v1540
        %2426 = vmatmul.mubr.bf16.gmra.mrb[0].mxu0 %v1539
        %v2427 = vpop.f32.mrb[0].mxu0
        %v2428 = vadd.f32 %v1696, %v2427
        %v2429 = vpop.f32.mrb[0].mxu0
        %v2430 = vadd.f32 %v1700, %v2429
        %v2431 = vpop.f32.mrb[0].mxu0
        %v2432 = vadd.f32 %v1696, %v2431
        %v2433 = vpop.f32.mrb[0].mxu0
        %v2434 = vadd.f32 %v1700, %v2433
        %2435 = vmatprep.mubr.bf16.mxu0 %v1548
        %2436 = vmatmul.mubr.bf16.gmra.mrb[0].mxu0 %v1547
        %v2437 = vpop.f32.mrb[0].mxu0
        %v2438 = vadd.f32 %v1696, %v2437
        %v2439 = vpop.f32.mrb[0].mxu0
        %v2440 = vadd.f32 %v1700, %v2439
        %v2441 = vpop.f32.mrb[0].mxu0
        %v2442 = vadd.f32 %v1696, %v2441
        %v2443 = vpop.f32.mrb[0].mxu0
        %v2444 = vadd.f32 %v1700, %v2443
        %2445 = vmatprep.mubr.bf16.mxu0 %v1556
        %2446 = vmatmul.mubr.bf16.gmra.mrb[0].mxu0 %v1555
        %v2447 = vpop.f32.mrb[0].mxu0
        %v2448 = vadd.f32 %v1696, %v2447
        %v2449 = vpop.f32.mrb[0].mxu0
        %v2450 = vadd.f32 %v1700, %v2449
        %v2451 = vpop.f32.mrb[0].mxu0
        %v2452 = vadd.f32 %v1696, %v2451
        %v2453 = vpop.f32.mrb[0].mxu0
        %v2454 = vadd.f32 %v1700, %v2453
        %2455 = vdwg.mxu0
        %2456 = vmatprep.subr.bf16.mxu0 %v2120
        %2457 = vmatpush1.bf16.msra.mxu0 %v2119
        %2458 = vmatprep.subr.bf16.mxu0 %v2122
        %2459 = vmatpush1.bf16.msra.mxu0 %v2121
        %2460 = vmatprep.subr.bf16.mxu0 %v2124
        %2461 = vmatpush1.bf16.msra.mxu0 %v2123
        %2462 = vmatprep.subr.bf16.mxu0 %v2126
        %2463 = vmatpush1.bf16.msra.mxu0 %v2125
        %2464 = vmatprep.subr.bf16.mxu0 %v2128
        %2465 = vmatpush1.bf16.msra.mxu0 %v2127
        %2466 = vmatprep.subr.bf16.mxu0 %v2130
        %2467 = vmatpush1.bf16.msra.mxu0 %v2129
        %2468 = vmatprep.subr.bf16.mxu0 %v2132
        %2469 = vmatpush1.bf16.msra.mxu0 %v2131
        %2470 = vmatprep.subr.bf16.mxu0 %v2134
        %2471 = vmatpush1.bf16.msra.mxu0 %v2133
        %2472 = vmatprep.subr.bf16.mxu0 %v2136
        %2473 = vmatpush1.bf16.msra.mxu0 %v2135
        %2474 = vmatprep.subr.bf16.mxu0 %v2138
        %2475 = vmatpush1.bf16.msra.mxu0 %v2137
        %2476 = vmatprep.subr.bf16.mxu0 %v2140
        %2477 = vmatpush1.bf16.msra.mxu0 %v2139
        %2478 = vmatprep.subr.bf16.mxu0 %v2142
        %2479 = vmatpush1.bf16.msra.mxu0 %v2141
        %2480 = vmatprep.subr.bf16.mxu0 %v2144
        %2481 = vmatpush1.bf16.msra.mxu0 %v2143
        %2482 = vmatprep.subr.bf16.mxu0 %v2146
        %2483 = vmatpush1.bf16.msra.mxu0 %v2145
        %2484 = vmatprep.subr.bf16.mxu0 %v2148
        %2485 = vmatpush1.bf16.msra.mxu0 %v2147
        %2486 = vmatprep.subr.bf16.mxu0 %v2150
        %2487 = vmatpush1.bf16.msra.mxu0 %v2149
        %2488 = vmatprep.mubr.bf16.mxu0 %v1502
        %2489 = vmatmul.mubr.bf16.gmra.mrb[0].mxu0 %v1501
        %v2490 = vpop.f32.mrb[0].mxu0
        %v2491 = vadd.f32 %v2378, %v2490
        %v2492 = vpop.f32.mrb[0].mxu0
        %v2493 = vadd.f32 %v2380, %v2492
        %v2494 = vpop.f32.mrb[0].mxu0
        %v2495 = vadd.f32 %v2382, %v2494
        %v2496 = vpop.f32.mrb[0].mxu0
        %v2497 = vadd.f32 %v2384, %v2496
        %2498 = vmatprep.mubr.bf16.mxu0 %v1510
        %2499 = vmatmul.mubr.bf16.gmra.mrb[0].mxu0 %v1509
        %v2500 = vpop.f32.mrb[0].mxu0
        %v2501 = vadd.f32 %v2388, %v2500
        %v2502 = vpop.f32.mrb[0].mxu0
        %v2503 = vadd.f32 %v2390, %v2502
        %v2504 = vpop.f32.mrb[0].mxu0
        %v2505 = vadd.f32 %v2392, %v2504
        %v2506 = vpop.f32.mrb[0].mxu0
        %v2507 = vadd.f32 %v2394, %v2506
        %2508 = vmatprep.mubr.bf16.mxu0 %v1518
        %2509 = vmatmul.mubr.bf16.gmra.mrb[0].mxu0 %v1517
        %v2510 = vpop.f32.mrb[0].mxu0
        %v2511 = vadd.f32 %v2398, %v2510
        %v2512 = vpop.f32.mrb[0].mxu0
        %v2513 = vadd.f32 %v2400, %v2512
        %v2514 = vpop.f32.mrb[0].mxu0
        %v2515 = vadd.f32 %v2402, %v2514
        %v2516 = vpop.f32.mrb[0].mxu0
        %v2517 = vadd.f32 %v2404, %v2516
        %2518 = vmatprep.mubr.bf16.mxu0 %v1526
        %2519 = vmatmul.mubr.bf16.gmra.mrb[0].mxu0 %v1525
        %v2520 = vpop.f32.mrb[0].mxu0
        %v2521 = vadd.f32 %v2408, %v2520
        %v2522 = vpop.f32.mrb[0].mxu0
        %v2523 = vadd.f32 %v2410, %v2522
        %v2524 = vpop.f32.mrb[0].mxu0
        %v2525 = vadd.f32 %v2412, %v2524
        %v2526 = vpop.f32.mrb[0].mxu0
        %v2527 = vadd.f32 %v2414, %v2526
        %2528 = vmatprep.mubr.bf16.mxu0 %v1534
        %2529 = vmatmul.mubr.bf16.gmra.mrb[0].mxu0 %v1533
        %v2530 = vpop.f32.mrb[0].mxu0
        %v2531 = vadd.f32 %v2418, %v2530
        %v2532 = vpop.f32.mrb[0].mxu0
        %v2533 = vadd.f32 %v2420, %v2532
        %v2534 = vpop.f32.mrb[0].mxu0
        %v2535 = vadd.f32 %v2422, %v2534
        %v2536 = vpop.f32.mrb[0].mxu0
        %v2537 = vadd.f32 %v2424, %v2536
        %2538 = vmatprep.mubr.bf16.mxu0 %v1542
        %2539 = vmatmul.mubr.bf16.gmra.mrb[0].mxu0 %v1541
        %v2540 = vpop.f32.mrb[0].mxu0
        %v2541 = vadd.f32 %v2428, %v2540
        %v2542 = vpop.f32.mrb[0].mxu0
        %v2543 = vadd.f32 %v2430, %v2542
        %v2544 = vpop.f32.mrb[0].mxu0
        %v2545 = vadd.f32 %v2432, %v2544
        %v2546 = vpop.f32.mrb[0].mxu0
        %v2547 = vadd.f32 %v2434, %v2546
        %2548 = vmatprep.mubr.bf16.mxu0 %v1550
        %2549 = vmatmul.mubr.bf16.gmra.mrb[0].mxu0 %v1549
        %v2550 = vpop.f32.mrb[0].mxu0
        %v2551 = vadd.f32 %v2438, %v2550
        %v2552 = vpop.f32.mrb[0].mxu0
        %v2553 = vadd.f32 %v2440, %v2552
        %v2554 = vpop.f32.mrb[0].mxu0
        %v2555 = vadd.f32 %v2442, %v2554
        %v2556 = vpop.f32.mrb[0].mxu0
        %v2557 = vadd.f32 %v2444, %v2556
        %2558 = vmatprep.mubr.bf16.mxu0 %v1558
        %2559 = vmatmul.mubr.bf16.gmra.mrb[0].mxu0 %v1557
        %v2560 = vpop.f32.mrb[0].mxu0
        %v2561 = vadd.f32 %v2448, %v2560
        %v2562 = vpop.f32.mrb[0].mxu0
        %v2563 = vadd.f32 %v2450, %v2562
        %v2564 = vpop.f32.mrb[0].mxu0
        %v2565 = vadd.f32 %v2452, %v2564
        %v2566 = vpop.f32.mrb[0].mxu0
        %v2567 = vadd.f32 %v2454, %v2566
        %2568 = vdwg.mxu0
        %2569 = vmatprep.subr.bf16.mxu0 %v2152
        %2570 = vmatpush1.bf16.msra.mxu0 %v2151
        %2571 = vmatprep.subr.bf16.mxu0 %v2154
        %2572 = vmatpush1.bf16.msra.mxu0 %v2153
        %2573 = vmatprep.subr.bf16.mxu0 %v2156
        %2574 = vmatpush1.bf16.msra.mxu0 %v2155
        %2575 = vmatprep.subr.bf16.mxu0 %v2158
        %2576 = vmatpush1.bf16.msra.mxu0 %v2157
        %2577 = vmatprep.subr.bf16.mxu0 %v2160
        %2578 = vmatpush1.bf16.msra.mxu0 %v2159
        %2579 = vmatprep.subr.bf16.mxu0 %v2162
        %2580 = vmatpush1.bf16.msra.mxu0 %v2161
        %2581 = vmatprep.subr.bf16.mxu0 %v2164
        %2582 = vmatpush1.bf16.msra.mxu0 %v2163
        %2583 = vmatprep.subr.bf16.mxu0 %v2166
        %2584 = vmatpush1.bf16.msra.mxu0 %v2165
        %2585 = vmatprep.subr.bf16.mxu0 %v2168
        %2586 = vmatpush1.bf16.msra.mxu0 %v2167
        %2587 = vmatprep.subr.bf16.mxu0 %v2170
        %2588 = vmatpush1.bf16.msra.mxu0 %v2169
        %2589 = vmatprep.subr.bf16.mxu0 %v2172
        %2590 = vmatpush1.bf16.msra.mxu0 %v2171
        %2591 = vmatprep.subr.bf16.mxu0 %v2174
        %2592 = vmatpush1.bf16.msra.mxu0 %v2173
        %2593 = vmatprep.subr.bf16.mxu0 %v2176
        %2594 = vmatpush1.bf16.msra.mxu0 %v2175
        %2595 = vmatprep.subr.bf16.mxu0 %v2178
        %2596 = vmatpush1.bf16.msra.mxu0 %v2177
        %2597 = vmatprep.subr.bf16.mxu0 %v2180
        %2598 = vmatpush1.bf16.msra.mxu0 %v2179
        %2599 = vmatprep.subr.bf16.mxu0 %v2182
        %2600 = vmatpush1.bf16.msra.mxu0 %v2181
        %2601 = vmatprep.mubr.bf16.mxu0 %v1504
        %2602 = vmatmul.mubr.bf16.gmra.mrb[0].mxu0 %v1503
        %v2603 = vpop.f32.mrb[0].mxu0
        %v2604 = vadd.f32 %v2491, %v2603
        %v2605 = vpop.f32.mrb[0].mxu0
        %v2606 = vadd.f32 %v2493, %v2605
        %v2607 = vpop.f32.mrb[0].mxu0
        %v2608 = vadd.f32 %v2495, %v2607
        %v2609 = vpop.f32.mrb[0].mxu0
        %v2610 = vadd.f32 %v2497, %v2609
        %2611 = vmatprep.mubr.bf16.mxu0 %v1512
        %2612 = vmatmul.mubr.bf16.gmra.mrb[0].mxu0 %v1511
        %v2613 = vpop.f32.mrb[0].mxu0
        %v2614 = vadd.f32 %v2501, %v2613
        %v2615 = vpop.f32.mrb[0].mxu0
        %v2616 = vadd.f32 %v2503, %v2615
        %v2617 = vpop.f32.mrb[0].mxu0
        %v2618 = vadd.f32 %v2505, %v2617
        %v2619 = vpop.f32.mrb[0].mxu0
        %v2620 = vadd.f32 %v2507, %v2619
        %2621 = vmatprep.mubr.bf16.mxu0 %v1520
        %2622 = vmatmul.mubr.bf16.gmra.mrb[0].mxu0 %v1519
        %v2623 = vpop.f32.mrb[0].mxu0
        %v2624 = vadd.f32 %v2511, %v2623
        %v2625 = vpop.f32.mrb[0].mxu0
        %v2626 = vadd.f32 %v2513, %v2625
        %v2627 = vpop.f32.mrb[0].mxu0
        %v2628 = vadd.f32 %v2515, %v2627
        %v2629 = vpop.f32.mrb[0].mxu0
        %v2630 = vadd.f32 %v2517, %v2629
        %2631 = vmatprep.mubr.bf16.mxu0 %v1528
        %2632 = vmatmul.mubr.bf16.gmra.mrb[0].mxu0 %v1527
        %v2633 = vpop.f32.mrb[0].mxu0
        %v2634 = vadd.f32 %v2521, %v2633
        %v2635 = vpop.f32.mrb[0].mxu0
        %v2636 = vadd.f32 %v2523, %v2635
        %v2637 = vpop.f32.mrb[0].mxu0
        %v2638 = vadd.f32 %v2525, %v2637
        %v2639 = vpop.f32.mrb[0].mxu0
        %v2640 = vadd.f32 %v2527, %v2639
        %2641 = vmatprep.mubr.bf16.mxu0 %v1536
        %2642 = vmatmul.mubr.bf16.gmra.mrb[0].mxu0 %v1535
        %v2643 = vpop.f32.mrb[0].mxu0
        %v2644 = vadd.f32 %v2531, %v2643
        %v2645 = vpop.f32.mrb[0].mxu0
        %v2646 = vadd.f32 %v2533, %v2645
        %v2647 = vpop.f32.mrb[0].mxu0
        %v2648 = vadd.f32 %v2535, %v2647
        %v2649 = vpop.f32.mrb[0].mxu0
        %v2650 = vadd.f32 %v2537, %v2649
        %2651 = vmatprep.mubr.bf16.mxu0 %v1544
        %2652 = vmatmul.mubr.bf16.gmra.mrb[0].mxu0 %v1543
        %v2653 = vpop.f32.mrb[0].mxu0
        %v2654 = vadd.f32 %v2541, %v2653
        %v2655 = vpop.f32.mrb[0].mxu0
        %v2656 = vadd.f32 %v2543, %v2655
        %v2657 = vpop.f32.mrb[0].mxu0
        %v2658 = vadd.f32 %v2545, %v2657
        %v2659 = vpop.f32.mrb[0].mxu0
        %v2660 = vadd.f32 %v2547, %v2659
        %2661 = vmatprep.mubr.bf16.mxu0 %v1552
        %2662 = vmatmul.mubr.bf16.gmra.mrb[0].mxu0 %v1551
        %v2663 = vpop.f32.mrb[0].mxu0
        %v2664 = vadd.f32 %v2551, %v2663
        %v2665 = vpop.f32.mrb[0].mxu0
        %v2666 = vadd.f32 %v2553, %v2665
        %v2667 = vpop.f32.mrb[0].mxu0
        %v2668 = vadd.f32 %v2555, %v2667
        %v2669 = vpop.f32.mrb[0].mxu0
        %v2670 = vadd.f32 %v2557, %v2669
        %2671 = vmatprep.mubr.bf16.mxu0 %v1560
        %2672 = vmatmul.mubr.bf16.gmra.mrb[0].mxu0 %v1559
        %v2673 = vpop.f32.mrb[0].mxu0
        %v2674 = vadd.f32 %v2561, %v2673
        %v2675 = vpop.f32.mrb[0].mxu0
        %v2676 = vadd.f32 %v2563, %v2675
        %v2677 = vpop.f32.mrb[0].mxu0
        %v2678 = vadd.f32 %v2565, %v2677
        %v2679 = vpop.f32.mrb[0].mxu0
        %v2680 = vadd.f32 %v2567, %v2679
        %2681 = vdwg.mxu0
        %2682 = vmatprep.subr.bf16.mxu0 %v2184
        %2683 = vmatpush1.bf16.msra.mxu0 %v2183
        %2684 = vmatprep.subr.bf16.mxu0 %v2186
        %2685 = vmatpush1.bf16.msra.mxu0 %v2185
        %2686 = vmatprep.subr.bf16.mxu0 %v2188
        %2687 = vmatpush1.bf16.msra.mxu0 %v2187
        %2688 = vmatprep.subr.bf16.mxu0 %v2190
        %2689 = vmatpush1.bf16.msra.mxu0 %v2189
        %2690 = vmatprep.subr.bf16.mxu0 %v2192
        %2691 = vmatpush1.bf16.msra.mxu0 %v2191
        %2692 = vmatprep.subr.bf16.mxu0 %v2194
        %2693 = vmatpush1.bf16.msra.mxu0 %v2193
        %2694 = vmatprep.subr.bf16.mxu0 %v2196
        %2695 = vmatpush1.bf16.msra.mxu0 %v2195
        %2696 = vmatprep.subr.bf16.mxu0 %v2198
        %2697 = vmatpush1.bf16.msra.mxu0 %v2197
        %2698 = vmatprep.subr.bf16.mxu0 %v2200
        %2699 = vmatpush1.bf16.msra.mxu0 %v2199
        %2700 = vmatprep.subr.bf16.mxu0 %v2202
        %2701 = vmatpush1.bf16.msra.mxu0 %v2201
        %2702 = vmatprep.subr.bf16.mxu0 %v2204
        %2703 = vmatpush1.bf16.msra.mxu0 %v2203
        %2704 = vmatprep.subr.bf16.mxu0 %v2206
        %2705 = vmatpush1.bf16.msra.mxu0 %v2205
        %2706 = vmatprep.subr.bf16.mxu0 %v2208
        %2707 = vmatpush1.bf16.msra.mxu0 %v2207
        %2708 = vmatprep.subr.bf16.mxu0 %v2210
        %2709 = vmatpush1.bf16.msra.mxu0 %v2209
        %2710 = vmatprep.subr.bf16.mxu0 %v2212
        %2711 = vmatpush1.bf16.msra.mxu0 %v2211
        %2712 = vmatprep.subr.bf16.mxu0 %v2214
        %2713 = vmatpush1.bf16.msra.mxu0 %v2213
        %2714 = vmatprep.mubr.bf16.mxu0 %v1506
        %2715 = vmatmul.mubr.bf16.gmra.mrb[0].mxu0 %v1505
        %v2716 = vpop.f32.mrb[0].mxu0
        %v2717 = vadd.f32 %v2604, %v2716
        %v2718 = vpop.f32.mrb[0].mxu0
        %v2719 = vadd.f32 %v2606, %v2718
        %v2720 = vpop.f32.mrb[0].mxu0
        %v2721 = vadd.f32 %v2608, %v2720
        %v2722 = vpop.f32.mrb[0].mxu0
        %v2723 = vadd.f32 %v2610, %v2722
        %2724 = vmatprep.mubr.bf16.mxu0 %v1514
        %2725 = vmatmul.mubr.bf16.gmra.mrb[0].mxu0 %v1513
        %v2726 = vpop.f32.mrb[0].mxu0
        %v2727 = vadd.f32 %v2614, %v2726
        %v2728 = vpop.f32.mrb[0].mxu0
        %v2729 = vadd.f32 %v2616, %v2728
        %v2730 = vpop.f32.mrb[0].mxu0
        %v2731 = vadd.f32 %v2618, %v2730
        %v2732 = vpop.f32.mrb[0].mxu0
        %v2733 = vadd.f32 %v2620, %v2732
        %2734 = vmatprep.mubr.bf16.mxu0 %v1522
        %2735 = vmatmul.mubr.bf16.gmra.mrb[0].mxu0 %v1521
        %v2736 = vpop.f32.mrb[0].mxu0
        %v2737 = vadd.f32 %v2624, %v2736
        %v2738 = vpop.f32.mrb[0].mxu0
        %v2739 = vadd.f32 %v2626, %v2738
        %v2740 = vpop.f32.mrb[0].mxu0
        %v2741 = vadd.f32 %v2628, %v2740
        %v2742 = vpop.f32.mrb[0].mxu0
        %v2743 = vadd.f32 %v2630, %v2742
        %2744 = vmatprep.mubr.bf16.mxu0 %v1530
        %2745 = vmatmul.mubr.bf16.gmra.mrb[0].mxu0 %v1529
        %v2746 = vpop.f32.mrb[0].mxu0
        %v2747 = vadd.f32 %v2634, %v2746
        %v2748 = vpop.f32.mrb[0].mxu0
        %v2749 = vadd.f32 %v2636, %v2748
        %v2750 = vpop.f32.mrb[0].mxu0
        %v2751 = vadd.f32 %v2638, %v2750
        %v2752 = vpop.f32.mrb[0].mxu0
        %v2753 = vadd.f32 %v2640, %v2752
        %2754 = vmatprep.mubr.bf16.mxu0 %v1538
        %2755 = vmatmul.mubr.bf16.gmra.mrb[0].mxu0 %v1537
        %v2756 = vpop.f32.mrb[0].mxu0
        %v2757 = vadd.f32 %v2644, %v2756
        %v2758 = vpop.f32.mrb[0].mxu0
        %v2759 = vadd.f32 %v2646, %v2758
        %v2760 = vpop.f32.mrb[0].mxu0
        %v2761 = vadd.f32 %v2648, %v2760
        %v2762 = vpop.f32.mrb[0].mxu0
        %v2763 = vadd.f32 %v2650, %v2762
        %2764 = vmatprep.mubr.bf16.mxu0 %v1546
        %2765 = vmatmul.mubr.bf16.gmra.mrb[0].mxu0 %v1545
        %v2766 = vpop.f32.mrb[0].mxu0
        %v2767 = vadd.f32 %v2654, %v2766
        %v2768 = vpop.f32.mrb[0].mxu0
        %v2769 = vadd.f32 %v2656, %v2768
        %v2770 = vpop.f32.mrb[0].mxu0
        %v2771 = vadd.f32 %v2658, %v2770
        %v2772 = vpop.f32.mrb[0].mxu0
        %v2773 = vadd.f32 %v2660, %v2772
        %2774 = vmatprep.mubr.bf16.mxu0 %v1554
        %2775 = vmatmul.mubr.bf16.gmra.mrb[0].mxu0 %v1553
        %v2776 = vpop.f32.mrb[0].mxu0
        %v2777 = vadd.f32 %v2664, %v2776
        %v2778 = vpop.f32.mrb[0].mxu0
        %v2779 = vadd.f32 %v2666, %v2778
        %v2780 = vpop.f32.mrb[0].mxu0
        %v2781 = vadd.f32 %v2668, %v2780
        %v2782 = vpop.f32.mrb[0].mxu0
        %v2783 = vadd.f32 %v2670, %v2782
        %2784 = vmatprep.mubr.bf16.mxu0 %v1562
        %2785 = vmatmul.mubr.bf16.gmra.mrb[0].mxu0 %v1561
        %v2786 = vpop.f32.mrb[0].mxu0
        %v2787 = vadd.f32 %v2674, %v2786
        %v2788 = vpop.f32.mrb[0].mxu0
        %v2789 = vadd.f32 %v2676, %v2788
        %v2790 = vpop.f32.mrb[0].mxu0
        %v2791 = vadd.f32 %v2678, %v2790
        %v2792 = vpop.f32.mrb[0].mxu0
        %v2793 = vadd.f32 %v2680, %v2792
        %2794 = vdwg.mxu0
        %2795 = vst [vmem:[%s216] sm:$0xff] %v2717
        %2796 = vst [vmem:[%s216 + $0x8] sm:$0xff] %v2719
        %2797 = vst [vmem:[%s216 + $0x10] sm:$0xff] %v2721
        %2798 = vst [vmem:[%s216 + $0x18] sm:$0xff] %v2723
        %2799 = vst [vmem:[%s216 + $0x20] sm:$0xff] %v2727
        %2800 = vst [vmem:[%s216 + $0x28] sm:$0xff] %v2729
        %2801 = vst [vmem:[%s216 + $0x30] sm:$0xff] %v2731
        %2802 = vst [vmem:[%s216 + $0x38] sm:$0xff] %v2733
        %2803 = vst [vmem:[%s216 + $0x40] sm:$0xff] %v2737
        %2804 = vst [vmem:[%s216 + $0x48] sm:$0xff] %v2739
        %2805 = vst [vmem:[%s216 + $0x50] sm:$0xff] %v2741
        %2806 = vst [vmem:[%s216 + $0x58] sm:$0xff] %v2743
        %2807 = vst [vmem:[%s216 + $0x60] sm:$0xff] %v2747
        %2808 = vst [vmem:[%s216 + $0x68] sm:$0xff] %v2749
        %2809 = vst [vmem:[%s216 + $0x70] sm:$0xff] %v2751
        %2810 = vst [vmem:[%s216 + $0x78] sm:$0xff] %v2753
        %2811 = vst [vmem:[%s216 + $0x80] sm:$0xff] %v2757
        %2812 = vst [vmem:[%s216 + $0x88] sm:$0xff] %v2759
        %2813 = vst [vmem:[%s216 + $0x90] sm:$0xff] %v2761
        %2814 = vst [vmem:[%s216 + $0x98] sm:$0xff] %v2763
        %2815 = vst [vmem:[%s216 + $0xa0] sm:$0xff] %v2767
        %2816 = vst [vmem:[%s216 + $0xa8] sm:$0xff] %v2769
        %2817 = vst [vmem:[%s216 + $0xb0] sm:$0xff] %v2771
        %2818 = vst [vmem:[%s216 + $0xb8] sm:$0xff] %v2773
        %2819 = vst [vmem:[%s216 + $0xc0] sm:$0xff] %v2777
        %2820 = vst [vmem:[%s216 + $0xc8] sm:$0xff] %v2779
        %2821 = vst [vmem:[%s216 + $0xd0] sm:$0xff] %v2781
        %2822 = vst [vmem:[%s216 + $0xd8] sm:$0xff] %v2783
        %2823 = vst [vmem:[%s216 + $0xe0] sm:$0xff] %v2787
        %2824 = vst [vmem:[%s216 + $0xe8] sm:$0xff] %v2789
        %2825 = vst [vmem:[%s216 + $0xf0] sm:$0xff] %v2791
        %2826 = vst [vmem:[%s216 + $0xf8] sm:$0xff] %v2793
        %s2827 = sand.u32 %s97, 1
        %s2828 = scalar_lea.sflag [#allocation4], %s2827
        %s2829 = sand.u32 %s97, 1
        %s2830 = smul.addr %s2829, 256
        %s2831 = scalar_lea.vmem [#allocation8], %s2830
        // Predicated region
        $region45: #{tpu_custom_call.1} parent=31 // pred_check
          %p2832 = pneg %p107
        $region46: #{tpu_custom_call.1} parent=31 // pred_check_branch
          %2834 = sbr.rel (%p2832) target = $region48
        $region47: #{tpu_custom_call.1} parent=31 // pred_region
          %s2835 = smul.u32 16, %s21
          %s2837 = ssub.s32 4096, 4096
          %2838 = vsyncadd %s2828, %s2837
          %s2839 = smul.addr %s2835, 2
          %s2840 = smul.addr %s2839, 128
          %s2841 = scalar_lea.hbm %s3, %s2840
          %s2842 = sshll.u32 %s2831, 4
          %s2843 = int_to_ptr.vmem [resolvable:$true] %s2842
          %2848 = dma.vmem_to_hbm [thread:$0]  %s2843, 4096, %s2841, %s2828, 256, 256, 16
        $region48: #{tpu_custom_call.1} parent=31 // pred_fallthru
          _
      $region32: #{tpu_custom_call.1} parent=5 // pred_fallthru
        _
      %p2849 = scmp.le.s32.totalorder 2, %s16
      // Predicated region
      $region49: #{tpu_custom_call.1} parent=5 // pred_check
        %p2850 = pneg %p2849
      $region50: #{tpu_custom_call.1} parent=5 // pred_check_branch
        %2852 = sbr.rel (%p2850) target = $region52
      $region51: #{tpu_custom_call.1} parent=5 // pred_region
        %s2853 = ssub.s32 %s16, 2
        // Predicated region
        $region53: #{tpu_custom_call.1} parent=51 // pred_check
          %p2854 = pneg %p113
        $region54: #{tpu_custom_call.1} parent=51 // pred_check_branch
          %2856 = sbr.rel (%p2854) target = $region56
        $region55: #{tpu_custom_call.1} parent=51 // pred_region
          %s2857 = sand.u32 %s98, 1
          %s2858 = scalar_lea.sflag [#allocation4], %s2857
          %s2859 = sand.u32 %s98, 1
          %s2860 = smul.addr %s2859, 256
          %s2861 = scalar_lea.vmem [#allocation8], %s2860
          %2862 = dma.done %s2858, 4096
        $region56: #{tpu_custom_call.1} parent=51 // pred_fallthru
          _
      $region52: #{tpu_custom_call.1} parent=5 // pred_fallthru
        _
    $region6: #{tpu_custom_call.1} parent=1 // loop_footer
      %s20 = sadd.s32 1, %s16
    $region7: #{tpu_custom_call.1} parent=1 // loop_footer_branch
      %15 = sbr.rel target = $region3
    $region8: #{tpu_custom_call.1} parent=1 // loop_exit
      _
    %2863 = vsyncpa [#allocation3], 1
    %s2864 = scalar_lea.sflag [#allocation3], 1
    %2865 = vsyncpa %s2864, 1
    %2866 = vsyncpa [#allocation6], 1
    %2867 = vsyncpa [#allocation4], 1
    %s2868 = scalar_lea.sflag [#allocation4], 1
    %2869 = vsyncpa %s2868, 1

// kernel: tpu_custom_call.1
$region0: #{tpu_custom_call.1}
  #allocation0 [shape = 'u32[]', space=smem, size = 0x4, offset = 0x4, fixed_abs, tag = 'smem constant byte address 0x4 - core index']
  #allocation1 [shape = 'u32[144,128]{1,0:T(1,128)}', space=vmem, size = 0x12000, scoped, tag = 'internal scratch']
  %s0 = inlined_call_operand.hbm [shape: f32[384,1024], index: 0, kind: input, shape index: {}]
  %s1 = inlined_call_operand.hbm [shape: bf16[1024,256], index: 1, kind: input, shape index: {}]
  %s2 = inlined_call_operand.hbm [shape: f32[1,256], index: 2, kind: input, shape index: {}]
  %s3 = inlined_call_operand.hbm [shape: f32[384,256], index: 3, kind: output, shape index: {}]
  %s4 = sld [smem:[#allocation0]]
  $region57: #{tpu_custom_call.1} parent=0
    _
  %s6 = ssub.s32 1, %s4
  %s7 = scalar_select 0, %s6, %s4
  $region1: #{tpu_custom_call.1} parent=0
    #allocation2 [shape = 'u8[1048576]{0}', space=vmem, size = 0x100000, scoped, tag = 'input window, operand 0']
    #allocation3 [shape = 's32[2]{0}', space=sflag, size = 0x8, scoped, tag = 'scoped memory for tpu_custom_call.1']
    #allocation4 [shape = 's32[2]{0}', space=sflag, size = 0x8, scoped, tag = 'scoped memory for tpu_custom_call.1']
    #allocation5 [shape = 'u8[524288]{0}', space=vmem, size = 0x80000, scoped, tag = 'input window, operand 1, single buffered']
    #allocation6 [shape = 's32[1]{0}', space=sflag, size = 0x4, scoped, tag = 'scoped memory for tpu_custom_call.1']
    #allocation7 [shape = 'u8[1024]{0}', space=vmem, size = 0x400, scoped, tag = 'input window, operand 2, single buffered']
    #allocation8 [shape = 'u8[262144]{0}', space=vmem, size = 0x40000, scoped, tag = 'output window, operand 0']
    %8 = vsyncpa [#allocation3], 0
    %s9 = scalar_lea.sflag [#allocation3], 1
    %10 = vsyncpa %s9, 0
    %11 = vsyncpa [#allocation6], 0
    %12 = vsyncpa [#allocation4], 0
    %s13 = scalar_lea.sflag [#allocation4], 1
    %14 = vsyncpa %s13, 0
    loop: start=0, step=1, limit=5
    $region2: #{tpu_custom_call.1} parent=1 // loop_pre_header
      _
    $region3: #{tpu_custom_call.1} parent=1 // loop_header
      %s16 = sphi 0, %s20
      %p17 = scmp.ge.s32.totalorder %s16, 5
      %s26 = sphi 0, %s28
      %s29 = sphi 0, %s26
      %s30 = sphi 0, %s29
      %s46 = sphi 0, %s30
      %s50 = sphi 0, %s50
      %s52 = sphi 0, %s50
      %s53 = sphi 0, %s52
      %s67 = sphi 0, %s53
      %s71 = sphi 0, %s71
      %s73 = sphi 0, %s71
      %s74 = sphi 0, %s73
      %s88 = sphi 0, %s74
      %s94 = sphi 0, %s96
      %s97 = sphi 0, %s94
      %s98 = sphi 0, %s97
      %s114 = sphi 0, %s98
    $region4: #{tpu_custom_call.1} parent=1 // loop_header_branch
      %19 = sbr.rel (%p17) target = $region8
    $region5: #{tpu_custom_call.1} parent=1 // loop_body
      %s21 = ssub.s32 %s16, 1
      %s22 = ssub.s32 %s16, 2
      %s23 = sadd.s32 %s16, 1
      %s24 = ssub.s32 %s16, %s23
      %p25 = scmp.eq.s32.totalorder %s24, 0
      %s27 = sadd.s32 %s26, 1
      %s28 = scalar_select %p25, %s26, %s27
      %p31 = pneg %p25
      %p32 = scmp.eq.s32.totalorder %s16, 2
      %p33 = por %p31, %p32
      %p34 = scmp.ne.s32.totalorder %s26, %s29
      %p35 = scmp.eq.s32.totalorder %s16, 0
      %p36 = por %p34, %p35
      %p37 = scmp.ne.s32.totalorder %s26, %s29
      %p38 = scmp.eq.s32.totalorder %s21, 2
      %p39 = por %p37, %p38
      %p40 = scmp.ne.s32.totalorder %s29, %s30
      %p41 = scmp.eq.s32.totalorder %s21, 0
      %p42 = por %p40, %p41
      %p43 = scmp.ne.s32.totalorder %s29, %s30
      %p44 = scmp.eq.s32.totalorder %s22, 2
      %p45 = por %p43, %p44
      %p47 = scmp.ne.s32.totalorder %s30, %s46
      %p48 = scmp.eq.s32.totalorder %s22, 0
      %p49 = por %p47, %p48
      %s51 = sadd.s32 %s50, 1
      %p54 = scmp.eq.s32.totalorder %s16, 2
      %p55 = scmp.ne.s32.totalorder %s50, %s52
      %p56 = scmp.eq.s32.totalorder %s16, 0
      %p57 = por %p55, %p56
      %p58 = scmp.ne.s32.totalorder %s50, %s52
      %p59 = scmp.eq.s32.totalorder %s21, 2
      %p60 = por %p58, %p59
      %p61 = scmp.ne.s32.totalorder %s52, %s53
      %p62 = scmp.eq.s32.totalorder %s21, 0
      %p63 = por %p61, %p62
      %p64 = scmp.ne.s32.totalorder %s52, %s53
      %p65 = scmp.eq.s32.totalorder %s22, 2
      %p66 = por %p64, %p65
      %p68 = scmp.ne.s32.totalorder %s53, %s67
      %p69 = scmp.eq.s32.totalorder %s22, 0
      %p70 = por %p68, %p69
      %s72 = sadd.s32 %s71, 1
      %p75 = scmp.eq.s32.totalorder %s16, 2
      %p76 = scmp.ne.s32.totalorder %s71, %s73
      %p77 = scmp.eq.s32.totalorder %s16, 0
      %p78 = por %p76, %p77
      %p79 = scmp.ne.s32.totalorder %s71, %s73
      %p80 = scmp.eq.s32.totalorder %s21, 2
      %p81 = por %p79, %p80
      %p82 = scmp.ne.s32.totalorder %s73, %s74
      %p83 = scmp.eq.s32.totalorder %s21, 0
      %p84 = por %p82, %p83
      %p85 = scmp.ne.s32.totalorder %s73, %s74
      %p86 = scmp.eq.s32.totalorder %s22, 2
      %p87 = por %p85, %p86
      %p89 = scmp.ne.s32.totalorder %s74, %s88
      %p90 = scmp.eq.s32.totalorder %s22, 0
      %p91 = por %p89, %p90
      %s92 = ssub.s32 %s16, %s23
      %p93 = scmp.eq.s32.totalorder %s92, 0
      %s95 = sadd.s32 %s94, 1
      %s96 = scalar_select %p93, %s94, %s95
      %p99 = pneg %p93
      %p100 = scmp.eq.s32.totalorder %s16, 2
      %p101 = por %p99, %p100
      %p102 = scmp.ne.s32.totalorder %s94, %s97
      %p103 = scmp.eq.s32.totalorder %s16, 0
      %p104 = por %p102, %p103
      %p105 = scmp.ne.s32.totalorder %s94, %s97
      %p106 = scmp.eq.s32.totalorder %s21, 2
      %p107 = por %p105, %p106
      %p108 = scmp.ne.s32.totalorder %s97, %s98
      %p109 = scmp.eq.s32.totalorder %s21, 0
      %p110 = por %p108, %p109
      %p111 = scmp.ne.s32.totalorder %s97, %s98
      %p112 = scmp.eq.s32.totalorder %s22, 2
      %p113 = por %p111, %p112
      %p115 = scmp.ne.s32.totalorder %s98, %s114
      %p116 = scmp.eq.s32.totalorder %s22, 0
      %p117 = por %p115, %p116
      %p118 = scmp.le.s32.totalorder 1, %s16
      %p119 = scmp.lt.s32.totalorder %s16, 4
      %p120 = pnand %p118, %p119
      %p121 = pneg %p120
      // Predicated region
      $region9: #{tpu_custom_call.1} parent=5 // pred_check
        _
      $region10: #{tpu_custom_call.1} parent=5 // pred_check_branch
        %123 = sbr.rel (%p120) target = $region12
      $region11: #{tpu_custom_call.1} parent=5 // pred_region
        %s124 = ssub.s32 %s16, 1
        // Predicated region
        $region13: #{tpu_custom_call.1} parent=11 // pred_check
          %p125 = pneg %p63
        $region14: #{tpu_custom_call.1} parent=11 // pred_check_branch
          %127 = sbr.rel (%p125) target = $region16
        $region15: #{tpu_custom_call.1} parent=11 // pred_region
          %s129 = ssub.s32 16384, 16384
          %130 = vsyncadd [#allocation6], %s129
          %s131 = sshll.u32 [#allocation5], 4
          %s132 = int_to_ptr.vmem [resolvable:$true] %s131
          %137 = dma.hbm_to_vmem [thread:$0]  %s1, 16384, %s132, [#allocation6], 128, 128, 8
        $region16: #{tpu_custom_call.1} parent=11 // pred_fallthru
          _
        // Predicated region
        $region17: #{tpu_custom_call.1} parent=11 // pred_check
          %p138 = pneg %p84
        $region18: #{tpu_custom_call.1} parent=11 // pred_check_branch
          %140 = sbr.rel (%p138) target = $region20
        $region19: #{tpu_custom_call.1} parent=11 // pred_region
          %s142 = ssub.s32 32, 32
          %143 = vsyncadd [#allocation6], %s142
          %s145 = sshll.u32 [#allocation7], 4
          %s146 = int_to_ptr.vmem [resolvable:$true] %s145
          %148 = dma.hbm_to_vmem [thread:$0]  %s2, 32, %s146, [#allocation6]
        $region20: #{tpu_custom_call.1} parent=11 // pred_fallthru
          _
      $region12: #{tpu_custom_call.1} parent=5 // pred_fallthru
        _
      %p149 = scmp.lt.s32.totalorder %s16, 3
      // Predicated region
      $region21: #{tpu_custom_call.1} parent=5 // pred_check
        %p150 = pneg %p149
      $region22: #{tpu_custom_call.1} parent=5 // pred_check_branch
        %152 = sbr.rel (%p150) target = $region24
      $region23: #{tpu_custom_call.1} parent=5 // pred_region
        // Predicated region
        $region25: #{tpu_custom_call.1} parent=23 // pred_check
          %p153 = pneg %p36
        $region26: #{tpu_custom_call.1} parent=23 // pred_check_branch
          %155 = sbr.rel (%p153) target = $region28
        $region27: #{tpu_custom_call.1} parent=23 // pred_region
          %s156 = sand.u32 %s26, 1
          %s157 = scalar_lea.sflag [#allocation3], %s156
          %s158 = sand.u32 %s26, 1
          %s159 = smul.addr %s158, 1024
          %s160 = scalar_lea.vmem [#allocation2], %s159
          %s161 = smul.u32 16, %s16
          %s163 = ssub.s32 16384, 16384
          %164 = vsyncadd %s157, %s163
          %s165 = smul.addr %s161, 8
          %s166 = smul.addr %s165, 128
          %s167 = scalar_lea.hbm %s0, %s166
          %s168 = sshll.u32 %s160, 4
          %s169 = int_to_ptr.vmem [resolvable:$true] %s168
          %174 = dma.hbm_to_vmem [thread:$0]  %s167, 16384, %s169, %s157, 1024, 1024, 64
        $region28: #{tpu_custom_call.1} parent=23 // pred_fallthru
          _
      $region24: #{tpu_custom_call.1} parent=5 // pred_fallthru
        _
      %p175 = scmp.le.s32.totalorder 1, %s16
      %p176 = scmp.lt.s32.totalorder %s16, 4
      %p177 = pnand %p175, %p176
      %p178 = pneg %p177
      // Predicated region
      $region29: #{tpu_custom_call.1} parent=5 // pred_check
        _
      $region30: #{tpu_custom_call.1} parent=5 // pred_check_branch
        %180 = sbr.rel (%p177) target = $region32
      $region31: #{tpu_custom_call.1} parent=5 // pred_region
        %s181 = ssub.s32 %s16, 1
        %s182 = sand.u32 %s29, 1
        %s183 = scalar_lea.sflag [#allocation3], %s182
        %s184 = sand.u32 %s29, 1
        %s185 = smul.addr %s184, 1024
        %s186 = scalar_lea.vmem [#allocation2], %s185
        // Predicated region
        $region33: #{tpu_custom_call.1} parent=31 // pred_check
          %p187 = pneg %p42
        $region34: #{tpu_custom_call.1} parent=31 // pred_check_branch
          %189 = sbr.rel (%p187) target = $region36
        $region35: #{tpu_custom_call.1} parent=31 // pred_region
          %190 = dma.done %s183, 16384
        $region36: #{tpu_custom_call.1} parent=31 // pred_fallthru
          _
        // Predicated region
        $region37: #{tpu_custom_call.1} parent=31 // pred_check
          %p191 = pneg %p63
        $region38: #{tpu_custom_call.1} parent=31 // pred_check_branch
          %193 = sbr.rel (%p191) target = $region40
        $region39: #{tpu_custom_call.1} parent=31 // pred_region
          %194 = dma.done [#allocation6], 16384
        $region40: #{tpu_custom_call.1} parent=31 // pred_fallthru
          _
        // Predicated region
        $region41: #{tpu_custom_call.1} parent=31 // pred_check
          %p195 = pneg %p84
        $region42: #{tpu_custom_call.1} parent=31 // pred_check_branch
          %197 = sbr.rel (%p195) target = $region44
        $region43: #{tpu_custom_call.1} parent=31 // pred_region
          %198 = dma.done [#allocation6], 32
        $region44: #{tpu_custom_call.1} parent=31 // pred_fallthru
          _
        %s199 = sand.u32 %s29, 1
        %s200 = scalar_lea.sflag [#allocation3], %s199
        %s201 = sand.u32 %s29, 1
        %s202 = smul.addr %s201, 1024
        %s203 = scalar_lea.vmem [#allocation2], %s202
        %p204 = pneg %p42
        %p205 = pneg %p39
        %p206 = pneg %p63
        %p207 = pneg %p60
        %p208 = pneg %p84
        %p209 = pneg %p81
        %p210 = pneg %p110
        %p211 = pneg %p107
        %s212 = sand.u32 %s97, 1
        %s213 = scalar_lea.sflag [#allocation4], %s212
        %s214 = sand.u32 %s97, 1
        %s215 = smul.addr %s214, 256
        %s216 = scalar_lea.vmem [#allocation8], %s215
        %s217 = smul.u32 16, %s21
        %s218 = smul.u32 16, %s21
        %v219 = vld [vmem:[%s186] sm:$0xff]
        %v220 = vld [vmem:[%s186 + $0x8] sm:$0xff]
        %v221 = vld [vmem:[%s186 + $0x10] sm:$0xff]
        %v222 = vld [vmem:[%s186 + $0x18] sm:$0xff]
        %v223 = vld [vmem:[%s186 + $0x20] sm:$0xff]
        %v224 = vld [vmem:[%s186 + $0x28] sm:$0xff]
        %v225 = vld [vmem:[%s186 + $0x30] sm:$0xff]
        %v226 = vld [vmem:[%s186 + $0x38] sm:$0xff]
        %v227 = vld [vmem:[%s186 + $0x40] sm:$0xff]
        %v228 = vld [vmem:[%s186 + $0x48] sm:$0xff]
        %v229 = vld [vmem:[%s186 + $0x50] sm:$0xff]
        %v230 = vld [vmem:[%s186 + $0x58] sm:$0xff]
        %v231 = vld [vmem:[%s186 + $0x60] sm:$0xff]
        %v232 = vld [vmem:[%s186 + $0x68] sm:$0xff]
        %v233 = vld [vmem:[%s186 + $0x70] sm:$0xff]
        %v234 = vld [vmem:[%s186 + $0x78] sm:$0xff]
        %v235 = vld [vmem:[%s186 + $0x80] sm:$0xff]
        %v236 = vld [vmem:[%s186 + $0x88] sm:$0xff]
        %v237 = vld [vmem:[%s186 + $0x90] sm:$0xff]
        %v238 = vld [vmem:[%s186 + $0x98] sm:$0xff]
        %v239 = vld [vmem:[%s186 + $0xa0] sm:$0xff]
        %v240 = vld [vmem:[%s186 + $0xa8] sm:$0xff]
        %v241 = vld [vmem:[%s186 + $0xb0] sm:$0xff]
        %v242 = vld [vmem:[%s186 + $0xb8] sm:$0xff]
        %v243 = vld [vmem:[%s186 + $0xc0] sm:$0xff]
        %v244 = vld [vmem:[%s186 + $0xc8] sm:$0xff]
        %v245 = vld [vmem:[%s186 + $0xd0] sm:$0xff]
        %v246 = vld [vmem:[%s186 + $0xd8] sm:$0xff]
        %v247 = vld [vmem:[%s186 + $0xe0] sm:$0xff]
        %v248 = vld [vmem:[%s186 + $0xe8] sm:$0xff]
        %v249 = vld [vmem:[%s186 + $0xf0] sm:$0xff]
        %v250 = vld [vmem:[%s186 + $0xf8] sm:$0xff]
        %v251 = vld [vmem:[%s186 + $0x100] sm:$0xff]
        %v252 = vld [vmem:[%s186 + $0x108] sm:$0xff]
        %v253 = vld [vmem:[%s186 + $0x110] sm:$0xff]
        %v254 = vld [vmem:[%s186 + $0x118] sm:$0xff]
        %v255 = vld [vmem:[%s186 + $0x120] sm:$0xff]
        %v256 = vld [vmem:[%s186 + $0x128] sm:$0xff]
        %v257 = vld [vmem:[%s186 + $0x130] sm:$0xff]
        %v258 = vld [vmem:[%s186 + $0x138] sm:$0xff]
        %v259 = vld [vmem:[%s186 + $0x140] sm:$0xff]
        %v260 = vld [vmem:[%s186 + $0x148] sm:$0xff]
        %v261 = vld [vmem:[%s186 + $0x150] sm:$0xff]
        %v262 = vld [vmem:[%s186 + $0x158] sm:$0xff]
        %v263 = vld [vmem:[%s186 + $0x160] sm:$0xff]
        %v264 = vld [vmem:[%s186 + $0x168] sm:$0xff]
        %v265 = vld [vmem:[%s186 + $0x170] sm:$0xff]
        %v266 = vld [vmem:[%s186 + $0x178] sm:$0xff]
        %v267 = vld [vmem:[%s186 + $0x180] sm:$0xff]
        %v268 = vld [vmem:[%s186 + $0x188] sm:$0xff]
        %v269 = vld [vmem:[%s186 + $0x190] sm:$0xff]
        %v270 = vld [vmem:[%s186 + $0x198] sm:$0xff]
        %v271 = vld [vmem:[%s186 + $0x1a0] sm:$0xff]
        %v272 = vld [vmem:[%s186 + $0x1a8] sm:$0xff]
        %v273 = vld [vmem:[%s186 + $0x1b0] sm:$0xff]
        %v274 = vld [vmem:[%s186 + $0x1b8] sm:$0xff]
        %v275 = vld [vmem:[%s186 + $0x1c0] sm:$0xff]
        %v276 = vld [vmem:[%s186 + $0x1c8] sm:$0xff]
        %v277 = vld [vmem:[%s186 + $0x1d0] sm:$0xff]
        %v278 = vld [vmem:[%s186 + $0x1d8] sm:$0xff]
        %v279 = vld [vmem:[%s186 + $0x1e0] sm:$0xff]
        %v280 = vld [vmem:[%s186 + $0x1e8] sm:$0xff]
        %v281 = vld [vmem:[%s186 + $0x1f0] sm:$0xff]
        %v282 = vld [vmem:[%s186 + $0x1f8] sm:$0xff]
        %v283 = vld [vmem:[%s186 + $0x200] sm:$0xff]
        %v284 = vld [vmem:[%s186 + $0x208] sm:$0xff]
        %v285 = vld [vmem:[%s186 + $0x210] sm:$0xff]
        %v286 = vld [vmem:[%s186 + $0x218] sm:$0xff]
        %v287 = vld [vmem:[%s186 + $0x220] sm:$0xff]
        %v288 = vld [vmem:[%s186 + $0x228] sm:$0xff]
        %v289 = vld [vmem:[%s186 + $0x230] sm:$0xff]
        %v290 = vld [vmem:[%s186 + $0x238] sm:$0xff]
        %v291 = vld [vmem:[%s186 + $0x240] sm:$0xff]
        %v292 = vld [vmem:[%s186 + $0x248] sm:$0xff]
        %v293 = vld [vmem:[%s186 + $0x250] sm:$0xff]
        %v294 = vld [vmem:[%s186 + $0x258] sm:$0xff]
        %v295 = vld [vmem:[%s186 + $0x260] sm:$0xff]
        %v296 = vld [vmem:[%s186 + $0x268] sm:$0xff]
        %v297 = vld [vmem:[%s186 + $0x270] sm:$0xff]
        %v298 = vld [vmem:[%s186 + $0x278] sm:$0xff]
        %v299 = vld [vmem:[%s186 + $0x280] sm:$0xff]
        %v300 = vld [vmem:[%s186 + $0x288] sm:$0xff]
        %v301 = vld [vmem:[%s186 + $0x290] sm:$0xff]
        %v302 = vld [vmem:[%s186 + $0x298] sm:$0xff]
        %v303 = vld [vmem:[%s186 + $0x2a0] sm:$0xff]
        %v304 = vld [vmem:[%s186 + $0x2a8] sm:$0xff]
        %v305 = vld [vmem:[%s186 + $0x2b0] sm:$0xff]
        %v306 = vld [vmem:[%s186 + $0x2b8] sm:$0xff]
        %v307 = vld [vmem:[%s186 + $0x2c0] sm:$0xff]
        %v308 = vld [vmem:[%s186 + $0x2c8] sm:$0xff]
        %v309 = vld [vmem:[%s186 + $0x2d0] sm:$0xff]
        %v310 = vld [vmem:[%s186 + $0x2d8] sm:$0xff]
        %v311 = vld [vmem:[%s186 + $0x2e0] sm:$0xff]
        %v312 = vld [vmem:[%s186 + $0x2e8] sm:$0xff]
        %v313 = vld [vmem:[%s186 + $0x2f0] sm:$0xff]
        %v314 = vld [vmem:[%s186 + $0x2f8] sm:$0xff]
        %v315 = vld [vmem:[%s186 + $0x300] sm:$0xff]
        %v316 = vld [vmem:[%s186 + $0x308] sm:$0xff]
        %v317 = vld [vmem:[%s186 + $0x310] sm:$0xff]
        %v318 = vld [vmem:[%s186 + $0x318] sm:$0xff]
        %v319 = vld [vmem:[%s186 + $0x320] sm:$0xff]
        %v320 = vld [vmem:[%s186 + $0x328] sm:$0xff]
        %v321 = vld [vmem:[%s186 + $0x330] sm:$0xff]
        %v322 = vld [vmem:[%s186 + $0x338] sm:$0xff]
        %v323 = vld [vmem:[%s186 + $0x340] sm:$0xff]
        %v324 = vld [vmem:[%s186 + $0x348] sm:$0xff]
        %v325 = vld [vmem:[%s186 + $0x350] sm:$0xff]
        %v326 = vld [vmem:[%s186 + $0x358] sm:$0xff]
        %v327 = vld [vmem:[%s186 + $0x360] sm:$0xff]
        %v328 = vld [vmem:[%s186 + $0x368] sm:$0xff]
        %v329 = vld [vmem:[%s186 + $0x370] sm:$0xff]
        %v330 = vld [vmem:[%s186 + $0x378] sm:$0xff]
        %v331 = vld [vmem:[%s186 + $0x380] sm:$0xff]
        %v332 = vld [vmem:[%s186 + $0x388] sm:$0xff]
        %v333 = vld [vmem:[%s186 + $0x390] sm:$0xff]
        %v334 = vld [vmem:[%s186 + $0x398] sm:$0xff]
        %v335 = vld [vmem:[%s186 + $0x3a0] sm:$0xff]
        %v336 = vld [vmem:[%s186 + $0x3a8] sm:$0xff]
        %v337 = vld [vmem:[%s186 + $0x3b0] sm:$0xff]
        %v338 = vld [vmem:[%s186 + $0x3b8] sm:$0xff]
        %v339 = vld [vmem:[%s186 + $0x3c0] sm:$0xff]
        %v340 = vld [vmem:[%s186 + $0x3c8] sm:$0xff]
        %v341 = vld [vmem:[%s186 + $0x3d0] sm:$0xff]
        %v342 = vld [vmem:[%s186 + $0x3d8] sm:$0xff]
        %v343 = vld [vmem:[%s186 + $0x3e0] sm:$0xff]
        %v344 = vld [vmem:[%s186 + $0x3e8] sm:$0xff]
        %v345 = vld [vmem:[%s186 + $0x3f0] sm:$0xff]
        %v346 = vld [vmem:[%s186 + $0x3f8] sm:$0xff]
        %v347 = vmul.f32 %v219, 0.7978846
        %v348 = vmul.f32 %v220, 0.7978846
        %v349 = vmul.f32 %v221, 0.7978846
        %v350 = vmul.f32 %v222, 0.7978846
        %v351 = vmul.f32 %v223, 0.7978846
        %v352 = vmul.f32 %v224, 0.7978846
        %v353 = vmul.f32 %v225, 0.7978846
        %v354 = vmul.f32 %v226, 0.7978846
        %v355 = vmul.f32 %v227, 0.7978846
        %v356 = vmul.f32 %v228, 0.7978846
        %v357 = vmul.f32 %v229, 0.7978846
        %v358 = vmul.f32 %v230, 0.7978846
        %v359 = vmul.f32 %v231, 0.7978846
        %v360 = vmul.f32 %v232, 0.7978846
        %v361 = vmul.f32 %v233, 0.7978846
        %v362 = vmul.f32 %v234, 0.7978846
        %v363 = vmul.f32 %v235, 0.7978846
        %v364 = vmul.f32 %v236, 0.7978846
        %v365 = vmul.f32 %v237, 0.7978846
        %v366 = vmul.f32 %v238, 0.7978846
        %v367 = vmul.f32 %v239, 0.7978846
        %v368 = vmul.f32 %v240, 0.7978846
        %v369 = vmul.f32 %v241, 0.7978846
        %v370 = vmul.f32 %v242, 0.7978846
        %v371 = vmul.f32 %v243, 0.7978846
        %v372 = vmul.f32 %v244, 0.7978846
        %v373 = vmul.f32 %v245, 0.7978846
        %v374 = vmul.f32 %v246, 0.7978846
        %v375 = vmul.f32 %v247, 0.7978846
        %v376 = vmul.f32 %v248, 0.7978846
        %v377 = vmul.f32 %v249, 0.7978846
        %v378 = vmul.f32 %v250, 0.7978846
        %v379 = vmul.f32 %v251, 0.7978846
        %v380 = vmul.f32 %v252, 0.7978846
        %v381 = vmul.f32 %v253, 0.7978846
        %v382 = vmul.f32 %v254, 0.7978846
        %v383 = vmul.f32 %v255, 0.7978846
        %v384 = vmul.f32 %v256, 0.7978846
        %v385 = vmul.f32 %v257, 0.7978846
        %v386 = vmul.f32 %v258, 0.7978846
        %v387 = vmul.f32 %v259, 0.7978846
        %v388 = vmul.f32 %v260, 0.7978846
        %v389 = vmul.f32 %v261, 0.7978846
        %v390 = vmul.f32 %v262, 0.7978846
        %v391 = vmul.f32 %v263, 0.7978846
        %v392 = vmul.f32 %v264, 0.7978846
        %v393 = vmul.f32 %v265, 0.7978846
        %v394 = vmul.f32 %v266, 0.7978846
        %v395 = vmul.f32 %v267, 0.7978846
        %v396 = vmul.f32 %v268, 0.7978846
        %v397 = vmul.f32 %v269, 0.7978846
        %v398 = vmul.f32 %v270, 0.7978846
        %v399 = vmul.f32 %v271, 0.7978846
        %v400 = vmul.f32 %v272, 0.7978846
        %v401 = vmul.f32 %v273, 0.7978846
        %v402 = vmul.f32 %v274, 0.7978846
        %v403 = vmul.f32 %v275, 0.7978846
        %v404 = vmul.f32 %v276, 0.7978846
        %v405 = vmul.f32 %v277, 0.7978846
        %v406 = vmul.f32 %v278, 0.7978846
        %v407 = vmul.f32 %v279, 0.7978846
        %v408 = vmul.f32 %v280, 0.7978846
        %v409 = vmul.f32 %v281, 0.7978846
        %v410 = vmul.f32 %v282, 0.7978846
        %v411 = vmul.f32 %v283, 0.7978846
        %v412 = vmul.f32 %v284, 0.7978846
        %v413 = vmul.f32 %v285, 0.7978846
        %v414 = vmul.f32 %v286, 0.7978846
        %v415 = vmul.f32 %v287, 0.7978846
        %v416 = vmul.f32 %v288, 0.7978846
        %v417 = vmul.f32 %v289, 0.7978846
        %v418 = vmul.f32 %v290, 0.7978846
        %v419 = vmul.f32 %v291, 0.7978846
        %v420 = vmul.f32 %v292, 0.7978846
        %v421 = vmul.f32 %v293, 0.7978846
        %v422 = vmul.f32 %v294, 0.7978846
        %v423 = vmul.f32 %v295, 0.7978846
        %v424 = vmul.f32 %v296, 0.7978846
        %v425 = vmul.f32 %v297, 0.7978846
        %v426 = vmul.f32 %v298, 0.7978846
        %v427 = vmul.f32 %v299, 0.7978846
        %v428 = vmul.f32 %v300, 0.7978846
        %v429 = vmul.f32 %v301, 0.7978846
        %v430 = vmul.f32 %v302, 0.7978846
        %v431 = vmul.f32 %v303, 0.7978846
        %v432 = vmul.f32 %v304, 0.7978846
        %v433 = vmul.f32 %v305, 0.7978846
        %v434 = vmul.f32 %v306, 0.7978846
        %v435 = vmul.f32 %v307, 0.7978846
        %v436 = vmul.f32 %v308, 0.7978846
        %v437 = vmul.f32 %v309, 0.7978846
        %v438 = vmul.f32 %v310, 0.7978846
        %v439 = vmul.f32 %v311, 0.7978846
        %v440 = vmul.f32 %v312, 0.7978846
        %v441 = vmul.f32 %v313, 0.7978846
        %v442 = vmul.f32 %v314, 0.7978846
        %v443 = vmul.f32 %v315, 0.7978846
        %v444 = vmul.f32 %v316, 0.7978846
        %v445 = vmul.f32 %v317, 0.7978846
        %v446 = vmul.f32 %v318, 0.7978846
        %v447 = vmul.f32 %v319, 0.7978846
        %v448 = vmul.f32 %v320, 0.7978846
        %v449 = vmul.f32 %v321, 0.7978846
        %v450 = vmul.f32 %v322, 0.7978846
        %v451 = vmul.f32 %v323, 0.7978846
        %v452 = vmul.f32 %v324, 0.7978846
        %v453 = vmul.f32 %v325, 0.7978846
        %v454 = vmul.f32 %v326, 0.7978846
        %v455 = vmul.f32 %v327, 0.7978846
        %v456 = vmul.f32 %v328, 0.7978846
        %v457 = vmul.f32 %v329, 0.7978846
        %v458 = vmul.f32 %v330, 0.7978846
        %v459 = vmul.f32 %v331, 0.7978846
        %v460 = vmul.f32 %v332, 0.7978846
        %v461 = vmul.f32 %v333, 0.7978846
        %v462 = vmul.f32 %v334, 0.7978846
        %v463 = vmul.f32 %v335, 0.7978846
        %v464 = vmul.f32 %v336, 0.7978846
        %v465 = vmul.f32 %v337, 0.7978846
        %v466 = vmul.f32 %v338, 0.7978846
        %v467 = vmul.f32 %v339, 0.7978846
        %v468 = vmul.f32 %v340, 0.7978846
        %v469 = vmul.f32 %v341, 0.7978846
        %v470 = vmul.f32 %v342, 0.7978846
        %v471 = vmul.f32 %v343, 0.7978846
        %v472 = vmul.f32 %v344, 0.7978846
        %v473 = vmul.f32 %v345, 0.7978846
        %v474 = vmul.f32 %v346, 0.7978846
        %v475 = vmul.f32 %v219, %v219
        %v476 = vmul.f32 %v220, %v220
        %v477 = vmul.f32 %v221, %v221
        %v478 = vmul.f32 %v222, %v222
        %v479 = vmul.f32 %v223, %v223
        %v480 = vmul.f32 %v224, %v224
        %v481 = vmul.f32 %v225, %v225
        %v482 = vmul.f32 %v226, %v226
        %v483 = vmul.f32 %v227, %v227
        %v484 = vmul.f32 %v228, %v228
        %v485 = vmul.f32 %v229, %v229
        %v486 = vmul.f32 %v230, %v230
        %v487 = vmul.f32 %v231, %v231
        %v488 = vmul.f32 %v232, %v232
        %v489 = vmul.f32 %v233, %v233
        %v490 = vmul.f32 %v234, %v234
        %v491 = vmul.f32 %v235, %v235
        %v492 = vmul.f32 %v236, %v236
        %v493 = vmul.f32 %v237, %v237
        %v494 = vmul.f32 %v238, %v238
        %v495 = vmul.f32 %v239, %v239
        %v496 = vmul.f32 %v240, %v240
        %v497 = vmul.f32 %v241, %v241
        %v498 = vmul.f32 %v242, %v242
        %v499 = vmul.f32 %v243, %v243
        %v500 = vmul.f32 %v244, %v244
        %v501 = vmul.f32 %v245, %v245
        %v502 = vmul.f32 %v246, %v246
        %v503 = vmul.f32 %v247, %v247
        %v504 = vmul.f32 %v248, %v248
        %v505 = vmul.f32 %v249, %v249
        %v506 = vmul.f32 %v250, %v250
        %v507 = vmul.f32 %v251, %v251
        %v508 = vmul.f32 %v252, %v252
        %v509 = vmul.f32 %v253, %v253
        %v510 = vmul.f32 %v254, %v254
        %v511 = vmul.f32 %v255, %v255
        %v512 = vmul.f32 %v256, %v256
        %v513 = vmul.f32 %v257, %v257
        %v514 = vmul.f32 %v258, %v258
        %v515 = vmul.f32 %v259, %v259
        %v516 = vmul.f32 %v260, %v260
        %v517 = vmul.f32 %v261, %v261
        %v518 = vmul.f32 %v262, %v262
        %v519 = vmul.f32 %v263, %v263
        %v520 = vmul.f32 %v264, %v264
        %v521 = vmul.f32 %v265, %v265
        %v522 = vmul.f32 %v266, %v266
        %v523 = vmul.f32 %v267, %v267
        %v524 = vmul.f32 %v268, %v268
        %v525 = vmul.f32 %v269, %v269
        %v526 = vmul.f32 %v270, %v270
        %v527 = vmul.f32 %v271, %v271
        %v528 = vmul.f32 %v272, %v272
        %v529 = vmul.f32 %v273, %v273
        %v530 = vmul.f32 %v274, %v274
        %v531 = vmul.f32 %v275, %v275
        %v532 = vmul.f32 %v276, %v276
        %v533 = vmul.f32 %v277, %v277
        %v534 = vmul.f32 %v278, %v278
        %v535 = vmul.f32 %v279, %v279
        %v536 = vmul.f32 %v280, %v280
        %v537 = vmul.f32 %v281, %v281
        %v538 = vmul.f32 %v282, %v282
        %v539 = vmul.f32 %v283, %v283
        %v540 = vmul.f32 %v284, %v284
        %v541 = vmul.f32 %v285, %v285
        %v542 = vmul.f32 %v286, %v286
        %v543 = vmul.f32 %v287, %v287
        %v544 = vmul.f32 %v288, %v288
        %v545 = vmul.f32 %v289, %v289
        %v546 = vmul.f32 %v290, %v290
        %v547 = vmul.f32 %v291, %v291
        %v548 = vmul.f32 %v292, %v292
        %v549 = vmul.f32 %v293, %v293
        %v550 = vmul.f32 %v294, %v294
        %v551 = vmul.f32 %v295, %v295
        %v552 = vmul.f32 %v296, %v296
        %v553 = vmul.f32 %v297, %v297
        %v554 = vmul.f32 %v298, %v298
        %v555 = vmul.f32 %v299, %v299
        %v556 = vmul.f32 %v300, %v300
        %v557 = vmul.f32 %v301, %v301
        %v558 = vmul.f32 %v302, %v302
        %v559 = vmul.f32 %v303, %v303
        %v560 = vmul.f32 %v304, %v304
        %v561 = vmul.f32 %v305, %v305
        %v562 = vmul.f32 %v306, %v306
        %v563 = vmul.f32 %v307, %v307
        %v564 = vmul.f32 %v308, %v308
        %v565 = vmul.f32 %v309, %v309
        %v566 = vmul.f32 %v310, %v310
        %v567 = vmul.f32 %v311, %v311
        %v568 = vmul.f32 %v312, %v312
        %v569 = vmul.f32 %v313, %v313
        %v570 = vmul.f32 %v314, %v314
        %v571 = vmul.f32 %v315, %v315
        %v572 = vmul.f32 %v316, %v316
        %v573 = vmul.f32 %v317, %v317
        %v574 = vmul.f32 %v318, %v318
        %v575 = vmul.f32 %v319, %v319
        %v576 = vmul.f32 %v320, %v320
        %v577 = vmul.f32 %v321, %v321
        %v578 = vmul.f32 %v322, %v322
        %v579 = vmul.f32 %v323, %v323
        %v580 = vmul.f32 %v324, %v324
        %v581 = vmul.f32 %v325, %v325
        %v582 = vmul.f32 %v326, %v326
        %v583 = vmul.f32 %v327, %v327
        %v584 = vmul.f32 %v328, %v328
        %v585 = vmul.f32 %v329, %v329
        %v586 = vmul.f32 %v330, %v330
        %v587 = vmul.f32 %v331, %v331
        %v588 = vmul.f32 %v332, %v332
        %v589 = vmul.f32 %v333, %v333
        %v590 = vmul.f32 %v334, %v334
        %v591 = vmul.f32 %v335, %v335
        %v592 = vmul.f32 %v336, %v336
        %v593 = vmul.f32 %v337, %v337
        %v594 = vmul.f32 %v338, %v338
        %v595 = vmul.f32 %v339, %v339
        %v596 = vmul.f32 %v340, %v340
        %v597 = vmul.f32 %v341, %v341
        %v598 = vmul.f32 %v342, %v342
        %v599 = vmul.f32 %v343, %v343
        %v600 = vmul.f32 %v344, %v344
        %v601 = vmul.f32 %v345, %v345
        %v602 = vmul.f32 %v346, %v346
        %v603 = vmul.f32 %v475, 0.044715
        %v604 = vmul.f32 %v476, 0.044715
        %v605 = vmul.f32 %v477, 0.044715
        %v606 = vmul.f32 %v478, 0.044715
        %v607 = vmul.f32 %v479, 0.044715
        %v608 = vmul.f32 %v480, 0.044715
        %v609 = vmul.f32 %v481, 0.044715
        %v610 = vmul.f32 %v482, 0.044715
        %v611 = vmul.f32 %v483, 0.044715
        %v612 = vmul.f32 %v484, 0.044715
        %v613 = vmul.f32 %v485, 0.044715
        %v614 = vmul.f32 %v486, 0.044715
        %v615 = vmul.f32 %v487, 0.044715
        %v616 = vmul.f32 %v488, 0.044715
        %v617 = vmul.f32 %v489, 0.044715
        %v618 = vmul.f32 %v490, 0.044715
        %v619 = vmul.f32 %v491, 0.044715
        %v620 = vmul.f32 %v492, 0.044715
        %v621 = vmul.f32 %v493, 0.044715
        %v622 = vmul.f32 %v494, 0.044715
        %v623 = vmul.f32 %v495, 0.044715
        %v624 = vmul.f32 %v496, 0.044715
        %v625 = vmul.f32 %v497, 0.044715
        %v626 = vmul.f32 %v498, 0.044715
        %v627 = vmul.f32 %v499, 0.044715
        %v628 = vmul.f32 %v500, 0.044715
        %v629 = vmul.f32 %v501, 0.044715
        %v630 = vmul.f32 %v502, 0.044715
        %v631 = vmul.f32 %v503, 0.044715
        %v632 = vmul.f32 %v504, 0.044715
        %v633 = vmul.f32 %v505, 0.044715
        %v634 = vmul.f32 %v506, 0.044715
        %v635 = vmul.f32 %v507, 0.044715
        %v636 = vmul.f32 %v508, 0.044715
        %v637 = vmul.f32 %v509, 0.044715
        %v638 = vmul.f32 %v510, 0.044715
        %v639 = vmul.f32 %v511, 0.044715
        %v640 = vmul.f32 %v512, 0.044715
        %v641 = vmul.f32 %v513, 0.044715
        %v642 = vmul.f32 %v514, 0.044715
        %v643 = vmul.f32 %v515, 0.044715
        %v644 = vmul.f32 %v516, 0.044715
        %v645 = vmul.f32 %v517, 0.044715
        %v646 = vmul.f32 %v518, 0.044715
        %v647 = vmul.f32 %v519, 0.044715
        %v648 = vmul.f32 %v520, 0.044715
        %v649 = vmul.f32 %v521, 0.044715
        %v650 = vmul.f32 %v522, 0.044715
        %v651 = vmul.f32 %v523, 0.044715
        %v652 = vmul.f32 %v524, 0.044715
        %v653 = vmul.f32 %v525, 0.044715
        %v654 = vmul.f32 %v526, 0.044715
        %v655 = vmul.f32 %v527, 0.044715
        %v656 = vmul.f32 %v528, 0.044715
        %v657 = vmul.f32 %v529, 0.044715
        %v658 = vmul.f32 %v530, 0.044715
        %v659 = vmul.f32 %v531, 0.044715
        %v660 = vmul.f32 %v532, 0.044715
        %v661 = vmul.f32 %v533, 0.044715
        %v662 = vmul.f32 %v534, 0.044715
        %v663 = vmul.f32 %v535, 0.044715
        %v664 = vmul.f32 %v536, 0.044715
        %v665 = vmul.f32 %v537, 0.044715
        %v666 = vmul.f32 %v538, 0.044715
        %v667 = vmul.f32 %v539, 0.044715
        %v668 = vmul.f32 %v540, 0.044715
        %v669 = vmul.f32 %v541, 0.044715
        %v670 = vmul.f32 %v542, 0.044715
        %v671 = vmul.f32 %v543, 0.044715
        %v672 = vmul.f32 %v544, 0.044715
        %v673 = vmul.f32 %v545, 0.044715
        %v674 = vmul.f32 %v546, 0.044715
        %v675 = vmul.f32 %v547, 0.044715
        %v676 = vmul.f32 %v548, 0.044715
        %v677 = vmul.f32 %v549, 0.044715
        %v678 = vmul.f32 %v550, 0.044715
        %v679 = vmul.f32 %v551, 0.044715
        %v680 = vmul.f32 %v552, 0.044715
        %v681 = vmul.f32 %v553, 0.044715
        %v682 = vmul.f32 %v554, 0.044715
        %v683 = vmul.f32 %v555, 0.044715
        %v684 = vmul.f32 %v556, 0.044715
        %v685 = vmul.f32 %v557, 0.044715
        %v686 = vmul.f32 %v558, 0.044715
        %v687 = vmul.f32 %v559, 0.044715
        %v688 = vmul.f32 %v560, 0.044715
        %v689 = vmul.f32 %v561, 0.044715
        %v690 = vmul.f32 %v562, 0.044715
        %v691 = vmul.f32 %v563, 0.044715
        %v692 = vmul.f32 %v564, 0.044715
        %v693 = vmul.f32 %v565, 0.044715
        %v694 = vmul.f32 %v566, 0.044715
        %v695 = vmul.f32 %v567, 0.044715
        %v696 = vmul.f32 %v568, 0.044715
        %v697 = vmul.f32 %v569, 0.044715
        %v698 = vmul.f32 %v570, 0.044715
        %v699 = vmul.f32 %v571, 0.044715
        %v700 = vmul.f32 %v572, 0.044715
        %v701 = vmul.f32 %v573, 0.044715
        %v702 = vmul.f32 %v574, 0.044715
        %v703 = vmul.f32 %v575, 0.044715
        %v704 = vmul.f32 %v576, 0.044715
        %v705 = vmul.f32 %v577, 0.044715
        %v706 = vmul.f32 %v578, 0.044715
        %v707 = vmul.f32 %v579, 0.044715
        %v708 = vmul.f32 %v580, 0.044715
        %v709 = vmul.f32 %v581, 0.044715
        %v710 = vmul.f32 %v582, 0.044715
        %v711 = vmul.f32 %v583, 0.044715
        %v712 = vmul.f32 %v584, 0.044715
        %v713 = vmul.f32 %v585, 0.044715
        %v714 = vmul.f32 %v586, 0.044715
        %v715 = vmul.f32 %v587, 0.044715
        %v716 = vmul.f32 %v588, 0.044715
        %v717 = vmul.f32 %v589, 0.044715
        %v718 = vmul.f32 %v590, 0.044715
        %v719 = vmul.f32 %v591, 0.044715
        %v720 = vmul.f32 %v592, 0.044715
        %v721 = vmul.f32 %v593, 0.044715
        %v722 = vmul.f32 %v594, 0.044715
        %v723 = vmul.f32 %v595, 0.044715
        %v724 = vmul.f32 %v596, 0.044715
        %v725 = vmul.f32 %v597, 0.044715
        %v726 = vmul.f32 %v598, 0.044715
        %v727 = vmul.f32 %v599, 0.044715
        %v728 = vmul.f32 %v600, 0.044715
        %v729 = vmul.f32 %v601, 0.044715
        %v730 = vmul.f32 %v602, 0.044715
        %v731 = vadd.f32 %v603, 1.0
        %v732 = vadd.f32 %v604, 1.0
        %v733 = vadd.f32 %v605, 1.0
        %v734 = vadd.f32 %v606, 1.0
        %v735 = vadd.f32 %v607, 1.0
        %v736 = vadd.f32 %v608, 1.0
        %v737 = vadd.f32 %v609, 1.0
        %v738 = vadd.f32 %v610, 1.0
        %v739 = vadd.f32 %v611, 1.0
        %v740 = vadd.f32 %v612, 1.0
        %v741 = vadd.f32 %v613, 1.0
        %v742 = vadd.f32 %v614, 1.0
        %v743 = vadd.f32 %v615, 1.0
        %v744 = vadd.f32 %v616, 1.0
        %v745 = vadd.f32 %v617, 1.0
        %v746 = vadd.f32 %v618, 1.0
        %v747 = vadd.f32 %v619, 1.0
        %v748 = vadd.f32 %v620, 1.0
        %v749 = vadd.f32 %v621, 1.0
        %v750 = vadd.f32 %v622, 1.0
        %v751 = vadd.f32 %v623, 1.0
        %v752 = vadd.f32 %v624, 1.0
        %v753 = vadd.f32 %v625, 1.0
        %v754 = vadd.f32 %v626, 1.0
        %v755 = vadd.f32 %v627, 1.0
        %v756 = vadd.f32 %v628, 1.0
        %v757 = vadd.f32 %v629, 1.0
        %v758 = vadd.f32 %v630, 1.0
        %v759 = vadd.f32 %v631, 1.0
        %v760 = vadd.f32 %v632, 1.0
        %v761 = vadd.f32 %v633, 1.0
        %v762 = vadd.f32 %v634, 1.0
        %v763 = vadd.f32 %v635, 1.0
        %v764 = vadd.f32 %v636, 1.0
        %v765 = vadd.f32 %v637, 1.0
        %v766 = vadd.f32 %v638, 1.0
        %v767 = vadd.f32 %v639, 1.0
        %v768 = vadd.f32 %v640, 1.0
        %v769 = vadd.f32 %v641, 1.0
        %v770 = vadd.f32 %v642, 1.0
        %v771 = vadd.f32 %v643, 1.0
        %v772 = vadd.f32 %v644, 1.0
        %v773 = vadd.f32 %v645, 1.0
        %v774 = vadd.f32 %v646, 1.0
        %v775 = vadd.f32 %v647, 1.0
        %v776 = vadd.f32 %v648, 1.0
        %v777 = vadd.f32 %v649, 1.0
        %v778 = vadd.f32 %v650, 1.0
        %v779 = vadd.f32 %v651, 1.0
        %v780 = vadd.f32 %v652, 1.0
        %v781 = vadd.f32 %v653, 1.0
        %v782 = vadd.f32 %v654, 1.0
        %v783 = vadd.f32 %v655, 1.0
        %v784 = vadd.f32 %v656, 1.0
        %v785 = vadd.f32 %v657, 1.0
        %v786 = vadd.f32 %v658, 1.0
        %v787 = vadd.f32 %v659, 1.0
        %v788 = vadd.f32 %v660, 1.0
        %v789 = vadd.f32 %v661, 1.0
        %v790 = vadd.f32 %v662, 1.0
        %v791 = vadd.f32 %v663, 1.0
        %v792 = vadd.f32 %v664, 1.0
        %v793 = vadd.f32 %v665, 1.0
        %v794 = vadd.f32 %v666, 1.0
        %v795 = vadd.f32 %v667, 1.0
        %v796 = vadd.f32 %v668, 1.0
        %v797 = vadd.f32 %v669, 1.0
        %v798 = vadd.f32 %v670, 1.0
        %v799 = vadd.f32 %v671, 1.0
        %v800 = vadd.f32 %v672, 1.0
        %v801 = vadd.f32 %v673, 1.0
        %v802 = vadd.f32 %v674, 1.0
        %v803 = vadd.f32 %v675, 1.0
        %v804 = vadd.f32 %v676, 1.0
        %v805 = vadd.f32 %v677, 1.0
        %v806 = vadd.f32 %v678, 1.0
        %v807 = vadd.f32 %v679, 1.0
        %v808 = vadd.f32 %v680, 1.0
        %v809 = vadd.f32 %v681, 1.0
        %v810 = vadd.f32 %v682, 1.0
        %v811 = vadd.f32 %v683, 1.0
        %v812 = vadd.f32 %v684, 1.0
        %v813 = vadd.f32 %v685, 1.0
        %v814 = vadd.f32 %v686, 1.0
        %v815 = vadd.f32 %v687, 1.0
        %v816 = vadd.f32 %v688, 1.0
        %v817 = vadd.f32 %v689, 1.0
        %v818 = vadd.f32 %v690, 1.0
        %v819 = vadd.f32 %v691, 1.0
        %v820 = vadd.f32 %v692, 1.0
        %v821 = vadd.f32 %v693, 1.0
        %v822 = vadd.f32 %v694, 1.0
        %v823 = vadd.f32 %v695, 1.0
        %v824 = vadd.f32 %v696, 1.0
        %v825 = vadd.f32 %v697, 1.0
        %v826 = vadd.f32 %v698, 1.0
        %v827 = vadd.f32 %v699, 1.0
        %v828 = vadd.f32 %v700, 1.0
        %v829 = vadd.f32 %v701, 1.0
        %v830 = vadd.f32 %v702, 1.0
        %v831 = vadd.f32 %v703, 1.0
        %v832 = vadd.f32 %v704, 1.0
        %v833 = vadd.f32 %v705, 1.0
        %v834 = vadd.f32 %v706, 1.0
        %v835 = vadd.f32 %v707, 1.0
        %v836 = vadd.f32 %v708, 1.0
        %v837 = vadd.f32 %v709, 1.0
        %v838 = vadd.f32 %v710, 1.0
        %v839 = vadd.f32 %v711, 1.0
        %v840 = vadd.f32 %v712, 1.0
        %v841 = vadd.f32 %v713, 1.0
        %v842 = vadd.f32 %v714, 1.0
        %v843 = vadd.f32 %v715, 1.0
        %v844 = vadd.f32 %v716, 1.0
        %v845 = vadd.f32 %v717, 1.0
        %v846 = vadd.f32 %v718, 1.0
        %v847 = vadd.f32 %v719, 1.0
        %v848 = vadd.f32 %v720, 1.0
        %v849 = vadd.f32 %v721, 1.0
        %v850 = vadd.f32 %v722, 1.0
        %v851 = vadd.f32 %v723, 1.0
        %v852 = vadd.f32 %v724, 1.0
        %v853 = vadd.f32 %v725, 1.0
        %v854 = vadd.f32 %v726, 1.0
        %v855 = vadd.f32 %v727, 1.0
        %v856 = vadd.f32 %v728, 1.0
        %v857 = vadd.f32 %v729, 1.0
        %v858 = vadd.f32 %v730, 1.0
        %v859 = vmul.f32 %v347, %v731
        %v860 = vmul.f32 %v348, %v732
        %v861 = vmul.f32 %v349, %v733
        %v862 = vmul.f32 %v350, %v734
        %v863 = vmul.f32 %v351, %v735
        %v864 = vmul.f32 %v352, %v736
        %v865 = vmul.f32 %v353, %v737
        %v866 = vmul.f32 %v354, %v738
        %v867 = vmul.f32 %v355, %v739
        %v868 = vmul.f32 %v356, %v740
        %v869 = vmul.f32 %v357, %v741
        %v870 = vmul.f32 %v358, %v742
        %v871 = vmul.f32 %v359, %v743
        %v872 = vmul.f32 %v360, %v744
        %v873 = vmul.f32 %v361, %v745
        %v874 = vmul.f32 %v362, %v746
        %v875 = vmul.f32 %v363, %v747
        %v876 = vmul.f32 %v364, %v748
        %v877 = vmul.f32 %v365, %v749
        %v878 = vmul.f32 %v366, %v750
        %v879 = vmul.f32 %v367, %v751
        %v880 = vmul.f32 %v368, %v752
        %v881 = vmul.f32 %v369, %v753
        %v882 = vmul.f32 %v370, %v754
        %v883 = vmul.f32 %v371, %v755
        %v884 = vmul.f32 %v372, %v756
        %v885 = vmul.f32 %v373, %v757
        %v886 = vmul.f32 %v374, %v758
        %v887 = vmul.f32 %v375, %v759
        %v888 = vmul.f32 %v376, %v760
        %v889 = vmul.f32 %v377, %v761
        %v890 = vmul.f32 %v378, %v762
        %v891 = vmul.f32 %v379, %v763
        %v892 = vmul.f32 %v380, %v764
        %v893 = vmul.f32 %v381, %v765
        %v894 = vmul.f32 %v382, %v766
        %v895 = vmul.f32 %v383, %v767
        %v896 = vmul.f32 %v384, %v768
        %v897 = vmul.f32 %v385, %v769
        %v898 = vmul.f32 %v386, %v770
        %v899 = vmul.f32 %v387, %v771
        %v900 = vmul.f32 %v388, %v772
        %v901 = vmul.f32 %v389, %v773
        %v902 = vmul.f32 %v390, %v774
        %v903 = vmul.f32 %v391, %v775
        %v904 = vmul.f32 %v392, %v776
        %v905 = vmul.f32 %v393, %v777
        %v906 = vmul.f32 %v394, %v778
        %v907 = vmul.f32 %v395, %v779
        %v908 = vmul.f32 %v396, %v780
        %v909 = vmul.f32 %v397, %v781
        %v910 = vmul.f32 %v398, %v782
        %v911 = vmul.f32 %v399, %v783
        %v912 = vmul.f32 %v400, %v784
        %v913 = vmul.f32 %v401, %v785
        %v914 = vmul.f32 %v402, %v786
        %v915 = vmul.f32 %v403, %v787
        %v916 = vmul.f32 %v404, %v788
        %v917 = vmul.f32 %v405, %v789
        %v918 = vmul.f32 %v406, %v790
        %v919 = vmul.f32 %v407, %v791
        %v920 = vmul.f32 %v408, %v792
        %v921 = vmul.f32 %v409, %v793
        %v922 = vmul.f32 %v410, %v794
        %v923 = vmul.f32 %v411, %v795
        %v924 = vmul.f32 %v412, %v796
        %v925 = vmul.f32 %v413, %v797
        %v926 = vmul.f32 %v414, %v798
        %v927 = vmul.f32 %v415, %v799
        %v928 = vmul.f32 %v416, %v800
        %v929 = vmul.f32 %v417, %v801
        %v930 = vmul.f32 %v418, %v802
        %v931 = vmul.f32 %v419, %v803
        %v932 = vmul.f32 %v420, %v804
        %v933 = vmul.f32 %v421, %v805
        %v934 = vmul.f32 %v422, %v806
        %v935 = vmul.f32 %v423, %v807
        %v936 = vmul.f32 %v424, %v808
        %v937 = vmul.f32 %v425, %v809
        %v938 = vmul.f32 %v426, %v810
        %v939 = vmul.f32 %v427, %v811
        %v940 = vmul.f32 %v428, %v812
        %v941 = vmul.f32 %v429, %v813
        %v942 = vmul.f32 %v430, %v814
        %v943 = vmul.f32 %v431, %v815
        %v944 = vmul.f32 %v432, %v816
        %v945 = vmul.f32 %v433, %v817
        %v946 = vmul.f32 %v434, %v818
        %v947 = vmul.f32 %v435, %v819
        %v948 = vmul.f32 %v436, %v820
        %v949 = vmul.f32 %v437, %v821
        %v950 = vmul.f32 %v438, %v822
        %v951 = vmul.f32 %v439, %v823
        %v952 = vmul.f32 %v440, %v824
        %v953 = vmul.f32 %v441, %v825
        %v954 = vmul.f32 %v442, %v826
        %v955 = vmul.f32 %v443, %v827
        %v956 = vmul.f32 %v444, %v828
        %v957 = vmul.f32 %v445, %v829
        %v958 = vmul.f32 %v446, %v830
        %v959 = vmul.f32 %v447, %v831
        %v960 = vmul.f32 %v448, %v832
        %v961 = vmul.f32 %v449, %v833
        %v962 = vmul.f32 %v450, %v834
        %v963 = vmul.f32 %v451, %v835
        %v964 = vmul.f32 %v452, %v836
        %v965 = vmul.f32 %v453, %v837
        %v966 = vmul.f32 %v454, %v838
        %v967 = vmul.f32 %v455, %v839
        %v968 = vmul.f32 %v456, %v840
        %v969 = vmul.f32 %v457, %v841
        %v970 = vmul.f32 %v458, %v842
        %v971 = vmul.f32 %v459, %v843
        %v972 = vmul.f32 %v460, %v844
        %v973 = vmul.f32 %v461, %v845
        %v974 = vmul.f32 %v462, %v846
        %v975 = vmul.f32 %v463, %v847
        %v976 = vmul.f32 %v464, %v848
        %v977 = vmul.f32 %v465, %v849
        %v978 = vmul.f32 %v466, %v850
        %v979 = vmul.f32 %v467, %v851
        %v980 = vmul.f32 %v468, %v852
        %v981 = vmul.f32 %v469, %v853
        %v982 = vmul.f32 %v470, %v854
        %v983 = vmul.f32 %v471, %v855
        %v984 = vmul.f32 %v472, %v856
        %v985 = vmul.f32 %v473, %v857
        %v986 = vmul.f32 %v474, %v858
        %v987 = vmul.f32 %v219, 0.5
        %v988 = vmul.f32 %v220, 0.5
        %v989 = vmul.f32 %v221, 0.5
        %v990 = vmul.f32 %v222, 0.5
        %v991 = vmul.f32 %v223, 0.5
        %v992 = vmul.f32 %v224, 0.5
        %v993 = vmul.f32 %v225, 0.5
        %v994 = vmul.f32 %v226, 0.5
        %v995 = vmul.f32 %v227, 0.5
        %v996 = vmul.f32 %v228, 0.5
        %v997 = vmul.f32 %v229, 0.5
        %v998 = vmul.f32 %v230, 0.5
        %v999 = vmul.f32 %v231, 0.5
        %v1000 = vmul.f32 %v232, 0.5
        %v1001 = vmul.f32 %v233, 0.5
        %v1002 = vmul.f32 %v234, 0.5
        %v1003 = vmul.f32 %v235, 0.5
        %v1004 = vmul.f32 %v236, 0.5
        %v1005 = vmul.f32 %v237, 0.5
        %v1006 = vmul.f32 %v238, 0.5
        %v1007 = vmul.f32 %v239, 0.5
        %v1008 = vmul.f32 %v240, 0.5
        %v1009 = vmul.f32 %v241, 0.5
        %v1010 = vmul.f32 %v242, 0.5
        %v1011 = vmul.f32 %v243, 0.5
        %v1012 = vmul.f32 %v244, 0.5
        %v1013 = vmul.f32 %v245, 0.5
        %v1014 = vmul.f32 %v246, 0.5
        %v1015 = vmul.f32 %v247, 0.5
        %v1016 = vmul.f32 %v248, 0.5
        %v1017 = vmul.f32 %v249, 0.5
        %v1018 = vmul.f32 %v250, 0.5
        %v1019 = vmul.f32 %v251, 0.5
        %v1020 = vmul.f32 %v252, 0.5
        %v1021 = vmul.f32 %v253, 0.5
        %v1022 = vmul.f32 %v254, 0.5
        %v1023 = vmul.f32 %v255, 0.5
        %v1024 = vmul.f32 %v256, 0.5
        %v1025 = vmul.f32 %v257, 0.5
        %v1026 = vmul.f32 %v258, 0.5
        %v1027 = vmul.f32 %v259, 0.5
        %v1028 = vmul.f32 %v260, 0.5
        %v1029 = vmul.f32 %v261, 0.5
        %v1030 = vmul.f32 %v262, 0.5
        %v1031 = vmul.f32 %v263, 0.5
        %v1032 = vmul.f32 %v264, 0.5
        %v1033 = vmul.f32 %v265, 0.5
        %v1034 = vmul.f32 %v266, 0.5
        %v1035 = vmul.f32 %v267, 0.5
        %v1036 = vmul.f32 %v268, 0.5
        %v1037 = vmul.f32 %v269, 0.5
        %v1038 = vmul.f32 %v270, 0.5
        %v1039 = vmul.f32 %v271, 0.5
        %v1040 = vmul.f32 %v272, 0.5
        %v1041 = vmul.f32 %v273, 0.5
        %v1042 = vmul.f32 %v274, 0.5
        %v1043 = vmul.f32 %v275, 0.5
        %v1044 = vmul.f32 %v276, 0.5
        %v1045 = vmul.f32 %v277, 0.5
        %v1046 = vmul.f32 %v278, 0.5
        %v1047 = vmul.f32 %v279, 0.5
        %v1048 = vmul.f32 %v280, 0.5
        %v1049 = vmul.f32 %v281, 0.5
        %v1050 = vmul.f32 %v282, 0.5
        %v1051 = vmul.f32 %v283, 0.5
        %v1052 = vmul.f32 %v284, 0.5
        %v1053 = vmul.f32 %v285, 0.5
        %v1054 = vmul.f32 %v286, 0.5
        %v1055 = vmul.f32 %v287, 0.5
        %v1056 = vmul.f32 %v288, 0.5
        %v1057 = vmul.f32 %v289, 0.5
        %v1058 = vmul.f32 %v290, 0.5
        %v1059 = vmul.f32 %v291, 0.5
        %v1060 = vmul.f32 %v292, 0.5
        %v1061 = vmul.f32 %v293, 0.5
        %v1062 = vmul.f32 %v294, 0.5
        %v1063 = vmul.f32 %v295, 0.5
        %v1064 = vmul.f32 %v296, 0.5
        %v1065 = vmul.f32 %v297, 0.5
        %v1066 = vmul.f32 %v298, 0.5
        %v1067 = vmul.f32 %v299, 0.5
        %v1068 = vmul.f32 %v300, 0.5
        %v1069 = vmul.f32 %v301, 0.5
        %v1070 = vmul.f32 %v302, 0.5
        %v1071 = vmul.f32 %v303, 0.5
        %v1072 = vmul.f32 %v304, 0.5
        %v1073 = vmul.f32 %v305, 0.5
        %v1074 = vmul.f32 %v306, 0.5
        %v1075 = vmul.f32 %v307, 0.5
        %v1076 = vmul.f32 %v308, 0.5
        %v1077 = vmul.f32 %v309, 0.5
        %v1078 = vmul.f32 %v310, 0.5
        %v1079 = vmul.f32 %v311, 0.5
        %v1080 = vmul.f32 %v312, 0.5
        %v1081 = vmul.f32 %v313, 0.5
        %v1082 = vmul.f32 %v314, 0.5
        %v1083 = vmul.f32 %v315, 0.5
        %v1084 = vmul.f32 %v316, 0.5
        %v1085 = vmul.f32 %v317, 0.5
        %v1086 = vmul.f32 %v318, 0.5
        %v1087 = vmul.f32 %v319, 0.5
        %v1088 = vmul.f32 %v320, 0.5
        %v1089 = vmul.f32 %v321, 0.5
        %v1090 = vmul.f32 %v322, 0.5
        %v1091 = vmul.f32 %v323, 0.5
        %v1092 = vmul.f32 %v324, 0.5
        %v1093 = vmul.f32 %v325, 0.5
        %v1094 = vmul.f32 %v326, 0.5
        %v1095 = vmul.f32 %v327, 0.5
        %v1096 = vmul.f32 %v328, 0.5
        %v1097 = vmul.f32 %v329, 0.5
        %v1098 = vmul.f32 %v330, 0.5
        %v1099 = vmul.f32 %v331, 0.5
        %v1100 = vmul.f32 %v332, 0.5
        %v1101 = vmul.f32 %v333, 0.5
        %v1102 = vmul.f32 %v334, 0.5
        %v1103 = vmul.f32 %v335, 0.5
        %v1104 = vmul.f32 %v336, 0.5
        %v1105 = vmul.f32 %v337, 0.5
        %v1106 = vmul.f32 %v338, 0.5
        %v1107 = vmul.f32 %v339, 0.5
        %v1108 = vmul.f32 %v340, 0.5
        %v1109 = vmul.f32 %v341, 0.5
        %v1110 = vmul.f32 %v342, 0.5
        %v1111 = vmul.f32 %v343, 0.5
        %v1112 = vmul.f32 %v344, 0.5
        %v1113 = vmul.f32 %v345, 0.5
        %v1114 = vmul.f32 %v346, 0.5
        %v1115 = vtanh.pop %v859
        %v1116 = vtanh.pop %v860
        %v1117 = vtanh.pop %v861
        %v1118 = vtanh.pop %v862
        %v1119 = vtanh.pop %v863
        %v1120 = vtanh.pop %v864
        %v1121 = vtanh.pop %v865
        %v1122 = vtanh.pop %v866
        %v1123 = vtanh.pop %v867
        %v1124 = vtanh.pop %v868
        %v1125 = vtanh.pop %v869
        %v1126 = vtanh.pop %v870
        %v1127 = vtanh.pop %v871
        %v1128 = vtanh.pop %v872
        %v1129 = vtanh.pop %v873
        %v1130 = vtanh.pop %v874
        %v1131 = vtanh.pop %v875
        %v1132 = vtanh.pop %v876
        %v1133 = vtanh.pop %v877
        %v1134 = vtanh.pop %v878
        %v1135 = vtanh.pop %v879
        %v1136 = vtanh.pop %v880
        %v1137 = vtanh.pop %v881
        %v1138 = vtanh.pop %v882
        %v1139 = vtanh.pop %v883
        %v1140 = vtanh.pop %v884
        %v1141 = vtanh.pop %v885
        %v1142 = vtanh.pop %v886
        %v1143 = vtanh.pop %v887
        %v1144 = vtanh.pop %v888
        %v1145 = vtanh.pop %v889
        %v1146 = vtanh.pop %v890
        %v1147 = vtanh.pop %v891
        %v1148 = vtanh.pop %v892
        %v1149 = vtanh.pop %v893
        %v1150 = vtanh.pop %v894
        %v1151 = vtanh.pop %v895
        %v1152 = vtanh.pop %v896
        %v1153 = vtanh.pop %v897
        %v1154 = vtanh.pop %v898
        %v1155 = vtanh.pop %v899
        %v1156 = vtanh.pop %v900
        %v1157 = vtanh.pop %v901
        %v1158 = vtanh.pop %v902
        %v1159 = vtanh.pop %v903
        %v1160 = vtanh.pop %v904
        %v1161 = vtanh.pop %v905
        %v1162 = vtanh.pop %v906
        %v1163 = vtanh.pop %v907
        %v1164 = vtanh.pop %v908
        %v1165 = vtanh.pop %v909
        %v1166 = vtanh.pop %v910
        %v1167 = vtanh.pop %v911
        %v1168 = vtanh.pop %v912
        %v1169 = vtanh.pop %v913
        %v1170 = vtanh.pop %v914
        %v1171 = vtanh.pop %v915
        %v1172 = vtanh.pop %v916
        %v1173 = vtanh.pop %v917
        %v1174 = vtanh.pop %v918
        %v1175 = vtanh.pop %v919
        %v1176 = vtanh.pop %v920
        %v1177 = vtanh.pop %v921
        %v1178 = vtanh.pop %v922
        %v1179 = vtanh.pop %v923
        %v1180 = vtanh.pop %v924
        %v1181 = vtanh.pop %v925
        %v1182 = vtanh.pop %v926
        %v1183 = vtanh.pop %v927
        %v1184 = vtanh.pop %v928
        %v1185 = vtanh.pop %v929
        %v1186 = vtanh.pop %v930
        %v1187 = vtanh.pop %v931
        %v1188 = vtanh.pop %v932
        %v1189 = vtanh.pop %v933
        %v1190 = vtanh.pop %v934
        %v1191 = vtanh.pop %v935
        %v1192 = vtanh.pop %v936
        %v1193 = vtanh.pop %v937
        %v1194 = vtanh.pop %v938
        %v1195 = vtanh.pop %v939
        %v1196 = vtanh.pop %v940
        %v1197 = vtanh.pop %v941
        %v1198 = vtanh.pop %v942
        %v1199 = vtanh.pop %v943
        %v1200 = vtanh.pop %v944
        %v1201 = vtanh.pop %v945
        %v1202 = vtanh.pop %v946
        %v1203 = vtanh.pop %v947
        %v1204 = vtanh.pop %v948
        %v1205 = vtanh.pop %v949
        %v1206 = vtanh.pop %v950
        %v1207 = vtanh.pop %v951
        %v1208 = vtanh.pop %v952
        %v1209 = vtanh.pop %v953
        %v1210 = vtanh.pop %v954
        %v1211 = vtanh.pop %v955
        %v1212 = vtanh.pop %v956
        %v1213 = vtanh.pop %v957
        %v1214 = vtanh.pop %v958
        %v1215 = vtanh.pop %v959
        %v1216 = vtanh.pop %v960
        %v1217 = vtanh.pop %v961
        %v1218 = vtanh.pop %v962
        %v1219 = vtanh.pop %v963
        %v1220 = vtanh.pop %v964
        %v1221 = vtanh.pop %v965
        %v1222 = vtanh.pop %v966
        %v1223 = vtanh.pop %v967
        %v1224 = vtanh.pop %v968
        %v1225 = vtanh.pop %v969
        %v1226 = vtanh.pop %v970
        %v1227 = vtanh.pop %v971
        %v1228 = vtanh.pop %v972
        %v1229 = vtanh.pop %v973
        %v1230 = vtanh.pop %v974
        %v1231 = vtanh.pop %v975
        %v1232 = vtanh.pop %v976
        %v1233 = vtanh.pop %v977
        %v1234 = vtanh.pop %v978
        %v1235 = vtanh.pop %v979
        %v1236 = vtanh.pop %v980
        %v1237 = vtanh.pop %v981
        %v1238 = vtanh.pop %v982
        %v1239 = vtanh.pop %v983
        %v1240 = vtanh.pop %v984
        %v1241 = vtanh.pop %v985
        %v1242 = vtanh.pop %v986
        %v1243 = vadd.f32 %v1115, 1.0
        %v1244 = vadd.f32 %v1116, 1.0
        %v1245 = vadd.f32 %v1117, 1.0
        %v1246 = vadd.f32 %v1118, 1.0
        %v1247 = vadd.f32 %v1119, 1.0
        %v1248 = vadd.f32 %v1120, 1.0
        %v1249 = vadd.f32 %v1121, 1.0
        %v1250 = vadd.f32 %v1122, 1.0
        %v1251 = vadd.f32 %v1123, 1.0
        %v1252 = vadd.f32 %v1124, 1.0
        %v1253 = vadd.f32 %v1125, 1.0
        %v1254 = vadd.f32 %v1126, 1.0
        %v1255 = vadd.f32 %v1127, 1.0
        %v1256 = vadd.f32 %v1128, 1.0
        %v1257 = vadd.f32 %v1129, 1.0
        %v1258 = vadd.f32 %v1130, 1.0
        %v1259 = vadd.f32 %v1131, 1.0
        %v1260 = vadd.f32 %v1132, 1.0
        %v1261 = vadd.f32 %v1133, 1.0
        %v1262 = vadd.f32 %v1134, 1.0
        %v1263 = vadd.f32 %v1135, 1.0
        %v1264 = vadd.f32 %v1136, 1.0
        %v1265 = vadd.f32 %v1137, 1.0
        %v1266 = vadd.f32 %v1138, 1.0
        %v1267 = vadd.f32 %v1139, 1.0
        %v1268 = vadd.f32 %v1140, 1.0
        %v1269 = vadd.f32 %v1141, 1.0
        %v1270 = vadd.f32 %v1142, 1.0
        %v1271 = vadd.f32 %v1143, 1.0
        %v1272 = vadd.f32 %v1144, 1.0
        %v1273 = vadd.f32 %v1145, 1.0
        %v1274 = vadd.f32 %v1146, 1.0
        %v1275 = vadd.f32 %v1147, 1.0
        %v1276 = vadd.f32 %v1148, 1.0
        %v1277 = vadd.f32 %v1149, 1.0
        %v1278 = vadd.f32 %v1150, 1.0
        %v1279 = vadd.f32 %v1151, 1.0
        %v1280 = vadd.f32 %v1152, 1.0
        %v1281 = vadd.f32 %v1153, 1.0
        %v1282 = vadd.f32 %v1154, 1.0
        %v1283 = vadd.f32 %v1155, 1.0
        %v1284 = vadd.f32 %v1156, 1.0
        %v1285 = vadd.f32 %v1157, 1.0
        %v1286 = vadd.f32 %v1158, 1.0
        %v1287 = vadd.f32 %v1159, 1.0
        %v1288 = vadd.f32 %v1160, 1.0
        %v1289 = vadd.f32 %v1161, 1.0
        %v1290 = vadd.f32 %v1162, 1.0
        %v1291 = vadd.f32 %v1163, 1.0
        %v1292 = vadd.f32 %v1164, 1.0
        %v1293 = vadd.f32 %v1165, 1.0
        %v1294 = vadd.f32 %v1166, 1.0
        %v1295 = vadd.f32 %v1167, 1.0
        %v1296 = vadd.f32 %v1168, 1.0
        %v1297 = vadd.f32 %v1169, 1.0
        %v1298 = vadd.f32 %v1170, 1.0
        %v1299 = vadd.f32 %v1171, 1.0
        %v1300 = vadd.f32 %v1172, 1.0
        %v1301 = vadd.f32 %v1173, 1.0
        %v1302 = vadd.f32 %v1174, 1.0
        %v1303 = vadd.f32 %v1175, 1.0
        %v1304 = vadd.f32 %v1176, 1.0
        %v1305 = vadd.f32 %v1177, 1.0
        %v1306 = vadd.f32 %v1178, 1.0
        %v1307 = vadd.f32 %v1179, 1.0
        %v1308 = vadd.f32 %v1180, 1.0
        %v1309 = vadd.f32 %v1181, 1.0
        %v1310 = vadd.f32 %v1182, 1.0
        %v1311 = vadd.f32 %v1183, 1.0
        %v1312 = vadd.f32 %v1184, 1.0
        %v1313 = vadd.f32 %v1185, 1.0
        %v1314 = vadd.f32 %v1186, 1.0
        %v1315 = vadd.f32 %v1187, 1.0
        %v1316 = vadd.f32 %v1188, 1.0
        %v1317 = vadd.f32 %v1189, 1.0
        %v1318 = vadd.f32 %v1190, 1.0
        %v1319 = vadd.f32 %v1191, 1.0
        %v1320 = vadd.f32 %v1192, 1.0
        %v1321 = vadd.f32 %v1193, 1.0
        %v1322 = vadd.f32 %v1194, 1.0
        %v1323 = vadd.f32 %v1195, 1.0
        %v1324 = vadd.f32 %v1196, 1.0
        %v1325 = vadd.f32 %v1197, 1.0
        %v1326 = vadd.f32 %v1198, 1.0
        %v1327 = vadd.f32 %v1199, 1.0
        %v1328 = vadd.f32 %v1200, 1.0
        %v1329 = vadd.f32 %v1201, 1.0
        %v1330 = vadd.f32 %v1202, 1.0
        %v1331 = vadd.f32 %v1203, 1.0
        %v1332 = vadd.f32 %v1204, 1.0
        %v1333 = vadd.f32 %v1205, 1.0
        %v1334 = vadd.f32 %v1206, 1.0
        %v1335 = vadd.f32 %v1207, 1.0
        %v1336 = vadd.f32 %v1208, 1.0
        %v1337 = vadd.f32 %v1209, 1.0
        %v1338 = vadd.f32 %v1210, 1.0
        %v1339 = vadd.f32 %v1211, 1.0
        %v1340 = vadd.f32 %v1212, 1.0
        %v1341 = vadd.f32 %v1213, 1.0
        %v1342 = vadd.f32 %v1214, 1.0
        %v1343 = vadd.f32 %v1215, 1.0
        %v1344 = vadd.f32 %v1216, 1.0
        %v1345 = vadd.f32 %v1217, 1.0
        %v1346 = vadd.f32 %v1218, 1.0
        %v1347 = vadd.f32 %v1219, 1.0
        %v1348 = vadd.f32 %v1220, 1.0
        %v1349 = vadd.f32 %v1221, 1.0
        %v1350 = vadd.f32 %v1222, 1.0
        %v1351 = vadd.f32 %v1223, 1.0
        %v1352 = vadd.f32 %v1224, 1.0
        %v1353 = vadd.f32 %v1225, 1.0
        %v1354 = vadd.f32 %v1226, 1.0
        %v1355 = vadd.f32 %v1227, 1.0
        %v1356 = vadd.f32 %v1228, 1.0
        %v1357 = vadd.f32 %v1229, 1.0
        %v1358 = vadd.f32 %v1230, 1.0
        %v1359 = vadd.f32 %v1231, 1.0
        %v1360 = vadd.f32 %v1232, 1.0
        %v1361 = vadd.f32 %v1233, 1.0
        %v1362 = vadd.f32 %v1234, 1.0
        %v1363 = vadd.f32 %v1235, 1.0
        %v1364 = vadd.f32 %v1236, 1.0
        %v1365 = vadd.f32 %v1237, 1.0
        %v1366 = vadd.f32 %v1238, 1.0
        %v1367 = vadd.f32 %v1239, 1.0
        %v1368 = vadd.f32 %v1240, 1.0
        %v1369 = vadd.f32 %v1241, 1.0
        %v1370 = vadd.f32 %v1242, 1.0
        %v1371 = vmul.f32 %v987, %v1243
        %v1372 = vmul.f32 %v988, %v1244
        %v1373 = vmul.f32 %v989, %v1245
        %v1374 = vmul.f32 %v990, %v1246
        %v1375 = vmul.f32 %v991, %v1247
        %v1376 = vmul.f32 %v992, %v1248
        %v1377 = vmul.f32 %v993, %v1249
        %v1378 = vmul.f32 %v994, %v1250
        %v1379 = vmul.f32 %v995, %v1251
        %v1380 = vmul.f32 %v996, %v1252
        %v1381 = vmul.f32 %v997, %v1253
        %v1382 = vmul.f32 %v998, %v1254
        %v1383 = vmul.f32 %v999, %v1255
        %v1384 = vmul.f32 %v1000, %v1256
        %v1385 = vmul.f32 %v1001, %v1257
        %v1386 = vmul.f32 %v1002, %v1258
        %v1387 = vmul.f32 %v1003, %v1259
        %v1388 = vmul.f32 %v1004, %v1260
        %v1389 = vmul.f32 %v1005, %v1261
        %v1390 = vmul.f32 %v1006, %v1262
        %v1391 = vmul.f32 %v1007, %v1263
        %v1392 = vmul.f32 %v1008, %v1264
        %v1393 = vmul.f32 %v1009, %v1265
        %v1394 = vmul.f32 %v1010, %v1266
        %v1395 = vmul.f32 %v1011, %v1267
        %v1396 = vmul.f32 %v1012, %v1268
        %v1397 = vmul.f32 %v1013, %v1269
        %v1398 = vmul.f32 %v1014, %v1270
        %v1399 = vmul.f32 %v1015, %v1271
        %v1400 = vmul.f32 %v1016, %v1272
        %v1401 = vmul.f32 %v1017, %v1273
        %v1402 = vmul.f32 %v1018, %v1274
        %v1403 = vmul.f32 %v1019, %v1275
        %v1404 = vmul.f32 %v1020, %v1276
        %v1405 = vmul.f32 %v1021, %v1277
        %v1406 = vmul.f32 %v1022, %v1278
        %v1407 = vmul.f32 %v1023, %v1279
        %v1408 = vmul.f32 %v1024, %v1280
        %v1409 = vmul.f32 %v1025, %v1281
        %v1410 = vmul.f32 %v1026, %v1282
        %v1411 = vmul.f32 %v1027, %v1283
        %v1412 = vmul.f32 %v1028, %v1284
        %v1413 = vmul.f32 %v1029, %v1285
        %v1414 = vmul.f32 %v1030, %v1286
        %v1415 = vmul.f32 %v1031, %v1287
        %v1416 = vmul.f32 %v1032, %v1288
        %v1417 = vmul.f32 %v1033, %v1289
        %v1418 = vmul.f32 %v1034, %v1290
        %v1419 = vmul.f32 %v1035, %v1291
        %v1420 = vmul.f32 %v1036, %v1292
        %v1421 = vmul.f32 %v1037, %v1293
        %v1422 = vmul.f32 %v1038, %v1294
        %v1423 = vmul.f32 %v1039, %v1295
        %v1424 = vmul.f32 %v1040, %v1296
        %v1425 = vmul.f32 %v1041, %v1297
        %v1426 = vmul.f32 %v1042, %v1298
        %v1427 = vmul.f32 %v1043, %v1299
        %v1428 = vmul.f32 %v1044, %v1300
        %v1429 = vmul.f32 %v1045, %v1301
        %v1430 = vmul.f32 %v1046, %v1302
        %v1431 = vmul.f32 %v1047, %v1303
        %v1432 = vmul.f32 %v1048, %v1304
        %v1433 = vmul.f32 %v1049, %v1305
        %v1434 = vmul.f32 %v1050, %v1306
        %v1435 = vmul.f32 %v1051, %v1307
        %v1436 = vmul.f32 %v1052, %v1308
        %v1437 = vmul.f32 %v1053, %v1309
        %v1438 = vmul.f32 %v1054, %v1310
        %v1439 = vmul.f32 %v1055, %v1311
        %v1440 = vmul.f32 %v1056, %v1312
        %v1441 = vmul.f32 %v1057, %v1313
        %v1442 = vmul.f32 %v1058, %v1314
        %v1443 = vmul.f32 %v1059, %v1315
        %v1444 = vmul.f32 %v1060, %v1316
        %v1445 = vmul.f32 %v1061, %v1317
        %v1446 = vmul.f32 %v1062, %v1318
        %v1447 = vmul.f32 %v1063, %v1319
        %v1448 = vmul.f32 %v1064, %v1320
        %v1449 = vmul.f32 %v1065, %v1321
        %v1450 = vmul.f32 %v1066, %v1322
        %v1451 = vmul.f32 %v1067, %v1323
        %v1452 = vmul.f32 %v1068, %v1324
        %v1453 = vmul.f32 %v1069, %v1325
        %v1454 = vmul.f32 %v1070, %v1326
        %v1455 = vmul.f32 %v1071, %v1327
        %v1456 = vmul.f32 %v1072, %v1328
        %v1457 = vmul.f32 %v1073, %v1329
        %v1458 = vmul.f32 %v1074, %v1330
        %v1459 = vmul.f32 %v1075, %v1331
        %v1460 = vmul.f32 %v1076, %v1332
        %v1461 = vmul.f32 %v1077, %v1333
        %v1462 = vmul.f32 %v1078, %v1334
        %v1463 = vmul.f32 %v1079, %v1335
        %v1464 = vmul.f32 %v1080, %v1336
        %v1465 = vmul.f32 %v1081, %v1337
        %v1466 = vmul.f32 %v1082, %v1338
        %v1467 = vmul.f32 %v1083, %v1339
        %v1468 = vmul.f32 %v1084, %v1340
        %v1469 = vmul.f32 %v1085, %v1341
        %v1470 = vmul.f32 %v1086, %v1342
        %v1471 = vmul.f32 %v1087, %v1343
        %v1472 = vmul.f32 %v1088, %v1344
        %v1473 = vmul.f32 %v1089, %v1345
        %v1474 = vmul.f32 %v1090, %v1346
        %v1475 = vmul.f32 %v1091, %v1347
        %v1476 = vmul.f32 %v1092, %v1348
        %v1477 = vmul.f32 %v1093, %v1349
        %v1478 = vmul.f32 %v1094, %v1350
        %v1479 = vmul.f32 %v1095, %v1351
        %v1480 = vmul.f32 %v1096, %v1352
        %v1481 = vmul.f32 %v1097, %v1353
        %v1482 = vmul.f32 %v1098, %v1354
        %v1483 = vmul.f32 %v1099, %v1355
        %v1484 = vmul.f32 %v1100, %v1356
        %v1485 = vmul.f32 %v1101, %v1357
        %v1486 = vmul.f32 %v1102, %v1358
        %v1487 = vmul.f32 %v1103, %v1359
        %v1488 = vmul.f32 %v1104, %v1360
        %v1489 = vmul.f32 %v1105, %v1361
        %v1490 = vmul.f32 %v1106, %v1362
        %v1491 = vmul.f32 %v1107, %v1363
        %v1492 = vmul.f32 %v1108, %v1364
        %v1493 = vmul.f32 %v1109, %v1365
        %v1494 = vmul.f32 %v1110, %v1366
        %v1495 = vmul.f32 %v1111, %v1367
        %v1496 = vmul.f32 %v1112, %v1368
        %v1497 = vmul.f32 %v1113, %v1369
        %v1498 = vmul.f32 %v1114, %v1370
        %v1499 = vpack.c.bf16 %v1379, %v1371
        %v1500 = vpack.c.bf16 %v1380, %v1372
        %v1501 = vpack.c.bf16 %v1381, %v1373
        %v1502 = vpack.c.bf16 %v1382, %v1374
        %v1503 = vpack.c.bf16 %v1383, %v1375
        %v1504 = vpack.c.bf16 %v1384, %v1376
        %v1505 = vpack.c.bf16 %v1385, %v1377
        %v1506 = vpack.c.bf16 %v1386, %v1378
        %v1507 = vpack.c.bf16 %v1395, %v1387
        %v1508 = vpack.c.bf16 %v1396, %v1388
        %v1509 = vpack.c.bf16 %v1397, %v1389
        %v1510 = vpack.c.bf16 %v1398, %v1390
        %v1511 = vpack.c.bf16 %v1399, %v1391
        %v1512 = vpack.c.bf16 %v1400, %v1392
        %v1513 = vpack.c.bf16 %v1401, %v1393
        %v1514 = vpack.c.bf16 %v1402, %v1394
        %v1515 = vpack.c.bf16 %v1411, %v1403
        %v1516 = vpack.c.bf16 %v1412, %v1404
        %v1517 = vpack.c.bf16 %v1413, %v1405
        %v1518 = vpack.c.bf16 %v1414, %v1406
        %v1519 = vpack.c.bf16 %v1415, %v1407
        %v1520 = vpack.c.bf16 %v1416, %v1408
        %v1521 = vpack.c.bf16 %v1417, %v1409
        %v1522 = vpack.c.bf16 %v1418, %v1410
        %v1523 = vpack.c.bf16 %v1427, %v1419
        %v1524 = vpack.c.bf16 %v1428, %v1420
        %v1525 = vpack.c.bf16 %v1429, %v1421
        %v1526 = vpack.c.bf16 %v1430, %v1422
        %v1527 = vpack.c.bf16 %v1431, %v1423
        %v1528 = vpack.c.bf16 %v1432, %v1424
        %v1529 = vpack.c.bf16 %v1433, %v1425
        %v1530 = vpack.c.bf16 %v1434, %v1426
        %v1531 = vpack.c.bf16 %v1443, %v1435
        %v1532 = vpack.c.bf16 %v1444, %v1436
        %v1533 = vpack.c.bf16 %v1445, %v1437
        %v1534 = vpack.c.bf16 %v1446, %v1438
        %v1535 = vpack.c.bf16 %v1447, %v1439
        %v1536 = vpack.c.bf16 %v1448, %v1440
        %v1537 = vpack.c.bf16 %v1449, %v1441
        %v1538 = vpack.c.bf16 %v1450, %v1442
        %v1539 = vpack.c.bf16 %v1459, %v1451
        %v1540 = vpack.c.bf16 %v1460, %v1452
        %v1541 = vpack.c.bf16 %v1461, %v1453
        %v1542 = vpack.c.bf16 %v1462, %v1454
        %v1543 = vpack.c.bf16 %v1463, %v1455
        %v1544 = vpack.c.bf16 %v1464, %v1456
        %v1545 = vpack.c.bf16 %v1465, %v1457
        %v1546 = vpack.c.bf16 %v1466, %v1458
        %v1547 = vpack.c.bf16 %v1475, %v1467
        %v1548 = vpack.c.bf16 %v1476, %v1468
        %v1549 = vpack.c.bf16 %v1477, %v1469
        %v1550 = vpack.c.bf16 %v1478, %v1470
        %v1551 = vpack.c.bf16 %v1479, %v1471
        %v1552 = vpack.c.bf16 %v1480, %v1472
        %v1553 = vpack.c.bf16 %v1481, %v1473
        %v1554 = vpack.c.bf16 %v1482, %v1474
        %v1555 = vpack.c.bf16 %v1491, %v1483
        %v1556 = vpack.c.bf16 %v1492, %v1484
        %v1557 = vpack.c.bf16 %v1493, %v1485
        %v1558 = vpack.c.bf16 %v1494, %v1486
        %v1559 = vpack.c.bf16 %v1495, %v1487
        %v1560 = vpack.c.bf16 %v1496, %v1488
        %v1561 = vpack.c.bf16 %v1497, %v1489
        %v1562 = vpack.c.bf16 %v1498, %v1490
        %v1563 = vld [vmem:[#allocation5] sm:$0xff]
        %v1564 = vld [vmem:[#allocation5 + $0x8] sm:$0xff]
        %v1565 = vld [vmem:[#allocation5 + $0x10] sm:$0xff]
        %v1566 = vld [vmem:[#allocation5 + $0x18] sm:$0xff]
        %v1567 = vld [vmem:[#allocation5 + $0x20] sm:$0xff]
        %v1568 = vld [vmem:[#allocation5 + $0x28] sm:$0xff]
        %v1569 = vld [vmem:[#allocation5 + $0x30] sm:$0xff]
        %v1570 = vld [vmem:[#allocation5 + $0x38] sm:$0xff]
        %v1571 = vld [vmem:[#allocation5 + $0x40] sm:$0xff]
        %v1572 = vld [vmem:[#allocation5 + $0x48] sm:$0xff]
        %v1573 = vld [vmem:[#allocation5 + $0x50] sm:$0xff]
        %v1574 = vld [vmem:[#allocation5 + $0x58] sm:$0xff]
        %v1575 = vld [vmem:[#allocation5 + $0x60] sm:$0xff]
        %v1576 = vld [vmem:[#allocation5 + $0x68] sm:$0xff]
        %v1577 = vld [vmem:[#allocation5 + $0x70] sm:$0xff]
        %v1578 = vld [vmem:[#allocation5 + $0x78] sm:$0xff]
        %v1579 = vld [vmem:[#allocation5 + $0x80] sm:$0xff]
        %v1580 = vld [vmem:[#allocation5 + $0x88] sm:$0xff]
        %v1581 = vld [vmem:[#allocation5 + $0x90] sm:$0xff]
        %v1582 = vld [vmem:[#allocation5 + $0x98] sm:$0xff]
        %v1583 = vld [vmem:[#allocation5 + $0xa0] sm:$0xff]
        %v1584 = vld [vmem:[#allocation5 + $0xa8] sm:$0xff]
        %v1585 = vld [vmem:[#allocation5 + $0xb0] sm:$0xff]
        %v1586 = vld [vmem:[#allocation5 + $0xb8] sm:$0xff]
        %v1587 = vld [vmem:[#allocation5 + $0xc0] sm:$0xff]
        %v1588 = vld [vmem:[#allocation5 + $0xc8] sm:$0xff]
        %v1589 = vld [vmem:[#allocation5 + $0xd0] sm:$0xff]
        %v1590 = vld [vmem:[#allocation5 + $0xd8] sm:$0xff]
        %v1591 = vld [vmem:[#allocation5 + $0xe0] sm:$0xff]
        %v1592 = vld [vmem:[#allocation5 + $0xe8] sm:$0xff]
        %v1593 = vld [vmem:[#allocation5 + $0xf0] sm:$0xff]
        %v1594 = vld [vmem:[#allocation5 + $0xf8] sm:$0xff]
        %v1595 = vld [vmem:[#allocation5 + $0x100] sm:$0xff]
        %v1596 = vld [vmem:[#allocation5 + $0x108] sm:$0xff]
        %v1597 = vld [vmem:[#allocation5 + $0x110] sm:$0xff]
        %v1598 = vld [vmem:[#allocation5 + $0x118] sm:$0xff]
        %v1599 = vld [vmem:[#allocation5 + $0x120] sm:$0xff]
        %v1600 = vld [vmem:[#allocation5 + $0x128] sm:$0xff]
        %v1601 = vld [vmem:[#allocation5 + $0x130] sm:$0xff]
        %v1602 = vld [vmem:[#allocation5 + $0x138] sm:$0xff]
        %v1603 = vld [vmem:[#allocation5 + $0x140] sm:$0xff]
        %v1604 = vld [vmem:[#allocation5 + $0x148] sm:$0xff]
        %v1605 = vld [vmem:[#allocation5 + $0x150] sm:$0xff]
        %v1606 = vld [vmem:[#allocation5 + $0x158] sm:$0xff]
        %v1607 = vld [vmem:[#allocation5 + $0x160] sm:$0xff]
        %v1608 = vld [vmem:[#allocation5 + $0x168] sm:$0xff]
        %v1609 = vld [vmem:[#allocation5 + $0x170] sm:$0xff]
        %v1610 = vld [vmem:[#allocation5 + $0x178] sm:$0xff]
        %v1611 = vld [vmem:[#allocation5 + $0x180] sm:$0xff]
        %v1612 = vld [vmem:[#allocation5 + $0x188] sm:$0xff]
        %v1613 = vld [vmem:[#allocation5 + $0x190] sm:$0xff]
        %v1614 = vld [vmem:[#allocation5 + $0x198] sm:$0xff]
        %v1615 = vld [vmem:[#allocation5 + $0x1a0] sm:$0xff]
        %v1616 = vld [vmem:[#allocation5 + $0x1a8] sm:$0xff]
        %v1617 = vld [vmem:[#allocation5 + $0x1b0] sm:$0xff]
        %v1618 = vld [vmem:[#allocation5 + $0x1b8] sm:$0xff]
        %v1619 = vld [vmem:[#allocation5 + $0x1c0] sm:$0xff]
        %v1620 = vld [vmem:[#allocation5 + $0x1c8] sm:$0xff]
        %v1621 = vld [vmem:[#allocation5 + $0x1d0] sm:$0xff]
        %v1622 = vld [vmem:[#allocation5 + $0x1d8] sm:$0xff]
        %v1623 = vld [vmem:[#allocation5 + $0x1e0] sm:$0xff]
        %v1624 = vld [vmem:[#allocation5 + $0x1e8] sm:$0xff]
        %v1625 = vld [vmem:[#allocation5 + $0x1f0] sm:$0xff]
        %v1626 = vld [vmem:[#allocation5 + $0x1f8] sm:$0xff]
        %v1627 = vld [vmem:[#allocation5 + $0x200] sm:$0xff]
        %v1628 = vld [vmem:[#allocation5 + $0x208] sm:$0xff]
        %v1629 = vld [vmem:[#allocation5 + $0x210] sm:$0xff]
        %v1630 = vld [vmem:[#allocation5 + $0x218] sm:$0xff]
        %v1631 = vld [vmem:[#allocation5 + $0x220] sm:$0xff]
        %v1632 = vld [vmem:[#allocation5 + $0x228] sm:$0xff]
        %v1633 = vld [vmem:[#allocation5 + $0x230] sm:$0xff]
        %v1634 = vld [vmem:[#allocation5 + $0x238] sm:$0xff]
        %v1635 = vld [vmem:[#allocation5 + $0x240] sm:$0xff]
        %v1636 = vld [vmem:[#allocation5 + $0x248] sm:$0xff]
        %v1637 = vld [vmem:[#allocation5 + $0x250] sm:$0xff]
        %v1638 = vld [vmem:[#allocation5 + $0x258] sm:$0xff]
        %v1639 = vld [vmem:[#allocation5 + $0x260] sm:$0xff]
        %v1640 = vld [vmem:[#allocation5 + $0x268] sm:$0xff]
        %v1641 = vld [vmem:[#allocation5 + $0x270] sm:$0xff]
        %v1642 = vld [vmem:[#allocation5 + $0x278] sm:$0xff]
        %v1643 = vld [vmem:[#allocation5 + $0x280] sm:$0xff]
        %v1644 = vld [vmem:[#allocation5 + $0x288] sm:$0xff]
        %v1645 = vld [vmem:[#allocation5 + $0x290] sm:$0xff]
        %v1646 = vld [vmem:[#allocation5 + $0x298] sm:$0xff]
        %v1647 = vld [vmem:[#allocation5 + $0x2a0] sm:$0xff]
        %v1648 = vld [vmem:[#allocation5 + $0x2a8] sm:$0xff]
        %v1649 = vld [vmem:[#allocation5 + $0x2b0] sm:$0xff]
        %v1650 = vld [vmem:[#allocation5 + $0x2b8] sm:$0xff]
        %v1651 = vld [vmem:[#allocation5 + $0x2c0] sm:$0xff]
        %v1652 = vld [vmem:[#allocation5 + $0x2c8] sm:$0xff]
        %v1653 = vld [vmem:[#allocation5 + $0x2d0] sm:$0xff]
        %v1654 = vld [vmem:[#allocation5 + $0x2d8] sm:$0xff]
        %v1655 = vld [vmem:[#allocation5 + $0x2e0] sm:$0xff]
        %v1656 = vld [vmem:[#allocation5 + $0x2e8] sm:$0xff]
        %v1657 = vld [vmem:[#allocation5 + $0x2f0] sm:$0xff]
        %v1658 = vld [vmem:[#allocation5 + $0x2f8] sm:$0xff]
        %v1659 = vld [vmem:[#allocation5 + $0x300] sm:$0xff]
        %v1660 = vld [vmem:[#allocation5 + $0x308] sm:$0xff]
        %v1661 = vld [vmem:[#allocation5 + $0x310] sm:$0xff]
        %v1662 = vld [vmem:[#allocation5 + $0x318] sm:$0xff]
        %v1663 = vld [vmem:[#allocation5 + $0x320] sm:$0xff]
        %v1664 = vld [vmem:[#allocation5 + $0x328] sm:$0xff]
        %v1665 = vld [vmem:[#allocation5 + $0x330] sm:$0xff]
        %v1666 = vld [vmem:[#allocation5 + $0x338] sm:$0xff]
        %v1667 = vld [vmem:[#allocation5 + $0x340] sm:$0xff]
        %v1668 = vld [vmem:[#allocation5 + $0x348] sm:$0xff]
        %v1669 = vld [vmem:[#allocation5 + $0x350] sm:$0xff]
        %v1670 = vld [vmem:[#allocation5 + $0x358] sm:$0xff]
        %v1671 = vld [vmem:[#allocation5 + $0x360] sm:$0xff]
        %v1672 = vld [vmem:[#allocation5 + $0x368] sm:$0xff]
        %v1673 = vld [vmem:[#allocation5 + $0x370] sm:$0xff]
        %v1674 = vld [vmem:[#allocation5 + $0x378] sm:$0xff]
        %v1675 = vld [vmem:[#allocation5 + $0x380] sm:$0xff]
        %v1676 = vld [vmem:[#allocation5 + $0x388] sm:$0xff]
        %v1677 = vld [vmem:[#allocation5 + $0x390] sm:$0xff]
        %v1678 = vld [vmem:[#allocation5 + $0x398] sm:$0xff]
        %v1679 = vld [vmem:[#allocation5 + $0x3a0] sm:$0xff]
        %v1680 = vld [vmem:[#allocation5 + $0x3a8] sm:$0xff]
        %v1681 = vld [vmem:[#allocation5 + $0x3b0] sm:$0xff]
        %v1682 = vld [vmem:[#allocation5 + $0x3b8] sm:$0xff]
        %v1683 = vld [vmem:[#allocation5 + $0x3c0] sm:$0xff]
        %v1684 = vld [vmem:[#allocation5 + $0x3c8] sm:$0xff]
        %v1685 = vld [vmem:[#allocation5 + $0x3d0] sm:$0xff]
        %v1686 = vld [vmem:[#allocation5 + $0x3d8] sm:$0xff]
        %v1687 = vld [vmem:[#allocation5 + $0x3e0] sm:$0xff]
        %v1688 = vld [vmem:[#allocation5 + $0x3e8] sm:$0xff]
        %v1689 = vld [vmem:[#allocation5 + $0x3f0] sm:$0xff]
        %v1690 = vld [vmem:[#allocation5 + $0x3f8] sm:$0xff]
        %v1691 = vld [vmem:[#allocation7] sm:$0x3]
        %v1693 = vlaneseq
        %v1694 = vshrl.u32 %v1693, 7
        %v1695 = vsub.s32 0, %v1694
        %v1696 = vrot.slane %v1691, %v1695
        %v1697 = vlaneseq
        %v1698 = vshrl.u32 %v1697, 7
        %v1699 = vsub.s32 1, %v1698
        %v1700 = vrot.slane %v1691, %v1699
        %v1831 = vunpack.c.l.b16 %v1563
        %v1832 = vunpack.c.h.b16 %v1563
        %v1833 = vunpack.c.l.b16 %v1564
        %v1834 = vunpack.c.h.b16 %v1564
        %v1835 = vunpack.c.l.b16 %v1565
        %v1836 = vunpack.c.h.b16 %v1565
        %v1837 = vunpack.c.l.b16 %v1566
        %v1838 = vunpack.c.h.b16 %v1566
        %v1839 = vunpack.c.l.b16 %v1567
        %v1840 = vunpack.c.h.b16 %v1567
        %v1841 = vunpack.c.l.b16 %v1568
        %v1842 = vunpack.c.h.b16 %v1568
        %v1843 = vunpack.c.l.b16 %v1569
        %v1844 = vunpack.c.h.b16 %v1569
        %v1845 = vunpack.c.l.b16 %v1570
        %v1846 = vunpack.c.h.b16 %v1570
        %v1847 = vunpack.c.l.b16 %v1571
        %v1848 = vunpack.c.h.b16 %v1571
        %v1849 = vunpack.c.l.b16 %v1572
        %v1850 = vunpack.c.h.b16 %v1572
        %v1851 = vunpack.c.l.b16 %v1573
        %v1852 = vunpack.c.h.b16 %v1573
        %v1853 = vunpack.c.l.b16 %v1574
        %v1854 = vunpack.c.h.b16 %v1574
        %v1855 = vunpack.c.l.b16 %v1575
        %v1856 = vunpack.c.h.b16 %v1575
        %v1857 = vunpack.c.l.b16 %v1576
        %v1858 = vunpack.c.h.b16 %v1576
        %v1859 = vunpack.c.l.b16 %v1577
        %v1860 = vunpack.c.h.b16 %v1577
        %v1861 = vunpack.c.l.b16 %v1578
        %v1862 = vunpack.c.h.b16 %v1578
        %v1863 = vunpack.c.l.b16 %v1579
        %v1864 = vunpack.c.h.b16 %v1579
        %v1865 = vunpack.c.l.b16 %v1580
        %v1866 = vunpack.c.h.b16 %v1580
        %v1867 = vunpack.c.l.b16 %v1581
        %v1868 = vunpack.c.h.b16 %v1581
        %v1869 = vunpack.c.l.b16 %v1582
        %v1870 = vunpack.c.h.b16 %v1582
        %v1871 = vunpack.c.l.b16 %v1583
        %v1872 = vunpack.c.h.b16 %v1583
        %v1873 = vunpack.c.l.b16 %v1584
        %v1874 = vunpack.c.h.b16 %v1584
        %v1875 = vunpack.c.l.b16 %v1585
        %v1876 = vunpack.c.h.b16 %v1585
        %v1877 = vunpack.c.l.b16 %v1586
        %v1878 = vunpack.c.h.b16 %v1586
        %v1879 = vunpack.c.l.b16 %v1587
        %v1880 = vunpack.c.h.b16 %v1587
        %v1881 = vunpack.c.l.b16 %v1588
        %v1882 = vunpack.c.h.b16 %v1588
        %v1883 = vunpack.c.l.b16 %v1589
        %v1884 = vunpack.c.h.b16 %v1589
        %v1885 = vunpack.c.l.b16 %v1590
        %v1886 = vunpack.c.h.b16 %v1590
        %v1887 = vunpack.c.l.b16 %v1591
        %v1888 = vunpack.c.h.b16 %v1591
        %v1889 = vunpack.c.l.b16 %v1592
        %v1890 = vunpack.c.h.b16 %v1592
        %v1891 = vunpack.c.l.b16 %v1593
        %v1892 = vunpack.c.h.b16 %v1593
        %v1893 = vunpack.c.l.b16 %v1594
        %v1894 = vunpack.c.h.b16 %v1594
        %v1895 = vunpack.c.l.b16 %v1595
        %v1896 = vunpack.c.h.b16 %v1595
        %v1897 = vunpack.c.l.b16 %v1596
        %v1898 = vunpack.c.h.b16 %v1596
        %v1899 = vunpack.c.l.b16 %v1597
        %v1900 = vunpack.c.h.b16 %v1597
        %v1901 = vunpack.c.l.b16 %v1598
        %v1902 = vunpack.c.h.b16 %v1598
        %v1903 = vunpack.c.l.b16 %v1599
        %v1904 = vunpack.c.h.b16 %v1599
        %v1905 = vunpack.c.l.b16 %v1600
        %v1906 = vunpack.c.h.b16 %v1600
        %v1907 = vunpack.c.l.b16 %v1601
        %v1908 = vunpack.c.h.b16 %v1601
        %v1909 = vunpack.c.l.b16 %v1602
        %v1910 = vunpack.c.h.b16 %v1602
        %v1911 = vunpack.c.l.b16 %v1603
        %v1912 = vunpack.c.h.b16 %v1603
        %v1913 = vunpack.c.l.b16 %v1604
        %v1914 = vunpack.c.h.b16 %v1604
        %v1915 = vunpack.c.l.b16 %v1605
        %v1916 = vunpack.c.h.b16 %v1605
        %v1917 = vunpack.c.l.b16 %v1606
        %v1918 = vunpack.c.h.b16 %v1606
        %v1919 = vunpack.c.l.b16 %v1607
        %v1920 = vunpack.c.h.b16 %v1607
        %v1921 = vunpack.c.l.b16 %v1608
        %v1922 = vunpack.c.h.b16 %v1608
        %v1923 = vunpack.c.l.b16 %v1609
        %v1924 = vunpack.c.h.b16 %v1609
        %v1925 = vunpack.c.l.b16 %v1610
        %v1926 = vunpack.c.h.b16 %v1610
        %v1927 = vunpack.c.l.b16 %v1611
        %v1928 = vunpack.c.h.b16 %v1611
        %v1929 = vunpack.c.l.b16 %v1612
        %v1930 = vunpack.c.h.b16 %v1612
        %v1931 = vunpack.c.l.b16 %v1613
        %v1932 = vunpack.c.h.b16 %v1613
        %v1933 = vunpack.c.l.b16 %v1614
        %v1934 = vunpack.c.h.b16 %v1614
        %v1935 = vunpack.c.l.b16 %v1615
        %v1936 = vunpack.c.h.b16 %v1615
        %v1937 = vunpack.c.l.b16 %v1616
        %v1938 = vunpack.c.h.b16 %v1616
        %v1939 = vunpack.c.l.b16 %v1617
        %v1940 = vunpack.c.h.b16 %v1617
        %v1941 = vunpack.c.l.b16 %v1618
        %v1942 = vunpack.c.h.b16 %v1618
        %v1943 = vunpack.c.l.b16 %v1619
        %v1944 = vunpack.c.h.b16 %v1619
        %v1945 = vunpack.c.l.b16 %v1620
        %v1946 = vunpack.c.h.b16 %v1620
        %v1947 = vunpack.c.l.b16 %v1621
        %v1948 = vunpack.c.h.b16 %v1621
        %v1949 = vunpack.c.l.b16 %v1622
        %v1950 = vunpack.c.h.b16 %v1622
        %v1951 = vunpack.c.l.b16 %v1623
        %v1952 = vunpack.c.h.b16 %v1623
        %v1953 = vunpack.c.l.b16 %v1624
        %v1954 = vunpack.c.h.b16 %v1624
        %v1955 = vunpack.c.l.b16 %v1625
        %v1956 = vunpack.c.h.b16 %v1625
        %v1957 = vunpack.c.l.b16 %v1626
        %v1958 = vunpack.c.h.b16 %v1626
        %v1959 = vunpack.c.l.b16 %v1627
        %v1960 = vunpack.c.h.b16 %v1627
        %v1961 = vunpack.c.l.b16 %v1628
        %v1962 = vunpack.c.h.b16 %v1628
        %v1963 = vunpack.c.l.b16 %v1629
        %v1964 = vunpack.c.h.b16 %v1629
        %v1965 = vunpack.c.l.b16 %v1630
        %v1966 = vunpack.c.h.b16 %v1630
        %v1967 = vunpack.c.l.b16 %v1631
        %v1968 = vunpack.c.h.b16 %v1631
        %v1969 = vunpack.c.l.b16 %v1632
        %v1970 = vunpack.c.h.b16 %v1632
        %v1971 = vunpack.c.l.b16 %v1633
        %v1972 = vunpack.c.h.b16 %v1633
        %v1973 = vunpack.c.l.b16 %v1634
        %v1974 = vunpack.c.h.b16 %v1634
        %v1975 = vunpack.c.l.b16 %v1635
        %v1976 = vunpack.c.h.b16 %v1635
        %v1977 = vunpack.c.l.b16 %v1636
        %v1978 = vunpack.c.h.b16 %v1636
        %v1979 = vunpack.c.l.b16 %v1637
        %v1980 = vunpack.c.h.b16 %v1637
        %v1981 = vunpack.c.l.b16 %v1638
        %v1982 = vunpack.c.h.b16 %v1638
        %v1983 = vunpack.c.l.b16 %v1639
        %v1984 = vunpack.c.h.b16 %v1639
        %v1985 = vunpack.c.l.b16 %v1640
        %v1986 = vunpack.c.h.b16 %v1640
        %v1987 = vunpack.c.l.b16 %v1641
        %v1988 = vunpack.c.h.b16 %v1641
        %v1989 = vunpack.c.l.b16 %v1642
        %v1990 = vunpack.c.h.b16 %v1642
        %v1991 = vunpack.c.l.b16 %v1643
        %v1992 = vunpack.c.h.b16 %v1643
        %v1993 = vunpack.c.l.b16 %v1644
        %v1994 = vunpack.c.h.b16 %v1644
        %v1995 = vunpack.c.l.b16 %v1645
        %v1996 = vunpack.c.h.b16 %v1645
        %v1997 = vunpack.c.l.b16 %v1646
        %v1998 = vunpack.c.h.b16 %v1646
        %v1999 = vunpack.c.l.b16 %v1647
        %v2000 = vunpack.c.h.b16 %v1647
        %v2001 = vunpack.c.l.b16 %v1648
        %v2002 = vunpack.c.h.b16 %v1648
        %v2003 = vunpack.c.l.b16 %v1649
        %v2004 = vunpack.c.h.b16 %v1649
        %v2005 = vunpack.c.l.b16 %v1650
        %v2006 = vunpack.c.h.b16 %v1650
        %v2007 = vunpack.c.l.b16 %v1651
        %v2008 = vunpack.c.h.b16 %v1651
        %v2009 = vunpack.c.l.b16 %v1652
        %v2010 = vunpack.c.h.b16 %v1652
        %v2011 = vunpack.c.l.b16 %v1653
        %v2012 = vunpack.c.h.b16 %v1653
        %v2013 = vunpack.c.l.b16 %v1654
        %v2014 = vunpack.c.h.b16 %v1654
        %v2015 = vunpack.c.l.b16 %v1655
        %v2016 = vunpack.c.h.b16 %v1655
        %v2017 = vunpack.c.l.b16 %v1656
        %v2018 = vunpack.c.h.b16 %v1656
        %v2019 = vunpack.c.l.b16 %v1657
        %v2020 = vunpack.c.h.b16 %v1657
        %v2021 = vunpack.c.l.b16 %v1658
        %v2022 = vunpack.c.h.b16 %v1658
        %v2023 = vunpack.c.l.b16 %v1659
        %v2024 = vunpack.c.h.b16 %v1659
        %v2025 = vunpack.c.l.b16 %v1660
        %v2026 = vunpack.c.h.b16 %v1660
        %v2027 = vunpack.c.l.b16 %v1661
        %v2028 = vunpack.c.h.b16 %v1661
        %v2029 = vunpack.c.l.b16 %v1662
        %v2030 = vunpack.c.h.b16 %v1662
        %v2031 = vunpack.c.l.b16 %v1663
        %v2032 = vunpack.c.h.b16 %v1663
        %v2033 = vunpack.c.l.b16 %v1664
        %v2034 = vunpack.c.h.b16 %v1664
        %v2035 = vunpack.c.l.b16 %v1665
        %v2036 = vunpack.c.h.b16 %v1665
        %v2037 = vunpack.c.l.b16 %v1666
        %v2038 = vunpack.c.h.b16 %v1666
        %v2039 = vunpack.c.l.b16 %v1667
        %v2040 = vunpack.c.h.b16 %v1667
        %v2041 = vunpack.c.l.b16 %v1668
        %v2042 = vunpack.c.h.b16 %v1668
        %v2043 = vunpack.c.l.b16 %v1669
        %v2044 = vunpack.c.h.b16 %v1669
        %v2045 = vunpack.c.l.b16 %v1670
        %v2046 = vunpack.c.h.b16 %v1670
        %v2047 = vunpack.c.l.b16 %v1671
        %v2048 = vunpack.c.h.b16 %v1671
        %v2049 = vunpack.c.l.b16 %v1672
        %v2050 = vunpack.c.h.b16 %v1672
        %v2051 = vunpack.c.l.b16 %v1673
        %v2052 = vunpack.c.h.b16 %v1673
        %v2053 = vunpack.c.l.b16 %v1674
        %v2054 = vunpack.c.h.b16 %v1674
        %v2055 = vunpack.c.l.b16 %v1675
        %v2056 = vunpack.c.h.b16 %v1675
        %v2057 = vunpack.c.l.b16 %v1676
        %v2058 = vunpack.c.h.b16 %v1676
        %v2059 = vunpack.c.l.b16 %v1677
        %v2060 = vunpack.c.h.b16 %v1677
        %v2061 = vunpack.c.l.b16 %v1678
        %v2062 = vunpack.c.h.b16 %v1678
        %v2063 = vunpack.c.l.b16 %v1679
        %v2064 = vunpack.c.h.b16 %v1679
        %v2065 = vunpack.c.l.b16 %v1680
        %v2066 = vunpack.c.h.b16 %v1680
        %v2067 = vunpack.c.l.b16 %v1681
        %v2068 = vunpack.c.h.b16 %v1681
        %v2069 = vunpack.c.l.b16 %v1682
        %v2070 = vunpack.c.h.b16 %v1682
        %v2071 = vunpack.c.l.b16 %v1683
        %v2072 = vunpack.c.h.b16 %v1683
        %v2073 = vunpack.c.l.b16 %v1684
        %v2074 = vunpack.c.h.b16 %v1684
        %v2075 = vunpack.c.l.b16 %v1685
        %v2076 = vunpack.c.h.b16 %v1685
        %v2077 = vunpack.c.l.b16 %v1686
        %v2078 = vunpack.c.h.b16 %v1686
        %v2079 = vunpack.c.l.b16 %v1687
        %v2080 = vunpack.c.h.b16 %v1687
        %v2081 = vunpack.c.l.b16 %v1688
        %v2082 = vunpack.c.h.b16 %v1688
        %v2083 = vunpack.c.l.b16 %v1689
        %v2084 = vunpack.c.h.b16 %v1689
        %v2085 = vunpack.c.l.b16 %v1690
        %v2086 = vunpack.c.h.b16 %v1690
        %v2087 = vpack.c.b16 %v1833, %v1831
        %v2088 = vpack.c.b16 %v1834, %v1832
        %v2089 = vpack.c.b16 %v1837, %v1835
        %v2090 = vpack.c.b16 %v1838, %v1836
        %v2091 = vpack.c.b16 %v1841, %v1839
        %v2092 = vpack.c.b16 %v1842, %v1840
        %v2093 = vpack.c.b16 %v1845, %v1843
        %v2094 = vpack.c.b16 %v1846, %v1844
        %v2095 = vpack.c.b16 %v1849, %v1847
        %v2096 = vpack.c.b16 %v1850, %v1848
        %v2097 = vpack.c.b16 %v1853, %v1851
        %v2098 = vpack.c.b16 %v1854, %v1852
        %v2099 = vpack.c.b16 %v1857, %v1855
        %v2100 = vpack.c.b16 %v1858, %v1856
        %v2101 = vpack.c.b16 %v1861, %v1859
        %v2102 = vpack.c.b16 %v1862, %v1860
        %v2103 = vpack.c.b16 %v1865, %v1863
        %v2104 = vpack.c.b16 %v1866, %v1864
        %v2105 = vpack.c.b16 %v1869, %v1867
        %v2106 = vpack.c.b16 %v1870, %v1868
        %v2107 = vpack.c.b16 %v1873, %v1871
        %v2108 = vpack.c.b16 %v1874, %v1872
        %v2109 = vpack.c.b16 %v1877, %v1875
        %v2110 = vpack.c.b16 %v1878, %v1876
        %v2111 = vpack.c.b16 %v1881, %v1879
        %v2112 = vpack.c.b16 %v1882, %v1880
        %v2113 = vpack.c.b16 %v1885, %v1883
        %v2114 = vpack.c.b16 %v1886, %v1884
        %v2115 = vpack.c.b16 %v1889, %v1887
        %v2116 = vpack.c.b16 %v1890, %v1888
        %v2117 = vpack.c.b16 %v1893, %v1891
        %v2118 = vpack.c.b16 %v1894, %v1892
        %v2119 = vpack.c.b16 %v1897, %v1895
        %v2120 = vpack.c.b16 %v1898, %v1896
        %v2121 = vpack.c.b16 %v1901, %v1899
        %v2122 = vpack.c.b16 %v1902, %v1900
        %v2123 = vpack.c.b16 %v1905, %v1903
        %v2124 = vpack.c.b16 %v1906, %v1904
        %v2125 = vpack.c.b16 %v1909, %v1907
        %v2126 = vpack.c.b16 %v1910, %v1908
        %v2127 = vpack.c.b16 %v1913, %v1911
        %v2128 = vpack.c.b16 %v1914, %v1912
        %v2129 = vpack.c.b16 %v1917, %v1915
        %v2130 = vpack.c.b16 %v1918, %v1916
        %v2131 = vpack.c.b16 %v1921, %v1919
        %v2132 = vpack.c.b16 %v1922, %v1920
        %v2133 = vpack.c.b16 %v1925, %v1923
        %v2134 = vpack.c.b16 %v1926, %v1924
        %v2135 = vpack.c.b16 %v1929, %v1927
        %v2136 = vpack.c.b16 %v1930, %v1928
        %v2137 = vpack.c.b16 %v1933, %v1931
        %v2138 = vpack.c.b16 %v1934, %v1932
        %v2139 = vpack.c.b16 %v1937, %v1935
        %v2140 = vpack.c.b16 %v1938, %v1936
        %v2141 = vpack.c.b16 %v1941, %v1939
        %v2142 = vpack.c.b16 %v1942, %v1940
        %v2143 = vpack.c.b16 %v1945, %v1943
        %v2144 = vpack.c.b16 %v1946, %v1944
        %v2145 = vpack.c.b16 %v1949, %v1947
        %v2146 = vpack.c.b16 %v1950, %v1948
        %v2147 = vpack.c.b16 %v1953, %v1951
        %v2148 = vpack.c.b16 %v1954, %v1952
        %v2149 = vpack.c.b16 %v1957, %v1955
        %v2150 = vpack.c.b16 %v1958, %v1956
        %v2151 = vpack.c.b16 %v1961, %v1959
        %v2152 = vpack.c.b16 %v1962, %v1960
        %v2153 = vpack.c.b16 %v1965, %v1963
        %v2154 = vpack.c.b16 %v1966, %v1964
        %v2155 = vpack.c.b16 %v1969, %v1967
        %v2156 = vpack.c.b16 %v1970, %v1968
        %v2157 = vpack.c.b16 %v1973, %v1971
        %v2158 = vpack.c.b16 %v1974, %v1972
        %v2159 = vpack.c.b16 %v1977, %v1975
        %v2160 = vpack.c.b16 %v1978, %v1976
        %v2161 = vpack.c.b16 %v1981, %v1979
        %v2162 = vpack.c.b16 %v1982, %v1980
        %v2163 = vpack.c.b16 %v1985, %v1983
        %v2164 = vpack.c.b16 %v1986, %v1984
        %v2165 = vpack.c.b16 %v1989, %v1987
        %v2166 = vpack.c.b16 %v1990, %v1988
        %v2167 = vpack.c.b16 %v1993, %v1991
        %v2168 = vpack.c.b16 %v1994, %v1992
        %v2169 = vpack.c.b16 %v1997, %v1995
        %v2170 = vpack.c.b16 %v1998, %v1996
        %v2171 = vpack.c.b16 %v2001, %v1999
        %v2172 = vpack.c.b16 %v2002, %v2000
        %v2173 = vpack.c.b16 %v2005, %v2003
        %v2174 = vpack.c.b16 %v2006, %v2004
        %v2175 = vpack.c.b16 %v2009, %v2007
        %v2176 = vpack.c.b16 %v2010, %v2008
        %v2177 = vpack.c.b16 %v2013, %v2011
        %v2178 = vpack.c.b16 %v2014, %v2012
        %v2179 = vpack.c.b16 %v2017, %v2015
        %v2180 = vpack.c.b16 %v2018, %v2016
        %v2181 = vpack.c.b16 %v2021, %v2019
        %v2182 = vpack.c.b16 %v2022, %v2020
        %v2183 = vpack.c.b16 %v2025, %v2023
        %v2184 = vpack.c.b16 %v2026, %v2024
        %v2185 = vpack.c.b16 %v2029, %v2027
        %v2186 = vpack.c.b16 %v2030, %v2028
        %v2187 = vpack.c.b16 %v2033, %v2031
        %v2188 = vpack.c.b16 %v2034, %v2032
        %v2189 = vpack.c.b16 %v2037, %v2035
        %v2190 = vpack.c.b16 %v2038, %v2036
        %v2191 = vpack.c.b16 %v2041, %v2039
        %v2192 = vpack.c.b16 %v2042, %v2040
        %v2193 = vpack.c.b16 %v2045, %v2043
        %v2194 = vpack.c.b16 %v2046, %v2044
        %v2195 = vpack.c.b16 %v2049, %v2047
        %v2196 = vpack.c.b16 %v2050, %v2048
        %v2197 = vpack.c.b16 %v2053, %v2051
        %v2198 = vpack.c.b16 %v2054, %v2052
        %v2199 = vpack.c.b16 %v2057, %v2055
        %v2200 = vpack.c.b16 %v2058, %v2056
        %v2201 = vpack.c.b16 %v2061, %v2059
        %v2202 = vpack.c.b16 %v2062, %v2060
        %v2203 = vpack.c.b16 %v2065, %v2063
        %v2204 = vpack.c.b16 %v2066, %v2064
        %v2205 = vpack.c.b16 %v2069, %v2067
        %v2206 = vpack.c.b16 %v2070, %v2068
        %v2207 = vpack.c.b16 %v2073, %v2071
        %v2208 = vpack.c.b16 %v2074, %v2072
        %v2209 = vpack.c.b16 %v2077, %v2075
        %v2210 = vpack.c.b16 %v2078, %v2076
        %v2211 = vpack.c.b16 %v2081, %v2079
        %v2212 = vpack.c.b16 %v2082, %v2080
        %v2213 = vpack.c.b16 %v2085, %v2083
        %v2214 = vpack.c.b16 %v2086, %v2084
        %2343 = vmatprep.subr.bf16.mxu0 %v2088
        %2344 = vmatpush1.bf16.msra.mxu0 %v2087
        %2345 = vmatprep.subr.bf16.mxu0 %v2090
        %2346 = vmatpush1.bf16.msra.mxu0 %v2089
        %2347 = vmatprep.subr.bf16.mxu0 %v2092
        %2348 = vmatpush1.bf16.msra.mxu0 %v2091
        %2349 = vmatprep.subr.bf16.mxu0 %v2094
        %2350 = vmatpush1.bf16.msra.mxu0 %v2093
        %2351 = vmatprep.subr.bf16.mxu0 %v2096
        %2352 = vmatpush1.bf16.msra.mxu0 %v2095
        %2353 = vmatprep.subr.bf16.mxu0 %v2098
        %2354 = vmatpush1.bf16.msra.mxu0 %v2097
        %2355 = vmatprep.subr.bf16.mxu0 %v2100
        %2356 = vmatpush1.bf16.msra.mxu0 %v2099
        %2357 = vmatprep.subr.bf16.mxu0 %v2102
        %2358 = vmatpush1.bf16.msra.mxu0 %v2101
        %2359 = vmatprep.subr.bf16.mxu0 %v2104
        %2360 = vmatpush1.bf16.msra.mxu0 %v2103
        %2361 = vmatprep.subr.bf16.mxu0 %v2106
        %2362 = vmatpush1.bf16.msra.mxu0 %v2105
        %2363 = vmatprep.subr.bf16.mxu0 %v2108
        %2364 = vmatpush1.bf16.msra.mxu0 %v2107
        %2365 = vmatprep.subr.bf16.mxu0 %v2110
        %2366 = vmatpush1.bf16.msra.mxu0 %v2109
        %2367 = vmatprep.subr.bf16.mxu0 %v2112
        %2368 = vmatpush1.bf16.msra.mxu0 %v2111
        %2369 = vmatprep.subr.bf16.mxu0 %v2114
        %2370 = vmatpush1.bf16.msra.mxu0 %v2113
        %2371 = vmatprep.subr.bf16.mxu0 %v2116
        %2372 = vmatpush1.bf16.msra.mxu0 %v2115
        %2373 = vmatprep.subr.bf16.mxu0 %v2118
        %2374 = vmatpush1.bf16.msra.mxu0 %v2117
        %2375 = vmatprep.mubr.bf16.mxu0 %v1500
        %2376 = vmatmul.mubr.bf16.gmra.mrb[0].mxu0 %v1499
        %v2377 = vpop.f32.mrb[0].mxu0
        %v2378 = vadd.f32 %v1696, %v2377
        %v2379 = vpop.f32.mrb[0].mxu0
        %v2380 = vadd.f32 %v1700, %v2379
        %v2381 = vpop.f32.mrb[0].mxu0
        %v2382 = vadd.f32 %v1696, %v2381
        %v2383 = vpop.f32.mrb[0].mxu0
        %v2384 = vadd.f32 %v1700, %v2383
        %2385 = vmatprep.mubr.bf16.mxu0 %v1508
        %2386 = vmatmul.mubr.bf16.gmra.mrb[0].mxu0 %v1507
        %v2387 = vpop.f32.mrb[0].mxu0
        %v2388 = vadd.f32 %v1696, %v2387
        %v2389 = vpop.f32.mrb[0].mxu0
        %v2390 = vadd.f32 %v1700, %v2389
        %v2391 = vpop.f32.mrb[0].mxu0
        %v2392 = vadd.f32 %v1696, %v2391
        %v2393 = vpop.f32.mrb[0].mxu0
        %v2394 = vadd.f32 %v1700, %v2393
        %2395 = vmatprep.mubr.bf16.mxu0 %v1516
        %2396 = vmatmul.mubr.bf16.gmra.mrb[0].mxu0 %v1515
        %v2397 = vpop.f32.mrb[0].mxu0
        %v2398 = vadd.f32 %v1696, %v2397
        %v2399 = vpop.f32.mrb[0].mxu0
        %v2400 = vadd.f32 %v1700, %v2399
        %v2401 = vpop.f32.mrb[0].mxu0
        %v2402 = vadd.f32 %v1696, %v2401
        %v2403 = vpop.f32.mrb[0].mxu0
        %v2404 = vadd.f32 %v1700, %v2403
        %2405 = vmatprep.mubr.bf16.mxu0 %v1524
        %2406 = vmatmul.mubr.bf16.gmra.mrb[0].mxu0 %v1523
        %v2407 = vpop.f32.mrb[0].mxu0
        %v2408 = vadd.f32 %v1696, %v2407
        %v2409 = vpop.f32.mrb[0].mxu0
        %v2410 = vadd.f32 %v1700, %v2409
        %v2411 = vpop.f32.mrb[0].mxu0
        %v2412 = vadd.f32 %v1696, %v2411
        %v2413 = vpop.f32.mrb[0].mxu0
        %v2414 = vadd.f32 %v1700, %v2413
        %2415 = vmatprep.mubr.bf16.mxu0 %v1532
        %2416 = vmatmul.mubr.bf16.gmra.mrb[0].mxu0 %v1531
        %v2417 = vpop.f32.mrb[0].mxu0
        %v2418 = vadd.f32 %v1696, %v2417
        %v2419 = vpop.f32.mrb[0].mxu0
        %v2420 = vadd.f32 %v1700, %v2419
        %v2421 = vpop.f32.mrb[0].mxu0
        %v2422 = vadd.f32 %v1696, %v2421
        %v2423 = vpop.f32.mrb[0].mxu0
        %v2424 = vadd.f32 %v1700, %v2423
        %2425 = vmatprep.mubr.bf16.mxu0 %v1540
        %2426 = vmatmul.mubr.bf16.gmra.mrb[0].mxu0 %v1539
        %v2427 = vpop.f32.mrb[0].mxu0
        %v2428 = vadd.f32 %v1696, %v2427
        %v2429 = vpop.f32.mrb[0].mxu0
        %v2430 = vadd.f32 %v1700, %v2429
        %v2431 = vpop.f32.mrb[0].mxu0
        %v2432 = vadd.f32 %v1696, %v2431
        %v2433 = vpop.f32.mrb[0].mxu0
        %v2434 = vadd.f32 %v1700, %v2433
        %2435 = vmatprep.mubr.bf16.mxu0 %v1548
        %2436 = vmatmul.mubr.bf16.gmra.mrb[0].mxu0 %v1547
        %v2437 = vpop.f32.mrb[0].mxu0
        %v2438 = vadd.f32 %v1696, %v2437
        %v2439 = vpop.f32.mrb[0].mxu0
        %v2440 = vadd.f32 %v1700, %v2439
        %v2441 = vpop.f32.mrb[0].mxu0
        %v2442 = vadd.f32 %v1696, %v2441
        %v2443 = vpop.f32.mrb[0].mxu0
        %v2444 = vadd.f32 %v1700, %v2443
        %2445 = vmatprep.mubr.bf16.mxu0 %v1556
        %2446 = vmatmul.mubr.bf16.gmra.mrb[0].mxu0 %v1555
        %v2447 = vpop.f32.mrb[0].mxu0
        %v2448 = vadd.f32 %v1696, %v2447
        %v2449 = vpop.f32.mrb[0].mxu0
        %v2450 = vadd.f32 %v1700, %v2449
        %v2451 = vpop.f32.mrb[0].mxu0
        %v2452 = vadd.f32 %v1696, %v2451
        %v2453 = vpop.f32.mrb[0].mxu0
        %v2454 = vadd.f32 %v1700, %v2453
        %2455 = vdwg.mxu0
        %2456 = vmatprep.subr.bf16.mxu0 %v2120
        %2457 = vmatpush1.bf16.msra.mxu0 %v2119
        %2458 = vmatprep.subr.bf16.mxu0 %v2122
        %2459 = vmatpush1.bf16.msra.mxu0 %v2121
        %2460 = vmatprep.subr.bf16.mxu0 %v2124
        %2461 = vmatpush1.bf16.msra.mxu0 %v2123
        %2462 = vmatprep.subr.bf16.mxu0 %v2126
        %2463 = vmatpush1.bf16.msra.mxu0 %v2125
        %2464 = vmatprep.subr.bf16.mxu0 %v2128
        %2465 = vmatpush1.bf16.msra.mxu0 %v2127
        %2466 = vmatprep.subr.bf16.mxu0 %v2130
        %2467 = vmatpush1.bf16.msra.mxu0 %v2129
        %2468 = vmatprep.subr.bf16.mxu0 %v2132
        %2469 = vmatpush1.bf16.msra.mxu0 %v2131
        %2470 = vmatprep.subr.bf16.mxu0 %v2134
        %2471 = vmatpush1.bf16.msra.mxu0 %v2133
        %2472 = vmatprep.subr.bf16.mxu0 %v2136
        %2473 = vmatpush1.bf16.msra.mxu0 %v2135
        %2474 = vmatprep.subr.bf16.mxu0 %v2138
        %2475 = vmatpush1.bf16.msra.mxu0 %v2137
        %2476 = vmatprep.subr.bf16.mxu0 %v2140
        %2477 = vmatpush1.bf16.msra.mxu0 %v2139
        %2478 = vmatprep.subr.bf16.mxu0 %v2142
        %2479 = vmatpush1.bf16.msra.mxu0 %v2141
        %2480 = vmatprep.subr.bf16.mxu0 %v2144
        %2481 = vmatpush1.bf16.msra.mxu0 %v2143
        %2482 = vmatprep.subr.bf16.mxu0 %v2146
        %2483 = vmatpush1.bf16.msra.mxu0 %v2145
        %2484 = vmatprep.subr.bf16.mxu0 %v2148
        %2485 = vmatpush1.bf16.msra.mxu0 %v2147
        %2486 = vmatprep.subr.bf16.mxu0 %v2150
        %2487 = vmatpush1.bf16.msra.mxu0 %v2149
        %2488 = vmatprep.mubr.bf16.mxu0 %v1502
        %2489 = vmatmul.mubr.bf16.gmra.mrb[0].mxu0 %v1501
        %v2490 = vpop.f32.mrb[0].mxu0
        %v2491 = vadd.f32 %v2378, %v2490
        %v2492 = vpop.f32.mrb[0].mxu0
        %v2493 = vadd.f32 %v2380, %v2492
        %v2494 = vpop.f32.mrb[0].mxu0
        %v2495 = vadd.f32 %v2382, %v2494
        %v2496 = vpop.f32.mrb[0].mxu0
        %v2497 = vadd.f32 %v2384, %v2496
        %2498 = vmatprep.mubr.bf16.mxu0 %v1510
        %2499 = vmatmul.mubr.bf16.gmra.mrb[0].mxu0 %v1509
        %v2500 = vpop.f32.mrb[0].mxu0
        %v2501 = vadd.f32 %v2388, %v2500
        %v2502 = vpop.f32.mrb[0].mxu0
        %v2503 = vadd.f32 %v2390, %v2502
        %v2504 = vpop.f32.mrb[0].mxu0
        %v2505 = vadd.f32 %v2392, %v2504
        %v2506 = vpop.f32.mrb[0].mxu0
        %v2507 = vadd.f32 %v2394, %v2506
        %2508 = vmatprep.mubr.bf16.mxu0 %v1518
        %2509 = vmatmul.mubr.bf16.gmra.mrb[0].mxu0 %v1517
        %v2510 = vpop.f32.mrb[0].mxu0
        %v2511 = vadd.f32 %v2398, %v2510
        %v2512 = vpop.f32.mrb[0].mxu0
        %v2513 = vadd.f32 %v2400, %v2512
        %v2514 = vpop.f32.mrb[0].mxu0
        %v2515 = vadd.f32 %v2402, %v2514
        %v2516 = vpop.f32.mrb[0].mxu0
        %v2517 = vadd.f32 %v2404, %v2516
        %2518 = vmatprep.mubr.bf16.mxu0 %v1526
        %2519 = vmatmul.mubr.bf16.gmra.mrb[0].mxu0 %v1525
        %v2520 = vpop.f32.mrb[0].mxu0
        %v2521 = vadd.f32 %v2408, %v2520
        %v2522 = vpop.f32.mrb[0].mxu0
        %v2523 = vadd.f32 %v2410, %v2522
        %v2524 = vpop.f32.mrb[0].mxu0
        %v2525 = vadd.f32 %v2412, %v2524
        %v2526 = vpop.f32.mrb[0].mxu0
        %v2527 = vadd.f32 %v2414, %v2526
        %2528 = vmatprep.mubr.bf16.mxu0 %v1534
        %2529 = vmatmul.mubr.bf16.gmra.mrb[0].mxu0 %v1533
        %v2530 = vpop.f32.mrb[0].mxu0
        %v2531 = vadd.f32 %v2418, %v2530
        %v2532 = vpop.f32.mrb[0].mxu0
        %v2533 = vadd.f32 %v2420, %v2532
        %v2534 = vpop.f32.mrb[0].mxu0
        %v2535 = vadd.f32 %v2422, %v2534
        %v2536 = vpop.f32.mrb[0].mxu0
        %v2537 = vadd.f32 %v2424, %v2536
        %2538 = vmatprep.mubr.bf16.mxu0 %v1542
        %2539 = vmatmul.mubr.bf16.gmra.mrb[0].mxu0 %v1541
        %v2540 = vpop.f32.mrb[0].mxu0
        %v2541 = vadd.f32 %v2428, %v2540
        %v2542 = vpop.f32.mrb[0].mxu0
        %v2543 = vadd.f32 %v2430, %v2542
        %v2544 = vpop.f32.mrb[0].mxu0
        %v2545 = vadd.f32 %v2432, %v2544
        %v2546 = vpop.f32.mrb[0].mxu0
        %v2547 = vadd.f32 %v2434, %v2546
        %2548 = vmatprep.mubr.bf16.mxu0 %v1550
        %2549 = vmatmul.mubr.bf16.gmra.mrb[0].mxu0 %v1549
        %v2550 = vpop.f32.mrb[0].mxu0
        %v2551 = vadd.f32 %v2438, %v2550
        %v2552 = vpop.f32.mrb[0].mxu0
        %v2553 = vadd.f32 %v2440, %v2552
        %v2554 = vpop.f32.mrb[0].mxu0
        %v2555 = vadd.f32 %v2442, %v2554
        %v2556 = vpop.f32.mrb[0].mxu0
        %v2557 = vadd.f32 %v2444, %v2556
        %2558 = vmatprep.mubr.bf16.mxu0 %v1558
        %2559 = vmatmul.mubr.bf16.gmra.mrb[0].mxu0 %v1557
        %v2560 = vpop.f32.mrb[0].mxu0
        %v2561 = vadd.f32 %v2448, %v2560
        %v2562 = vpop.f32.mrb[0].mxu0
        %v2563 = vadd.f32 %v2450, %v2562
        %v2564 = vpop.f32.mrb[0].mxu0
        %v2565 = vadd.f32 %v2452, %v2564
        %v2566 = vpop.f32.mrb[0].mxu0
        %v2567 = vadd.f32 %v2454, %v2566
        %2568 = vdwg.mxu0
        %2569 = vmatprep.subr.bf16.mxu0 %v2152
        %2570 = vmatpush1.bf16.msra.mxu0 %v2151
        %2571 = vmatprep.subr.bf16.mxu0 %v2154
        %2572 = vmatpush1.bf16.msra.mxu0 %v2153
        %2573 = vmatprep.subr.bf16.mxu0 %v2156
        %2574 = vmatpush1.bf16.msra.mxu0 %v2155
        %2575 = vmatprep.subr.bf16.mxu0 %v2158
        %2576 = vmatpush1.bf16.msra.mxu0 %v2157
        %2577 = vmatprep.subr.bf16.mxu0 %v2160
        %2578 = vmatpush1.bf16.msra.mxu0 %v2159
        %2579 = vmatprep.subr.bf16.mxu0 %v2162
        %2580 = vmatpush1.bf16.msra.mxu0 %v2161
        %2581 = vmatprep.subr.bf16.mxu0 %v2164
        %2582 = vmatpush1.bf16.msra.mxu0 %v2163
        %2583 = vmatprep.subr.bf16.mxu0 %v2166
        %2584 = vmatpush1.bf16.msra.mxu0 %v2165
        %2585 = vmatprep.subr.bf16.mxu0 %v2168
        %2586 = vmatpush1.bf16.msra.mxu0 %v2167
        %2587 = vmatprep.subr.bf16.mxu0 %v2170
        %2588 = vmatpush1.bf16.msra.mxu0 %v2169
        %2589 = vmatprep.subr.bf16.mxu0 %v2172
        %2590 = vmatpush1.bf16.msra.mxu0 %v2171
        %2591 = vmatprep.subr.bf16.mxu0 %v2174
        %2592 = vmatpush1.bf16.msra.mxu0 %v2173
        %2593 = vmatprep.subr.bf16.mxu0 %v2176
        %2594 = vmatpush1.bf16.msra.mxu0 %v2175
        %2595 = vmatprep.subr.bf16.mxu0 %v2178
        %2596 = vmatpush1.bf16.msra.mxu0 %v2177
        %2597 = vmatprep.subr.bf16.mxu0 %v2180
        %2598 = vmatpush1.bf16.msra.mxu0 %v2179
        %2599 = vmatprep.subr.bf16.mxu0 %v2182
        %2600 = vmatpush1.bf16.msra.mxu0 %v2181
        %2601 = vmatprep.mubr.bf16.mxu0 %v1504
        %2602 = vmatmul.mubr.bf16.gmra.mrb[0].mxu0 %v1503
        %v2603 = vpop.f32.mrb[0].mxu0
        %v2604 = vadd.f32 %v2491, %v2603
        %v2605 = vpop.f32.mrb[0].mxu0
        %v2606 = vadd.f32 %v2493, %v2605
        %v2607 = vpop.f32.mrb[0].mxu0
        %v2608 = vadd.f32 %v2495, %v2607
        %v2609 = vpop.f32.mrb[0].mxu0
        %v2610 = vadd.f32 %v2497, %v2609
        %2611 = vmatprep.mubr.bf16.mxu0 %v1512
        %2612 = vmatmul.mubr.bf16.gmra.mrb[0].mxu0 %v1511
        %v2613 = vpop.f32.mrb[0].mxu0
        %v2614 = vadd.f32 %v2501, %v2613
        %v2615 = vpop.f32.mrb[0].mxu0
        %v2616 = vadd.f32 %v2503, %v2615
        %v2617 = vpop.f32.mrb[0].mxu0
        %v2618 = vadd.f32 %v2505, %v2617
        %v2619 = vpop.f32.mrb[0].mxu0
        %v2620 = vadd.f32 %v2507, %v2619
        %2621 = vmatprep.mubr.bf16.mxu0 %v1520
        %2622 = vmatmul.mubr.bf16.gmra.mrb[0].mxu0 %v1519
        %v2623 = vpop.f32.mrb[0].mxu0
        %v2624 = vadd.f32 %v2511, %v2623
        %v2625 = vpop.f32.mrb[0].mxu0
        %v2626 = vadd.f32 %v2513, %v2625
        %v2627 = vpop.f32.mrb[0].mxu0
        %v2628 = vadd.f32 %v2515, %v2627
        %v2629 = vpop.f32.mrb[0].mxu0
        %v2630 = vadd.f32 %v2517, %v2629
        %2631 = vmatprep.mubr.bf16.mxu0 %v1528
        %2632 = vmatmul.mubr.bf16.gmra.mrb[0].mxu0 %v1527
        %v2633 = vpop.f32.mrb[0].mxu0
        %v2634 = vadd.f32 %v2521, %v2633
        %v2635 = vpop.f32.mrb[0].mxu0
        %v2636 = vadd.f32 %v2523, %v2635
        %v2637 = vpop.f32.mrb[0].mxu0
        %v2638 = vadd.f32 %v2525, %v2637
        %v2639 = vpop.f32.mrb[0].mxu0
        %v2640 = vadd.f32 %v2527, %v2639
        %2641 = vmatprep.mubr.bf16.mxu0 %v1536
        %2642 = vmatmul.mubr.bf16.gmra.mrb[0].mxu0 %v1535
        %v2643 = vpop.f32.mrb[0].mxu0
        %v2644 = vadd.f32 %v2531, %v2643
        %v2645 = vpop.f32.mrb[0].mxu0
        %v2646 = vadd.f32 %v2533, %v2645
        %v2647 = vpop.f32.mrb[0].mxu0
        %v2648 = vadd.f32 %v2535, %v2647
        %v2649 = vpop.f32.mrb[0].mxu0
        %v2650 = vadd.f32 %v2537, %v2649
        %2651 = vmatprep.mubr.bf16.mxu0 %v1544
        %2652 = vmatmul.mubr.bf16.gmra.mrb[0].mxu0 %v1543
        %v2653 = vpop.f32.mrb[0].mxu0
        %v2654 = vadd.f32 %v2541, %v2653
        %v2655 = vpop.f32.mrb[0].mxu0
        %v2656 = vadd.f32 %v2543, %v2655
        %v2657 = vpop.f32.mrb[0].mxu0
        %v2658 = vadd.f32 %v2545, %v2657
        %v2659 = vpop.f32.mrb[0].mxu0
        %v2660 = vadd.f32 %v2547, %v2659
        %2661 = vmatprep.mubr.bf16.mxu0 %v1552
        %2662 = vmatmul.mubr.bf16.gmra.mrb[0].mxu0 %v1551
        %v2663 = vpop.f32.mrb[0].mxu0
        %v2664 = vadd.f32 %v2551, %v2663
        %v2665 = vpop.f32.mrb[0].mxu0
        %v2666 = vadd.f32 %v2553, %v2665
        %v2667 = vpop.f32.mrb[0].mxu0
        %v2668 = vadd.f32 %v2555, %v2667
        %v2669 = vpop.f32.mrb[0].mxu0
        %v2670 = vadd.f32 %v2557, %v2669
        %2671 = vmatprep.mubr.bf16.mxu0 %v1560
        %2672 = vmatmul.mubr.bf16.gmra.mrb[0].mxu0 %v1559
        %v2673 = vpop.f32.mrb[0].mxu0
        %v2674 = vadd.f32 %v2561, %v2673
        %v2675 = vpop.f32.mrb[0].mxu0
        %v2676 = vadd.f32 %v2563, %v2675
        %v2677 = vpop.f32.mrb[0].mxu0
        %v2678 = vadd.f32 %v2565, %v2677
        %v2679 = vpop.f32.mrb[0].mxu0
        %v2680 = vadd.f32 %v2567, %v2679
        %2681 = vdwg.mxu0
        %2682 = vmatprep.subr.bf16.mxu0 %v2184
        %2683 = vmatpush1.bf16.msra.mxu0 %v2183
        %2684 = vmatprep.subr.bf16.mxu0 %v2186
        %2685 = vmatpush1.bf16.msra.mxu0 %v2185
        %2686 = vmatprep.subr.bf16.mxu0 %v2188
        %2687 = vmatpush1.bf16.msra.mxu0 %v2187
        %2688 = vmatprep.subr.bf16.mxu0 %v2190
        %2689 = vmatpush1.bf16.msra.mxu0 %v2189
        %2690 = vmatprep.subr.bf16.mxu0 %v2192
        %2691 = vmatpush1.bf16.msra.mxu0 %v2191
        %2692 = vmatprep.subr.bf16.mxu0 %v2194
        %2693 = vmatpush1.bf16.msra.mxu0 %v2193
        %2694 = vmatprep.subr.bf16.mxu0 %v2196
        %2695 = vmatpush1.bf16.msra.mxu0 %v2195
        %2696 = vmatprep.subr.bf16.mxu0 %v2198
        %2697 = vmatpush1.bf16.msra.mxu0 %v2197
        %2698 = vmatprep.subr.bf16.mxu0 %v2200
        %2699 = vmatpush1.bf16.msra.mxu0 %v2199
        %2700 = vmatprep.subr.bf16.mxu0 %v2202
        %2701 = vmatpush1.bf16.msra.mxu0 %v2201
        %2702 = vmatprep.subr.bf16.mxu0 %v2204
        %2703 = vmatpush1.bf16.msra.mxu0 %v2203
        %2704 = vmatprep.subr.bf16.mxu0 %v2206
        %2705 = vmatpush1.bf16.msra.mxu0 %v2205
        %2706 = vmatprep.subr.bf16.mxu0 %v2208
        %2707 = vmatpush1.bf16.msra.mxu0 %v2207
        %2708 = vmatprep.subr.bf16.mxu0 %v2210
        %2709 = vmatpush1.bf16.msra.mxu0 %v2209
        %2710 = vmatprep.subr.bf16.mxu0 %v2212
        %2711 = vmatpush1.bf16.msra.mxu0 %v2211
        %2712 = vmatprep.subr.bf16.mxu0 %v2214
        %2713 = vmatpush1.bf16.msra.mxu0 %v2213
        %2714 = vmatprep.mubr.bf16.mxu0 %v1506
        %2715 = vmatmul.mubr.bf16.gmra.mrb[0].mxu0 %v1505
        %v2716 = vpop.f32.mrb[0].mxu0
        %v2717 = vadd.f32 %v2604, %v2716
        %v2718 = vpop.f32.mrb[0].mxu0
        %v2719 = vadd.f32 %v2606, %v2718
        %v2720 = vpop.f32.mrb[0].mxu0
        %v2721 = vadd.f32 %v2608, %v2720
        %v2722 = vpop.f32.mrb[0].mxu0
        %v2723 = vadd.f32 %v2610, %v2722
        %2724 = vmatprep.mubr.bf16.mxu0 %v1514
        %2725 = vmatmul.mubr.bf16.gmra.mrb[0].mxu0 %v1513
        %v2726 = vpop.f32.mrb[0].mxu0
        %v2727 = vadd.f32 %v2614, %v2726
        %v2728 = vpop.f32.mrb[0].mxu0
        %v2729 = vadd.f32 %v2616, %v2728
        %v2730 = vpop.f32.mrb[0].mxu0
        %v2731 = vadd.f32 %v2618, %v2730
        %v2732 = vpop.f32.mrb[0].mxu0
        %v2733 = vadd.f32 %v2620, %v2732
        %2734 = vmatprep.mubr.bf16.mxu0 %v1522
        %2735 = vmatmul.mubr.bf16.gmra.mrb[0].mxu0 %v1521
        %v2736 = vpop.f32.mrb[0].mxu0
        %v2737 = vadd.f32 %v2624, %v2736
        %v2738 = vpop.f32.mrb[0].mxu0
        %v2739 = vadd.f32 %v2626, %v2738
        %v2740 = vpop.f32.mrb[0].mxu0
        %v2741 = vadd.f32 %v2628, %v2740
        %v2742 = vpop.f32.mrb[0].mxu0
        %v2743 = vadd.f32 %v2630, %v2742
        %2744 = vmatprep.mubr.bf16.mxu0 %v1530
        %2745 = vmatmul.mubr.bf16.gmra.mrb[0].mxu0 %v1529
        %v2746 = vpop.f32.mrb[0].mxu0
        %v2747 = vadd.f32 %v2634, %v2746
        %v2748 = vpop.f32.mrb[0].mxu0
        %v2749 = vadd.f32 %v2636, %v2748
        %v2750 = vpop.f32.mrb[0].mxu0
        %v2751 = vadd.f32 %v2638, %v2750
        %v2752 = vpop.f32.mrb[0].mxu0
        %v2753 = vadd.f32 %v2640, %v2752
        %2754 = vmatprep.mubr.bf16.mxu0 %v1538
        %2755 = vmatmul.mubr.bf16.gmra.mrb[0].mxu0 %v1537
        %v2756 = vpop.f32.mrb[0].mxu0
        %v2757 = vadd.f32 %v2644, %v2756
        %v2758 = vpop.f32.mrb[0].mxu0
        %v2759 = vadd.f32 %v2646, %v2758
        %v2760 = vpop.f32.mrb[0].mxu0
        %v2761 = vadd.f32 %v2648, %v2760
        %v2762 = vpop.f32.mrb[0].mxu0
        %v2763 = vadd.f32 %v2650, %v2762
        %2764 = vmatprep.mubr.bf16.mxu0 %v1546
        %2765 = vmatmul.mubr.bf16.gmra.mrb[0].mxu0 %v1545
        %v2766 = vpop.f32.mrb[0].mxu0
        %v2767 = vadd.f32 %v2654, %v2766
        %v2768 = vpop.f32.mrb[0].mxu0
        %v2769 = vadd.f32 %v2656, %v2768
        %v2770 = vpop.f32.mrb[0].mxu0
        %v2771 = vadd.f32 %v2658, %v2770
        %v2772 = vpop.f32.mrb[0].mxu0
        %v2773 = vadd.f32 %v2660, %v2772
        %2774 = vmatprep.mubr.bf16.mxu0 %v1554
        %2775 = vmatmul.mubr.bf16.gmra.mrb[0].mxu0 %v1553
        %v2776 = vpop.f32.mrb[0].mxu0
        %v2777 = vadd.f32 %v2664, %v2776
        %v2778 = vpop.f32.mrb[0].mxu0
        %v2779 = vadd.f32 %v2666, %v2778
        %v2780 = vpop.f32.mrb[0].mxu0
        %v2781 = vadd.f32 %v2668, %v2780
        %v2782 = vpop.f32.mrb[0].mxu0
        %v2783 = vadd.f32 %v2670, %v2782
        %2784 = vmatprep.mubr.bf16.mxu0 %v1562
        %2785 = vmatmul.mubr.bf16.gmra.mrb[0].mxu0 %v1561
        %v2786 = vpop.f32.mrb[0].mxu0
        %v2787 = vadd.f32 %v2674, %v2786
        %v2788 = vpop.f32.mrb[0].mxu0
        %v2789 = vadd.f32 %v2676, %v2788
        %v2790 = vpop.f32.mrb[0].mxu0
        %v2791 = vadd.f32 %v2678, %v2790
        %v2792 = vpop.f32.mrb[0].mxu0
        %v2793 = vadd.f32 %v2680, %v2792
        %2794 = vdwg.mxu0
        %2795 = vst [vmem:[%s216] sm:$0xff] %v2717
        %2796 = vst [vmem:[%s216 + $0x8] sm:$0xff] %v2719
        %2797 = vst [vmem:[%s216 + $0x10] sm:$0xff] %v2721
        %2798 = vst [vmem:[%s216 + $0x18] sm:$0xff] %v2723
        %2799 = vst [vmem:[%s216 + $0x20] sm:$0xff] %v2727
        %2800 = vst [vmem:[%s216 + $0x28] sm:$0xff] %v2729
        %2801 = vst [vmem:[%s216 + $0x30] sm:$0xff] %v2731
        %2802 = vst [vmem:[%s216 + $0x38] sm:$0xff] %v2733
        %2803 = vst [vmem:[%s216 + $0x40] sm:$0xff] %v2737
        %2804 = vst [vmem:[%s216 + $0x48] sm:$0xff] %v2739
        %2805 = vst [vmem:[%s216 + $0x50] sm:$0xff] %v2741
        %2806 = vst [vmem:[%s216 + $0x58] sm:$0xff] %v2743
        %2807 = vst [vmem:[%s216 + $0x60] sm:$0xff] %v2747
        %2808 = vst [vmem:[%s216 + $0x68] sm:$0xff] %v2749
        %2809 = vst [vmem:[%s216 + $0x70] sm:$0xff] %v2751
        %2810 = vst [vmem:[%s216 + $0x78] sm:$0xff] %v2753
        %2811 = vst [vmem:[%s216 + $0x80] sm:$0xff] %v2757
        %2812 = vst [vmem:[%s216 + $0x88] sm:$0xff] %v2759
        %2813 = vst [vmem:[%s216 + $0x90] sm:$0xff] %v2761
        %2814 = vst [vmem:[%s216 + $0x98] sm:$0xff] %v2763
        %2815 = vst [vmem:[%s216 + $0xa0] sm:$0xff] %v2767
        %2816 = vst [vmem:[%s216 + $0xa8] sm:$0xff] %v2769
        %2817 = vst [vmem:[%s216 + $0xb0] sm:$0xff] %v2771
        %2818 = vst [vmem:[%s216 + $0xb8] sm:$0xff] %v2773
        %2819 = vst [vmem:[%s216 + $0xc0] sm:$0xff] %v2777
        %2820 = vst [vmem:[%s216 + $0xc8] sm:$0xff] %v2779
        %2821 = vst [vmem:[%s216 + $0xd0] sm:$0xff] %v2781
        %2822 = vst [vmem:[%s216 + $0xd8] sm:$0xff] %v2783
        %2823 = vst [vmem:[%s216 + $0xe0] sm:$0xff] %v2787
        %2824 = vst [vmem:[%s216 + $0xe8] sm:$0xff] %v2789
        %2825 = vst [vmem:[%s216 + $0xf0] sm:$0xff] %v2791
        %2826 = vst [vmem:[%s216 + $0xf8] sm:$0xff] %v2793
        %s2827 = sand.u32 %s97, 1
        %s2828 = scalar_lea.sflag [#allocation4], %s2827
        %s2829 = sand.u32 %s97, 1
        %s2830 = smul.addr %s2829, 256
        %s2831 = scalar_lea.vmem [#allocation8], %s2830
        // Predicated region
        $region45: #{tpu_custom_call.1} parent=31 // pred_check
          %p2832 = pneg %p107
        $region46: #{tpu_custom_call.1} parent=31 // pred_check_branch
          %2834 = sbr.rel (%p2832) target = $region48
        $region47: #{tpu_custom_call.1} parent=31 // pred_region
          %s2835 = smul.u32 16, %s21
          %s2837 = ssub.s32 4096, 4096
          %2838 = vsyncadd %s2828, %s2837
          %s2839 = smul.addr %s2835, 2
          %s2840 = smul.addr %s2839, 128
          %s2841 = scalar_lea.hbm %s3, %s2840
          %s2842 = sshll.u32 %s2831, 4
          %s2843 = int_to_ptr.vmem [resolvable:$true] %s2842
          %2848 = dma.vmem_to_hbm [thread:$0]  %s2843, 4096, %s2841, %s2828, 256, 256, 16
        $region48: #{tpu_custom_call.1} parent=31 // pred_fallthru
          _
      $region32: #{tpu_custom_call.1} parent=5 // pred_fallthru
        _
      %p2849 = scmp.le.s32.totalorder 2, %s16
      // Predicated region
      $region49: #{tpu_custom_call.1} parent=5 // pred_check
        %p2850 = pneg %p2849
      $region50: #{tpu_custom_call.1} parent=5 // pred_check_branch
        %2852 = sbr.rel (%p2850) target = $region52
      $region51: #{tpu_custom_call.1} parent=5 // pred_region
        %s2853 = ssub.s32 %s16, 2
        // Predicated region
        $region53: #{tpu_custom_call.1} parent=51 // pred_check
          %p2854 = pneg %p113
        $region54: #{tpu_custom_call.1} parent=51 // pred_check_branch
          %2856 = sbr.rel (%p2854) target = $region56
        $region55: #{tpu_custom_call.1} parent=51 // pred_region
          %s2857 = sand.u32 %s98, 1
          %s2858 = scalar_lea.sflag [#allocation4], %s2857
          %s2859 = sand.u32 %s98, 1
          %s2860 = smul.addr %s2859, 256
          %s2861 = scalar_lea.vmem [#allocation8], %s2860
          %2862 = dma.done %s2858, 4096
        $region56: #{tpu_custom_call.1} parent=51 // pred_fallthru
          _
      $region52: #{tpu_custom_call.1} parent=5 // pred_fallthru
        _
    $region6: #{tpu_custom_call.1} parent=1 // loop_footer
      %s20 = sadd.s32 1, %s16
    $region7: #{tpu_custom_call.1} parent=1 // loop_footer_branch
      %15 = sbr.rel target = $region3
    $region8: #{tpu_custom_call.1} parent=1 // loop_exit
      _
    %2863 = vsyncpa [#allocation3], 1
    %s2864 = scalar_lea.sflag [#allocation3], 1
    %2865 = vsyncpa %s2864, 1
    %2866 = vsyncpa [#allocation6], 1
    %2867 = vsyncpa [#allocation4], 1
    %s2868 = scalar_lea.sflag [#allocation4], 1
    %2869 = vsyncpa %s2868, 1

</llo_original>
